<compile_context>
chip_gen: v7x
topology: tpu7x:2x2x1
jax: 0.10.0
libtpu: 0.0.40
codegen_flags: <defaults>
</compile_context>

<pallas_src>
import math

import jax
import jax.numpy as jnp
from jax import lax
from jax.experimental import pallas as pl
from jax.experimental.pallas import tpu as pltpu

BN_EPS = 1e-5


def _make_gc_block_kernel(batch, seq_len, n_valid):
    """batch=B, seq_len=L, n_valid=B*L (number of valid lane columns)."""
    inv_b = 1.0 / float(batch)

    def kernel(x_ref, a1_ref, w1_ref, g1_ref, be1_ref,
               a2_ref, w2_ref, g2_ref, be2_ref, o_ref):
        M, BLP = x_ref.shape
        L = seq_len

        # ---- in-kernel 0/1 selector matrices (no HBM traffic) -------------------
        # sel  (BLP, L): sums the B batch copies of lane-column l           (stats)
        # selt (L, BLP): broadcasts a per-(m, l) value back across the batch (affine)
        j = lax.broadcasted_iota(jnp.int32, (BLP, L), 0)
        l = lax.broadcasted_iota(jnp.int32, (BLP, L), 1)
        hit = (j == l)
        for b in range(1, batch):                       # static unroll, mod-free
            hit = hit | (j == l + b * L)
        sel = jnp.where(hit & (j < n_valid), 1.0, 0.0)              # f32 (BLP, L)

        lt = lax.broadcasted_iota(jnp.int32, (L, BLP), 0)
        jt = lax.broadcasted_iota(jnp.int32, (L, BLP), 1)
        hit_t = (jt == lt)
        for b in range(1, batch):
            hit_t = hit_t | (jt == lt + b * L)
        selt = jnp.where(hit_t & (jt < n_valid), 1.0, 0.0)          # f32 (L, BLP)

        def layer(inp, a_ref, w_ref, g_ref, be_ref):
            # --- GraphConvolution: whole batch, two bf16 MXU matmuls, f32 acc ----
            t = jnp.dot(inp.astype(jnp.bfloat16), w_ref[...],
                        preferred_element_type=jnp.float32)         # (M, BLP)
            y = jnp.dot(a_ref[...], t.astype(jnp.bfloat16),
                        preferred_element_type=jnp.float32)         # (M, BLP)
            # (GC bias omitted: per-feature constants cancel in the batch-mean below.)

            # --- BatchNorm1d (training batch stats): ONE merged stats matmul -----
            # f32 HIGHEST here: avoids bf16 cancellation in E[y^2]-mean^2 (tiny matmul).
            yy = jnp.concatenate([y, y * y], axis=0)                 # (2M, BLP)
            stats = jnp.dot(yy, sel, preferred_element_type=jnp.float32,
                            precision=lax.Precision.HIGHEST)         # (2M, L)
            mean = stats[:M] * inv_b
            var = jnp.maximum(stats[M:] * inv_b - mean * mean, 0.0)
            scale = g_ref[...] * lax.rsqrt(var + BN_EPS)              # (M, L)
            shift = be_ref[...] - mean * scale                        # (M, L)

            # --- ONE merged broadcast matmul back to the (M, BLP) lane layout ----
            ssf = jnp.dot(jnp.concatenate([scale, shift], axis=0), selt,
                          preferred_element_type=jnp.float32)         # (2M, BLP)
            return jnp.tanh(y * ssf[:M] + ssf[M:])

        y = layer(x_ref[...], a1_ref, w1_ref, g1_ref, be1_ref)
        # TODO(synk): nn.Dropout is stochastic in train mode; modeled as identity (eval).
        y = layer(y, a2_ref, w2_ref, g2_ref, be2_ref)
        o_ref[...] = y + x_ref[...]          # residual: re-read x, don't keep it live

    return kernel


def fold_gc_block_params(p, batch_size):
    """One-time parameter folding — hoisted out of the per-step hot path.

    Returns only arrays (bf16 MXU operands, f32 BN affine); all static sizes are
    recovered from shapes inside gc_block_forward so the result feeds a jitted forward.
    """
    C = p['wc1'].shape[0]
    N = p['att1'].shape[0]
    L = p['ws1'].shape[0]
    M = C * N
    BL = batch_size * L
    BLP = -(-BL // 128) * 128                       # pad lane axis to a multiple of 128

    def fold_a(wc, att):
        # A[C*N + n_out, c*N + n_in] = wc[c, C] * att[n_out, n_in]   (outer product)
        return jnp.einsum('cC,Nn->CNcn', wc, att).reshape(M, M).astype(jnp.bfloat16)

    def fold_ws(ws):
        # Block-diagonal Ws (one block per batch element), zero-padded to (BLP, BLP).
        # TODO(synk): O(B^2 L^2) zeros — fine at small B; tile per batch-group for big B.
        w = jnp.kron(jnp.eye(batch_size, dtype=jnp.float32), ws)
        return jnp.pad(w, ((0, BLP - BL), (0, BLP - BL))).astype(jnp.bfloat16)

    return dict(
        a1=fold_a(p['wc1'], p['att1']), wsb1=fold_ws(p['ws1']),
        g1=p['gamma1'].reshape(M, L).astype(jnp.float32),
        be1=p['beta1'].reshape(M, L).astype(jnp.float32),
        a2=fold_a(p['wc2'], p['att2']), wsb2=fold_ws(p['ws2']),
        g2=p['gamma2'].reshape(M, L).astype(jnp.float32),
        be2=p['beta2'].reshape(M, L).astype(jnp.float32),
    )


@jax.jit
def gc_block_forward(x, folded):
    """x: (B, C, node_n, seq_len) float32 -> same shape (GC_Block forward, train-mode BN)."""
    B, C, N, L = x.shape
    M = C * N
    BL = B * L
    BLP = folded['wsb1'].shape[0]

    # (B, C, N, L) -> lane-dense (M, B*L) slab, zero-padded on the lane axis to BLP.
    xf = x.reshape(B, M, L).transpose(1, 0, 2).reshape(M, BL)
    xf = jnp.pad(xf, ((0, 0), (0, BLP - BL)))

    kernel = _make_gc_block_kernel(B, L, BL)
    args = (xf, folded['a1'], folded['wsb1'], folded['g1'], folded['be1'],
            folded['a2'], folded['wsb2'], folded['g2'], folded['be2'])
    vmem = pl.BlockSpec(memory_space=pltpu.MemorySpace.VMEM)

    out = pl.pallas_call(
        kernel,
        out_shape=jax.ShapeDtypeStruct((M, BLP), jnp.float32),
        in_specs=[vmem] * len(args),
        out_specs=vmem,
    )(*args)
    # NOTE: no v7x 2-TensorCore grid split here — BatchNorm couples the whole batch and
    # layer 2 needs the full layer-1 output; to amortize launch/DMA overhead when stacking
    # blocks, chain several GC_Blocks through one pallas_call with the slab kept in VMEM.

    return out[:, :BL].reshape(M, B, L).transpose(1, 0, 2).reshape(B, C, N, L)


# ----------------------- pure-JAX reference (mirrors PyTorch ops) -----------------------
def graph_conv_ref(x, att, wc, ws, bias):
    support = jnp.matmul(att, jnp.transpose(x, (0, 3, 2, 1)))      # (b, l, n, c)
    out_gcn = jnp.matmul(support, wc)                              # (b, l, n, C)
    out_fc = jnp.matmul(jnp.transpose(out_gcn, (0, 2, 3, 1)), ws)  # (b, n, C, L)
    out_fc = jnp.transpose(out_fc, (0, 2, 1, 3))                   # (b, C, n, L)
    return out_fc + bias


def bn_ref(y, gamma, beta):
    b = y.shape[0]
    yf = y.reshape(b, -1)
    mean = jnp.mean(yf, axis=0)
    var = jnp.mean(jnp.square(yf - mean), axis=0)
    out = (yf - mean) / jnp.sqrt(var + BN_EPS) * gamma + beta
    return out.reshape(y.shape)


def gc_block_ref(x, p):
    y = graph_conv_ref(x, p['att1'], p['wc1'], p['ws1'], p['bias1'])
    y = jnp.tanh(bn_ref(y, p['gamma1'], p['beta1']))
    y = graph_conv_ref(y, p['att2'], p['wc2'], p['ws2'], p['bias2'])
    y = jnp.tanh(bn_ref(y, p['gamma2'], p['beta2']))
    return y + x


if __name__ == "__main__":
    B, C, node_n, seq_len = 4, 4, 22, 20          # channal=4, node_n=22, seq_len=20
    feat = C * node_n * seq_len

    key = jax.random.PRNGKey(0)
    ks = jax.random.split(key, 9)
    stdv = 1.0 / math.sqrt(node_n)                # matches reset_parameters()
    u = lambda k, shape: jax.random.uniform(k, shape, jnp.float32, -stdv, stdv)

    params = dict(
        att1=u(ks[0], (node_n, node_n)), ws1=u(ks[1], (seq_len, seq_len)),
        wc1=u(ks[2], (C, C)), bias1=u(ks[3], (seq_len,)),
        att2=u(ks[4], (node_n, node_n)), ws2=u(ks[5], (seq_len, seq_len)),
        wc2=u(ks[6], (C, C)), bias2=u(ks[7], (seq_len,)),
        gamma1=jnp.ones((feat,), jnp.float32), beta1=jnp.zeros((feat,), jnp.float32),
        gamma2=jnp.ones((feat,), jnp.float32), beta2=jnp.zeros((feat,), jnp.float32),
    )
    x = jax.random.normal(ks[8], (B, C, node_n, seq_len), jnp.float32)

    folded = fold_gc_block_params(params, batch_size=B)   # one-time folding (cold path)
    out = jax.block_until_ready(gc_block_forward(x, folded))

    with jax.default_matmul_precision("highest"):         # near-exact f32 baseline
        ref = jax.block_until_ready(jax.jit(gc_block_ref)(x, params))

    assert out.shape == x.shape and out.dtype == x.dtype
    err = float(jnp.mean(jnp.abs(out - ref)))
    # bf16 MXU operands with f32 accumulation (per perf review) -> tolerance 2e-2.
    assert err < 2e-2, f"kernel/reference mismatch, mean abs err = {err}"
    print("KERNEL_OK")
</pallas_src>

<mosaic_0001>
module attributes {stable_mosaic.version = 11 : i64} {
  func.func @kernel(%arg0: memref<88x128xf32, #tpu.memory_space<vmem>>, %arg1: memref<88x88xbf16, #tpu.memory_space<vmem>>, %arg2: memref<128x128xbf16, #tpu.memory_space<vmem>>, %arg3: memref<88x20xf32, #tpu.memory_space<vmem>>, %arg4: memref<88x20xf32, #tpu.memory_space<vmem>>, %arg5: memref<88x88xbf16, #tpu.memory_space<vmem>>, %arg6: memref<128x128xbf16, #tpu.memory_space<vmem>>, %arg7: memref<88x20xf32, #tpu.memory_space<vmem>>, %arg8: memref<88x20xf32, #tpu.memory_space<vmem>>, %arg9: memref<88x128xf32, #tpu.memory_space<vmem>>) attributes {dimension_semantics = [], scalar_prefetch = 0 : i64, scratch_operands = 0 : i64, tpu.core_type = #tpu.core_type<tc>} {
    %0 = tpu.iota {dimensions = array<i32: 0>} : vector<128x20xi32>
    %1 = tpu.iota {dimensions = array<i32: 1>} : vector<128x20xi32>
    %2 = arith.cmpi eq, %0, %1 : vector<128x20xi32>
    %c20_i32 = arith.constant 20 : i32
    %3 = vector.broadcast %c20_i32 : i32 to vector<128x20xi32>
    %4 = arith.addi %1, %3 : vector<128x20xi32>
    %5 = arith.cmpi eq, %0, %4 : vector<128x20xi32>
    %6 = arith.ori %2, %5 : vector<128x20xi1>
    %c40_i32 = arith.constant 40 : i32
    %7 = vector.broadcast %c40_i32 : i32 to vector<128x20xi32>
    %8 = arith.addi %1, %7 : vector<128x20xi32>
    %9 = arith.cmpi eq, %0, %8 : vector<128x20xi32>
    %10 = arith.ori %6, %9 : vector<128x20xi1>
    %c60_i32 = arith.constant 60 : i32
    %11 = vector.broadcast %c60_i32 : i32 to vector<128x20xi32>
    %12 = arith.addi %1, %11 : vector<128x20xi32>
    %13 = arith.cmpi eq, %0, %12 : vector<128x20xi32>
    %14 = arith.ori %10, %13 : vector<128x20xi1>
    %c80_i32 = arith.constant 80 : i32
    %15 = vector.broadcast %c80_i32 : i32 to vector<128x20xi32>
    %16 = arith.cmpi slt, %0, %15 : vector<128x20xi32>
    %17 = arith.andi %14, %16 : vector<128x20xi1>
    %cst = arith.constant 1.000000e+00 : f32
    %cst_0 = arith.constant 0.000000e+00 : f32
    %18 = vector.broadcast %cst : f32 to vector<128x20xf32>
    %19 = vector.broadcast %cst_0 : f32 to vector<128x20xf32>
    %20 = arith.select %17, %18, %19 : vector<128x20xi1>, vector<128x20xf32>
    %21 = tpu.iota {dimensions = array<i32: 0>} : vector<20x128xi32>
    %22 = tpu.iota {dimensions = array<i32: 1>} : vector<20x128xi32>
    %23 = arith.cmpi eq, %22, %21 : vector<20x128xi32>
    %c20_i32_1 = arith.constant 20 : i32
    %24 = vector.broadcast %c20_i32_1 : i32 to vector<20x128xi32>
    %25 = arith.addi %21, %24 : vector<20x128xi32>
    %26 = arith.cmpi eq, %22, %25 : vector<20x128xi32>
    %27 = arith.ori %23, %26 : vector<20x128xi1>
    %c40_i32_2 = arith.constant 40 : i32
    %28 = vector.broadcast %c40_i32_2 : i32 to vector<20x128xi32>
    %29 = arith.addi %21, %28 : vector<20x128xi32>
    %30 = arith.cmpi eq, %22, %29 : vector<20x128xi32>
    %31 = arith.ori %27, %30 : vector<20x128xi1>
    %c60_i32_3 = arith.constant 60 : i32
    %32 = vector.broadcast %c60_i32_3 : i32 to vector<20x128xi32>
    %33 = arith.addi %21, %32 : vector<20x128xi32>
    %34 = arith.cmpi eq, %22, %33 : vector<20x128xi32>
    %35 = arith.ori %31, %34 : vector<20x128xi1>
    %c80_i32_4 = arith.constant 80 : i32
    %36 = vector.broadcast %c80_i32_4 : i32 to vector<20x128xi32>
    %37 = arith.cmpi slt, %22, %36 : vector<20x128xi32>
    %38 = arith.andi %35, %37 : vector<20x128xi1>
    %cst_5 = arith.constant 1.000000e+00 : f32
    %cst_6 = arith.constant 0.000000e+00 : f32
    %39 = vector.broadcast %cst_5 : f32 to vector<20x128xf32>
    %40 = vector.broadcast %cst_6 : f32 to vector<20x128xf32>
    %41 = arith.select %38, %39, %40 : vector<20x128xi1>, vector<20x128xf32>
    %c0 = arith.constant 0 : index
    %c0_7 = arith.constant 0 : index
    %42 = vector.load %arg0[%c0, %c0_7] : memref<88x128xf32, #tpu.memory_space<vmem>>, vector<88x128xf32>
    %43 = arith.truncf %42 : vector<88x128xf32> to vector<88x128xbf16>
    %c0_8 = arith.constant 0 : index
    %c0_9 = arith.constant 0 : index
    %44 = vector.load %arg2[%c0_8, %c0_9] : memref<128x128xbf16, #tpu.memory_space<vmem>>, vector<128x128xbf16>
    %cst_10 = arith.constant dense<0.000000e+00> : vector<88x128xf32>
    %45 = tpu.matmul %43, %44, %cst_10 {dimension_numbers = #tpu.dot_dimension_numbers<[1], [0], [0], [1], [0, 0, 1, 1], [], []>} : vector<88x128xbf16>, vector<128x128xbf16>, vector<88x128xf32> -> vector<88x128xf32>
    %c0_11 = arith.constant 0 : index
    %c0_12 = arith.constant 0 : index
    %46 = vector.load %arg1[%c0_11, %c0_12] : memref<88x88xbf16, #tpu.memory_space<vmem>>, vector<88x88xbf16>
    %47 = arith.truncf %45 : vector<88x128xf32> to vector<88x128xbf16>
    %cst_13 = arith.constant dense<0.000000e+00> : vector<88x128xf32>
    %48 = tpu.matmul %46, %47, %cst_13 {dimension_numbers = #tpu.dot_dimension_numbers<[1], [0], [0], [1], [0, 0, 1, 1], [], []>} : vector<88x88xbf16>, vector<88x128xbf16>, vector<88x128xf32> -> vector<88x128xf32>
    %49 = arith.mulf %48, %48 : vector<88x128xf32>
    %50 = tpu.concatenate %48, %49 in 0 : vector<88x128xf32>, vector<88x128xf32> -> vector<176x128xf32>
    %cst_14 = arith.constant dense<0.000000e+00> : vector<176x20xf32>
    %51 = tpu.matmul %50, %20, %cst_14 {dimension_numbers = #tpu.dot_dimension_numbers<[1], [0], [0], [1], [0, 0, 1, 1], [], []>, precision = #tpu.contract_precision<fp32>} : vector<176x128xf32>, vector<128x20xf32>, vector<176x20xf32> -> vector<176x20xf32>
    %52 = vector.extract_strided_slice %51 {offsets = [0, 0], sizes = [88, 20], strides = [1, 1]} : vector<176x20xf32> to vector<88x20xf32>
    %cst_15 = arith.constant 2.500000e-01 : f32
    %53 = vector.broadcast %cst_15 : f32 to vector<88x20xf32>
    %54 = arith.mulf %52, %53 : vector<88x20xf32>
    %55 = vector.extract_strided_slice %51 {offsets = [88, 0], sizes = [88, 20], strides = [1, 1]} : vector<176x20xf32> to vector<88x20xf32>
    %cst_16 = arith.constant 2.500000e-01 : f32
    %56 = vector.broadcast %cst_16 : f32 to vector<88x20xf32>
    %57 = arith.mulf %55, %56 : vector<88x20xf32>
    %58 = arith.mulf %54, %54 : vector<88x20xf32>
    %59 = arith.subf %57, %58 : vector<88x20xf32>
    %cst_17 = arith.constant 0.000000e+00 : f32
    %60 = vector.broadcast %cst_17 : f32 to vector<88x20xf32>
    %61 = arith.maximumf %59, %60 : vector<88x20xf32>
    %c0_18 = arith.constant 0 : index
    %c0_19 = arith.constant 0 : index
    %62 = vector.load %arg3[%c0_18, %c0_19] : memref<88x20xf32, #tpu.memory_space<vmem>>, vector<88x20xf32>
    %cst_20 = arith.constant 9.99999974E-6 : f32
    %63 = vector.broadcast %cst_20 : f32 to vector<88x20xf32>
    %64 = arith.addf %61, %63 : vector<88x20xf32>
    %65 = math.rsqrt %64 : vector<88x20xf32>
    %66 = arith.mulf %62, %65 : vector<88x20xf32>
    %c0_21 = arith.constant 0 : index
    %c0_22 = arith.constant 0 : index
    %67 = vector.load %arg4[%c0_21, %c0_22] : memref<88x20xf32, #tpu.memory_space<vmem>>, vector<88x20xf32>
    %68 = arith.mulf %54, %66 : vector<88x20xf32>
    %69 = arith.subf %67, %68 : vector<88x20xf32>
    %70 = tpu.concatenate %66, %69 in 0 : vector<88x20xf32>, vector<88x20xf32> -> vector<176x20xf32>
    %cst_23 = arith.constant dense<0.000000e+00> : vector<176x128xf32>
    %71 = tpu.matmul %70, %41, %cst_23 {dimension_numbers = #tpu.dot_dimension_numbers<[1], [0], [0], [1], [0, 0, 1, 1], [], []>} : vector<176x20xf32>, vector<20x128xf32>, vector<176x128xf32> -> vector<176x128xf32>
    %72 = vector.extract_strided_slice %71 {offsets = [0, 0], sizes = [88, 128], strides = [1, 1]} : vector<176x128xf32> to vector<88x128xf32>
    %73 = arith.mulf %48, %72 : vector<88x128xf32>
    %74 = vector.extract_strided_slice %71 {offsets = [88, 0], sizes = [88, 128], strides = [1, 1]} : vector<176x128xf32> to vector<88x128xf32>
    %75 = arith.addf %73, %74 : vector<88x128xf32>
    %76 = math.tanh %75 : vector<88x128xf32>
    %77 = arith.truncf %76 : vector<88x128xf32> to vector<88x128xbf16>
    %c0_24 = arith.constant 0 : index
    %c0_25 = arith.constant 0 : index
    %78 = vector.load %arg6[%c0_24, %c0_25] : memref<128x128xbf16, #tpu.memory_space<vmem>>, vector<128x128xbf16>
    %cst_26 = arith.constant dense<0.000000e+00> : vector<88x128xf32>
    %79 = tpu.matmul %77, %78, %cst_26 {dimension_numbers = #tpu.dot_dimension_numbers<[1], [0], [0], [1], [0, 0, 1, 1], [], []>} : vector<88x128xbf16>, vector<128x128xbf16>, vector<88x128xf32> -> vector<88x128xf32>
    %c0_27 = arith.constant 0 : index
    %c0_28 = arith.constant 0 : index
    %80 = vector.load %arg5[%c0_27, %c0_28] : memref<88x88xbf16, #tpu.memory_space<vmem>>, vector<88x88xbf16>
    %81 = arith.truncf %79 : vector<88x128xf32> to vector<88x128xbf16>
    %cst_29 = arith.constant dense<0.000000e+00> : vector<88x128xf32>
    %82 = tpu.matmul %80, %81, %cst_29 {dimension_numbers = #tpu.dot_dimension_numbers<[1], [0], [0], [1], [0, 0, 1, 1], [], []>} : vector<88x88xbf16>, vector<88x128xbf16>, vector<88x128xf32> -> vector<88x128xf32>
    %83 = arith.mulf %82, %82 : vector<88x128xf32>
    %84 = tpu.concatenate %82, %83 in 0 : vector<88x128xf32>, vector<88x128xf32> -> vector<176x128xf32>
    %cst_30 = arith.constant dense<0.000000e+00> : vector<176x20xf32>
    %85 = tpu.matmul %84, %20, %cst_30 {dimension_numbers = #tpu.dot_dimension_numbers<[1], [0], [0], [1], [0, 0, 1, 1], [], []>, precision = #tpu.contract_precision<fp32>} : vector<176x128xf32>, vector<128x20xf32>, vector<176x20xf32> -> vector<176x20xf32>
    %86 = vector.extract_strided_slice %85 {offsets = [0, 0], sizes = [88, 20], strides = [1, 1]} : vector<176x20xf32> to vector<88x20xf32>
    %cst_31 = arith.constant 2.500000e-01 : f32
    %87 = vector.broadcast %cst_31 : f32 to vector<88x20xf32>
    %88 = arith.mulf %86, %87 : vector<88x20xf32>
    %89 = vector.extract_strided_slice %85 {offsets = [88, 0], sizes = [88, 20], strides = [1, 1]} : vector<176x20xf32> to vector<88x20xf32>
    %cst_32 = arith.constant 2.500000e-01 : f32
    %90 = vector.broadcast %cst_32 : f32 to vector<88x20xf32>
    %91 = arith.mulf %89, %90 : vector<88x20xf32>
    %92 = arith.mulf %88, %88 : vector<88x20xf32>
    %93 = arith.subf %91, %92 : vector<88x20xf32>
    %cst_33 = arith.constant 0.000000e+00 : f32
    %94 = vector.broadcast %cst_33 : f32 to vector<88x20xf32>
    %95 = arith.maximumf %93, %94 : vector<88x20xf32>
    %c0_34 = arith.constant 0 : index
    %c0_35 = arith.constant 0 : index
    %96 = vector.load %arg7[%c0_34, %c0_35] : memref<88x20xf32, #tpu.memory_space<vmem>>, vector<88x20xf32>
    %cst_36 = arith.constant 9.99999974E-6 : f32
    %97 = vector.broadcast %cst_36 : f32 to vector<88x20xf32>
    %98 = arith.addf %95, %97 : vector<88x20xf32>
    %99 = math.rsqrt %98 : vector<88x20xf32>
    %100 = arith.mulf %96, %99 : vector<88x20xf32>
    %c0_37 = arith.constant 0 : index
    %c0_38 = arith.constant 0 : index
    %101 = vector.load %arg8[%c0_37, %c0_38] : memref<88x20xf32, #tpu.memory_space<vmem>>, vector<88x20xf32>
    %102 = arith.mulf %88, %100 : vector<88x20xf32>
    %103 = arith.subf %101, %102 : vector<88x20xf32>
    %104 = tpu.concatenate %100, %103 in 0 : vector<88x20xf32>, vector<88x20xf32> -> vector<176x20xf32>
    %cst_39 = arith.constant dense<0.000000e+00> : vector<176x128xf32>
    %105 = tpu.matmul %104, %41, %cst_39 {dimension_numbers = #tpu.dot_dimension_numbers<[1], [0], [0], [1], [0, 0, 1, 1], [], []>} : vector<176x20xf32>, vector<20x128xf32>, vector<176x128xf32> -> vector<176x128xf32>
    %106 = vector.extract_strided_slice %105 {offsets = [0, 0], sizes = [88, 128], strides = [1, 1]} : vector<176x128xf32> to vector<88x128xf32>
    %107 = arith.mulf %82, %106 : vector<88x128xf32>
    %108 = vector.extract_strided_slice %105 {offsets = [88, 0], sizes = [88, 128], strides = [1, 1]} : vector<176x128xf32> to vector<88x128xf32>
    %109 = arith.addf %107, %108 : vector<88x128xf32>
    %110 = math.tanh %109 : vector<88x128xf32>
    %c0_40 = arith.constant 0 : index
    %c0_41 = arith.constant 0 : index
    %111 = vector.load %arg0[%c0_40, %c0_41] : memref<88x128xf32, #tpu.memory_space<vmem>>, vector<88x128xf32>
    %112 = arith.addf %110, %111 : vector<88x128xf32>
    %c0_42 = arith.constant 0 : index
    %c0_43 = arith.constant 0 : index
    %113 = vector.load %arg9[%c0_42, %c0_43] : memref<88x128xf32, #tpu.memory_space<vmem>>, vector<88x128xf32>
    tpu.vector_store %arg9[%c0_42, %c0_43], %112 {strides = array<i32>} : memref<88x128xf32, #tpu.memory_space<vmem>>, vector<88x128xf32>,
    return
  }
}

</mosaic_0001>

<llo_original>
// kernel: gc_block_forward.1
$region0: #{gc_block_forward.1}
  #allocation0 [shape = 'u32[]', space=smem, size = 0x4, offset = 0x4, fixed_abs, tag = 'smem constant byte address 0x4 - core index']
  #allocation1 [shape = 'u32[144,128]{1,0:T(1,128)}', space=vmem, size = 0x12000, scoped, tag = 'internal scratch']
  %s0 = inlined_call_operand.vmem [shape: f32[88,128], index: 0, kind: input, shape index: {}]
  %s1 = inlined_call_operand.vmem [shape: bf16[88,88], index: 1, kind: input, shape index: {}]
  %s2 = inlined_call_operand.vmem [shape: bf16[128,128], index: 2, kind: input, shape index: {}]
  %s3 = inlined_call_operand.vmem [shape: f32[88,20], index: 3, kind: input, shape index: {}]
  %s4 = inlined_call_operand.vmem [shape: f32[88,20], index: 4, kind: input, shape index: {}]
  %s5 = inlined_call_operand.vmem [shape: bf16[88,88], index: 5, kind: input, shape index: {}]
  %s6 = inlined_call_operand.vmem [shape: bf16[128,128], index: 6, kind: input, shape index: {}]
  %s7 = inlined_call_operand.vmem [shape: f32[88,20], index: 7, kind: input, shape index: {}]
  %s8 = inlined_call_operand.vmem [shape: f32[88,20], index: 8, kind: input, shape index: {}]
  %s9 = inlined_call_operand.vmem [shape: f32[88,128], index: 9, kind: output, shape index: {}]
  %s10 = sld [smem:[#allocation0]]
  $region46: #{gc_block_forward.1} parent=0
    _
  %s12 = ssub.s32 1, %s10
  %s13 = scalar_select 0, %s12, %s10
  // Predicated region
  $region2: #{gc_block_forward.1} parent=0 // pred_check
    _
  $region3: #{gc_block_forward.1} parent=0 // pred_check_branch
    %15 = sbr.rel (0) target = $region5
  $region4: #{gc_block_forward.1} parent=0 // pred_region
    _
  $region5: #{gc_block_forward.1} parent=0 // pred_fallthru
    _
  // Predicated region
  $region6: #{gc_block_forward.1} parent=0 // pred_check
    _
  $region7: #{gc_block_forward.1} parent=0 // pred_check_branch
    %17 = sbr.rel (0) target = $region9
  $region8: #{gc_block_forward.1} parent=0 // pred_region
    _
  $region9: #{gc_block_forward.1} parent=0 // pred_fallthru
    _
  // Predicated region
  $region10: #{gc_block_forward.1} parent=0 // pred_check
    _
  $region11: #{gc_block_forward.1} parent=0 // pred_check_branch
    %19 = sbr.rel (0) target = $region13
  $region12: #{gc_block_forward.1} parent=0 // pred_region
    _
  $region13: #{gc_block_forward.1} parent=0 // pred_fallthru
    _
  // Predicated region
  $region14: #{gc_block_forward.1} parent=0 // pred_check
    _
  $region15: #{gc_block_forward.1} parent=0 // pred_check_branch
    %21 = sbr.rel (0) target = $region17
  $region16: #{gc_block_forward.1} parent=0 // pred_region
    _
  $region17: #{gc_block_forward.1} parent=0 // pred_fallthru
    _
  // Predicated region
  $region18: #{gc_block_forward.1} parent=0 // pred_check
    _
  $region19: #{gc_block_forward.1} parent=0 // pred_check_branch
    %23 = sbr.rel (0) target = $region21
  $region20: #{gc_block_forward.1} parent=0 // pred_region
    _
  $region21: #{gc_block_forward.1} parent=0 // pred_fallthru
    _
  // Predicated region
  $region22: #{gc_block_forward.1} parent=0 // pred_check
    _
  $region23: #{gc_block_forward.1} parent=0 // pred_check_branch
    %25 = sbr.rel (0) target = $region25
  $region24: #{gc_block_forward.1} parent=0 // pred_region
    _
  $region25: #{gc_block_forward.1} parent=0 // pred_fallthru
    _
  // Predicated region
  $region26: #{gc_block_forward.1} parent=0 // pred_check
    _
  $region27: #{gc_block_forward.1} parent=0 // pred_check_branch
    %27 = sbr.rel (0) target = $region29
  $region28: #{gc_block_forward.1} parent=0 // pred_region
    _
  $region29: #{gc_block_forward.1} parent=0 // pred_fallthru
    _
  // Predicated region
  $region30: #{gc_block_forward.1} parent=0 // pred_check
    _
  $region31: #{gc_block_forward.1} parent=0 // pred_check_branch
    %29 = sbr.rel (0) target = $region33
  $region32: #{gc_block_forward.1} parent=0 // pred_region
    _
  $region33: #{gc_block_forward.1} parent=0 // pred_fallthru
    _
  // Predicated region
  $region34: #{gc_block_forward.1} parent=0 // pred_check
    _
  $region35: #{gc_block_forward.1} parent=0 // pred_check_branch
    %31 = sbr.rel (0) target = $region37
  $region36: #{gc_block_forward.1} parent=0 // pred_region
    _
  $region37: #{gc_block_forward.1} parent=0 // pred_fallthru
    _
  %v33 = vlaneseq
  %v34 = vshrl.u32 %v33, 7
  %v35 = vadd.s32 %v34, 8
  %v36 = vadd.s32 %v34, 16
  %v37 = vadd.s32 %v34, 24
  %v38 = vadd.s32 %v34, 32
  %v39 = vadd.s32 %v34, 40
  %v40 = vadd.s32 %v34, 48
  %v41 = vadd.s32 %v34, 56
  %v42 = vadd.s32 %v34, 64
  %v43 = vadd.s32 %v34, 72
  %v44 = vadd.s32 %v34, 80
  %v45 = vadd.s32 %v34, 88
  %v46 = vadd.s32 %v34, 96
  %v47 = vadd.s32 %v34, 104
  %v48 = vadd.s32 %v34, 112
  %v49 = vadd.s32 %v34, 120
  %v50 = vlaneseq
  %v51 = vand.u32 %v50, 127
  %vm52 = vcmp.eq.s32.totalorder %v34, %v51
  %vm53 = vcmp.eq.s32.totalorder %v35, %v51
  %vm54 = vcmp.eq.s32.totalorder %v36, %v51
  %vm55 = vcmp.eq.s32.totalorder %v37, %v51
  %vm56 = vcmp.eq.s32.totalorder %v38, %v51
  %vm57 = vcmp.eq.s32.totalorder %v39, %v51
  %vm58 = vcmp.eq.s32.totalorder %v40, %v51
  %vm59 = vcmp.eq.s32.totalorder %v41, %v51
  %vm60 = vcmp.eq.s32.totalorder %v42, %v51
  %vm61 = vcmp.eq.s32.totalorder %v43, %v51
  %vm62 = vcmp.eq.s32.totalorder %v44, %v51
  %vm63 = vcmp.eq.s32.totalorder %v45, %v51
  %vm64 = vcmp.eq.s32.totalorder %v46, %v51
  %vm65 = vcmp.eq.s32.totalorder %v47, %v51
  %vm66 = vcmp.eq.s32.totalorder %v48, %v51
  %vm67 = vcmp.eq.s32.totalorder %v49, %v51
  %v68 = vadd.s32 %v51, 20
  %vm69 = vcmp.eq.s32.totalorder %v34, %v68
  %vm70 = vcmp.eq.s32.totalorder %v35, %v68
  %vm71 = vcmp.eq.s32.totalorder %v36, %v68
  %vm72 = vcmp.eq.s32.totalorder %v37, %v68
  %vm73 = vcmp.eq.s32.totalorder %v38, %v68
  %vm74 = vcmp.eq.s32.totalorder %v39, %v68
  %vm75 = vcmp.eq.s32.totalorder %v40, %v68
  %vm76 = vcmp.eq.s32.totalorder %v41, %v68
  %vm77 = vcmp.eq.s32.totalorder %v42, %v68
  %vm78 = vcmp.eq.s32.totalorder %v43, %v68
  %vm79 = vcmp.eq.s32.totalorder %v44, %v68
  %vm80 = vcmp.eq.s32.totalorder %v45, %v68
  %vm81 = vcmp.eq.s32.totalorder %v46, %v68
  %vm82 = vcmp.eq.s32.totalorder %v47, %v68
  %vm83 = vcmp.eq.s32.totalorder %v48, %v68
  %vm84 = vcmp.eq.s32.totalorder %v49, %v68
  %vm85 = vmor %vm52, %vm69
  %vm86 = vmor %vm53, %vm70
  %vm87 = vmor %vm54, %vm71
  %vm88 = vmor %vm55, %vm72
  %vm89 = vmor %vm56, %vm73
  %vm90 = vmor %vm57, %vm74
  %vm91 = vmor %vm58, %vm75
  %vm92 = vmor %vm59, %vm76
  %vm93 = vmor %vm60, %vm77
  %vm94 = vmor %vm61, %vm78
  %vm95 = vmor %vm62, %vm79
  %vm96 = vmor %vm63, %vm80
  %vm97 = vmor %vm64, %vm81
  %vm98 = vmor %vm65, %vm82
  %vm99 = vmor %vm66, %vm83
  %vm100 = vmor %vm67, %vm84
  %v101 = vadd.s32 %v51, 40
  %vm102 = vcmp.eq.s32.totalorder %v34, %v101
  %vm103 = vcmp.eq.s32.totalorder %v35, %v101
  %vm104 = vcmp.eq.s32.totalorder %v36, %v101
  %vm105 = vcmp.eq.s32.totalorder %v37, %v101
  %vm106 = vcmp.eq.s32.totalorder %v38, %v101
  %vm107 = vcmp.eq.s32.totalorder %v39, %v101
  %vm108 = vcmp.eq.s32.totalorder %v40, %v101
  %vm109 = vcmp.eq.s32.totalorder %v41, %v101
  %vm110 = vcmp.eq.s32.totalorder %v42, %v101
  %vm111 = vcmp.eq.s32.totalorder %v43, %v101
  %vm112 = vcmp.eq.s32.totalorder %v44, %v101
  %vm113 = vcmp.eq.s32.totalorder %v45, %v101
  %vm114 = vcmp.eq.s32.totalorder %v46, %v101
  %vm115 = vcmp.eq.s32.totalorder %v47, %v101
  %vm116 = vcmp.eq.s32.totalorder %v48, %v101
  %vm117 = vcmp.eq.s32.totalorder %v49, %v101
  %vm118 = vmor %vm85, %vm102
  %vm119 = vmor %vm86, %vm103
  %vm120 = vmor %vm87, %vm104
  %vm121 = vmor %vm88, %vm105
  %vm122 = vmor %vm89, %vm106
  %vm123 = vmor %vm90, %vm107
  %vm124 = vmor %vm91, %vm108
  %vm125 = vmor %vm92, %vm109
  %vm126 = vmor %vm93, %vm110
  %vm127 = vmor %vm94, %vm111
  %vm128 = vmor %vm95, %vm112
  %vm129 = vmor %vm96, %vm113
  %vm130 = vmor %vm97, %vm114
  %vm131 = vmor %vm98, %vm115
  %vm132 = vmor %vm99, %vm116
  %vm133 = vmor %vm100, %vm117
  %v134 = vadd.s32 %v51, 60
  %vm135 = vcmp.eq.s32.totalorder %v34, %v134
  %vm136 = vcmp.eq.s32.totalorder %v35, %v134
  %vm137 = vcmp.eq.s32.totalorder %v36, %v134
  %vm138 = vcmp.eq.s32.totalorder %v37, %v134
  %vm139 = vcmp.eq.s32.totalorder %v38, %v134
  %vm140 = vcmp.eq.s32.totalorder %v39, %v134
  %vm141 = vcmp.eq.s32.totalorder %v40, %v134
  %vm142 = vcmp.eq.s32.totalorder %v41, %v134
  %vm143 = vcmp.eq.s32.totalorder %v42, %v134
  %vm144 = vcmp.eq.s32.totalorder %v43, %v134
  %vm145 = vcmp.eq.s32.totalorder %v44, %v134
  %vm146 = vcmp.eq.s32.totalorder %v45, %v134
  %vm147 = vcmp.eq.s32.totalorder %v46, %v134
  %vm148 = vcmp.eq.s32.totalorder %v47, %v134
  %vm149 = vcmp.eq.s32.totalorder %v48, %v134
  %vm150 = vcmp.eq.s32.totalorder %v49, %v134
  %vm151 = vmor %vm118, %vm135
  %vm152 = vmor %vm119, %vm136
  %vm153 = vmor %vm120, %vm137
  %vm154 = vmor %vm121, %vm138
  %vm155 = vmor %vm122, %vm139
  %vm156 = vmor %vm123, %vm140
  %vm157 = vmor %vm124, %vm141
  %vm158 = vmor %vm125, %vm142
  %vm159 = vmor %vm126, %vm143
  %vm160 = vmor %vm127, %vm144
  %vm161 = vmor %vm128, %vm145
  %vm162 = vmor %vm129, %vm146
  %vm163 = vmor %vm130, %vm147
  %vm164 = vmor %vm131, %vm148
  %vm165 = vmor %vm132, %vm149
  %vm166 = vmor %vm133, %vm150
  %vm167 = vcmp.lt.s32.totalorder %v34, 80
  %vm168 = vcmp.lt.s32.totalorder %v35, 80
  %vm169 = vcmp.lt.s32.totalorder %v36, 80
  %vm170 = vcmp.lt.s32.totalorder %v37, 80
  %vm171 = vcmp.lt.s32.totalorder %v38, 80
  %vm172 = vcmp.lt.s32.totalorder %v39, 80
  %vm173 = vcmp.lt.s32.totalorder %v40, 80
  %vm174 = vcmp.lt.s32.totalorder %v41, 80
  %vm175 = vcmp.lt.s32.totalorder %v42, 80
  %vm176 = vcmp.lt.s32.totalorder %v43, 80
  %vm177 = vcmp.lt.s32.totalorder %v44, 80
  %vm178 = vcmp.lt.s32.totalorder %v45, 80
  %vm179 = vcmp.lt.s32.totalorder %v46, 80
  %vm180 = vcmp.lt.s32.totalorder %v47, 80
  %vm181 = vcmp.lt.s32.totalorder %v48, 80
  %vm182 = vcmp.lt.s32.totalorder %v49, 80
  %vm183 = vmand %vm151, %vm167
  %vm184 = vmand %vm152, %vm168
  %vm185 = vmand %vm153, %vm169
  %vm186 = vmand %vm154, %vm170
  %vm187 = vmand %vm155, %vm171
  %vm188 = vmand %vm156, %vm172
  %vm189 = vmand %vm157, %vm173
  %vm190 = vmand %vm158, %vm174
  %vm191 = vmand %vm159, %vm175
  %vm192 = vmand %vm160, %vm176
  %vm193 = vmand %vm161, %vm177
  %vm194 = vmand %vm162, %vm178
  %vm195 = vmand %vm163, %vm179
  %vm196 = vmand %vm164, %vm180
  %vm197 = vmand %vm165, %vm181
  %vm198 = vmand %vm166, %vm182
  %v199 = vsel %vm183, 1.0, 0.0
  %v200 = vsel %vm184, 1.0, 0.0
  %v201 = vsel %vm185, 1.0, 0.0
  %v202 = vsel %vm186, 1.0, 0.0
  %v203 = vsel %vm187, 1.0, 0.0
  %v204 = vsel %vm188, 1.0, 0.0
  %v205 = vsel %vm189, 1.0, 0.0
  %v206 = vsel %vm190, 1.0, 0.0
  %v207 = vsel %vm191, 1.0, 0.0
  %v208 = vsel %vm192, 1.0, 0.0
  %v209 = vsel %vm193, 1.0, 0.0
  %v210 = vsel %vm194, 1.0, 0.0
  %v211 = vsel %vm195, 1.0, 0.0
  %v212 = vsel %vm196, 1.0, 0.0
  %v213 = vsel %vm197, 1.0, 0.0
  %v214 = vsel %vm198, 1.0, 0.0
  %vm215 = vcmp.eq.s32.totalorder %v51, %v34
  %vm216 = vcmp.eq.s32.totalorder %v51, %v35
  %vm217 = vcmp.eq.s32.totalorder %v51, %v36
  %v218 = vadd.s32 %v34, 20
  %v219 = vadd.s32 %v35, 20
  %v220 = vadd.s32 %v36, 20
  %vm221 = vcmp.eq.s32.totalorder %v51, %v218
  %vm222 = vcmp.eq.s32.totalorder %v51, %v219
  %vm223 = vcmp.eq.s32.totalorder %v51, %v220
  %vm224 = vmor %vm215, %vm221
  %vm225 = vmor %vm216, %vm222
  %vm226 = vmor %vm217, %vm223
  %v227 = vadd.s32 %v35, 40
  %v228 = vadd.s32 %v36, 40
  %vm229 = vcmp.eq.s32.totalorder %v51, %v39
  %vm230 = vcmp.eq.s32.totalorder %v51, %v227
  %vm231 = vcmp.eq.s32.totalorder %v51, %v228
  %vm232 = vmor %vm224, %vm229
  %vm233 = vmor %vm225, %vm230
  %vm234 = vmor %vm226, %vm231
  %v235 = vadd.s32 %v34, 60
  %v236 = vadd.s32 %v35, 60
  %v237 = vadd.s32 %v36, 60
  %vm238 = vcmp.eq.s32.totalorder %v51, %v235
  %vm239 = vcmp.eq.s32.totalorder %v51, %v236
  %vm240 = vcmp.eq.s32.totalorder %v51, %v237
  %vm241 = vmor %vm232, %vm238
  %vm242 = vmor %vm233, %vm239
  %vm243 = vmor %vm234, %vm240
  %vm244 = vcmp.lt.s32.totalorder %v51, 80
  %vm245 = vmand %vm241, %vm244
  %vm246 = vmand %vm242, %vm244
  %vm247 = vmand %vm243, %vm244
  %v248 = vsel %vm245, 1.0, 0.0
  %v249 = vsel %vm246, 1.0, 0.0
  %v250 = vsel %vm247, 1.0, 0.0
  %v251 = vld [vmem:[%s0] sm:$0xff]
  %v252 = vld [vmem:[%s0 + $0x8] sm:$0xff]
  %v253 = vld [vmem:[%s0 + $0x10] sm:$0xff]
  %v254 = vld [vmem:[%s0 + $0x18] sm:$0xff]
  %v255 = vld [vmem:[%s0 + $0x20] sm:$0xff]
  %v256 = vld [vmem:[%s0 + $0x28] sm:$0xff]
  %v257 = vld [vmem:[%s0 + $0x30] sm:$0xff]
  %v258 = vld [vmem:[%s0 + $0x38] sm:$0xff]
  %v259 = vld [vmem:[%s0 + $0x40] sm:$0xff]
  %v260 = vld [vmem:[%s0 + $0x48] sm:$0xff]
  %v261 = vld [vmem:[%s0 + $0x50] sm:$0xff]
  %v262 = vpack.c.bf16 %v252, %v251
  %v263 = vpack.c.bf16 %v254, %v253
  %v264 = vpack.c.bf16 %v256, %v255
  %v265 = vpack.c.bf16 %v258, %v257
  %v266 = vpack.c.bf16 %v260, %v259
  %v267 = vpack.c.bf16 %v261, %v261
  %v268 = vld [vmem:[%s2] sm:$0xf]
  %v269 = vld [vmem:[%s2 + $0x4] sm:$0xf]
  %v270 = vld [vmem:[%s2 + $0x8] sm:$0xf]
  %v271 = vld [vmem:[%s2 + $0xc] sm:$0xf]
  %v272 = vld [vmem:[%s2 + $0x10] sm:$0xf]
  %v273 = vld [vmem:[%s2 + $0x14] sm:$0xf]
  %v274 = vld [vmem:[%s2 + $0x18] sm:$0xf]
  %v275 = vld [vmem:[%s2 + $0x1c] sm:$0xf]
  %v276 = vld [vmem:[%s2 + $0x20] sm:$0xf]
  %v277 = vld [vmem:[%s2 + $0x24] sm:$0xf]
  %v278 = vld [vmem:[%s2 + $0x28] sm:$0xf]
  %v279 = vld [vmem:[%s2 + $0x2c] sm:$0xf]
  %v280 = vld [vmem:[%s2 + $0x30] sm:$0xf]
  %v281 = vld [vmem:[%s2 + $0x34] sm:$0xf]
  %v282 = vld [vmem:[%s2 + $0x38] sm:$0xf]
  %v283 = vld [vmem:[%s2 + $0x3c] sm:$0xf]
  %v300 = vunpack.c.l.b16 %v268
  %v301 = vunpack.c.l.b16 %v269
  %v302 = vunpack.c.l.b16 %v270
  %v303 = vunpack.c.l.b16 %v271
  %v304 = vunpack.c.l.b16 %v272
  %v305 = vunpack.c.l.b16 %v273
  %v306 = vunpack.c.l.b16 %v274
  %v307 = vunpack.c.l.b16 %v275
  %v308 = vunpack.c.l.b16 %v276
  %v309 = vunpack.c.l.b16 %v277
  %v310 = vunpack.c.l.b16 %v278
  %v311 = vunpack.c.l.b16 %v279
  %v312 = vunpack.c.l.b16 %v280
  %v313 = vunpack.c.l.b16 %v281
  %v314 = vunpack.c.l.b16 %v282
  %v315 = vunpack.c.l.b16 %v283
  %v316 = vpack.c.b16 %v301, %v300
  %v317 = vpack.c.b16 %v303, %v302
  %v318 = vpack.c.b16 %v305, %v304
  %v319 = vpack.c.b16 %v307, %v306
  %v320 = vpack.c.b16 %v309, %v308
  %v321 = vpack.c.b16 %v311, %v310
  %v322 = vpack.c.b16 %v313, %v312
  %v323 = vpack.c.b16 %v315, %v314
  %332 = vmatprep.subr.bf16.mxu0 0
  %333 = vmatpush1.bf16.msra.mxu0 %v316
  %334 = vmatprep.subr.bf16.mxu0 0
  %335 = vmatpush1.bf16.msra.mxu0 %v317
  %336 = vmatprep.subr.bf16.mxu0 0
  %337 = vmatpush1.bf16.msra.mxu0 %v318
  %338 = vmatprep.subr.bf16.mxu0 0
  %339 = vmatpush1.bf16.msra.mxu0 %v319
  %340 = vmatprep.subr.bf16.mxu0 0
  %341 = vmatpush1.bf16.msra.mxu0 %v320
  %342 = vmatprep.subr.bf16.mxu0 0
  %343 = vmatpush1.bf16.msra.mxu0 %v321
  %344 = vmatprep.subr.bf16.mxu0 0
  %345 = vmatpush1.bf16.msra.mxu0 %v322
  %346 = vmatprep.subr.bf16.mxu0 0
  %347 = vmatpush1.bf16.msra.mxu0 %v323
  %348 = vmatprep.subr.bf16.mxu0 0
  %349 = vmatpush1.bf16.msra.mxu0 0
  %350 = vmatprep.subr.bf16.mxu0 0
  %351 = vmatpush1.bf16.msra.mxu0 0
  %352 = vmatprep.subr.bf16.mxu0 0
  %353 = vmatpush1.bf16.msra.mxu0 0
  %354 = vmatprep.subr.bf16.mxu0 0
  %355 = vmatpush1.bf16.msra.mxu0 0
  %356 = vmatprep.subr.bf16.mxu0 0
  %357 = vmatpush1.bf16.msra.mxu0 0
  %358 = vmatprep.subr.bf16.mxu0 0
  %359 = vmatpush1.bf16.msra.mxu0 0
  %360 = vmatprep.subr.bf16.mxu0 0
  %361 = vmatpush1.bf16.msra.mxu0 0
  %362 = vmatprep.subr.bf16.mxu0 0
  %363 = vmatpush1.bf16.msra.mxu0 0
  %364 = vmatprep.mubr.bf16.mxu0 0
  %365 = vmatmul.mubr.bf16.gmra.mrb[0].mxu0 %v262
  %v366 = vpop.f32.mrb[0].mxu0
  %v367 = vadd.f32 0.0, %v366
  %v368 = vpop.f32.mrb[0].mxu0
  %v369 = vpop.f32.mrb[0].mxu0
  %v370 = vadd.f32 0.0, %v369
  %v371 = vpop.f32.mrb[0].mxu0
  %372 = vmatprep.mubr.bf16.mxu0 0
  %373 = vmatmul.mubr.bf16.gmra.mrb[0].mxu0 %v263
  %v374 = vpop.f32.mrb[0].mxu0
  %v375 = vadd.f32 0.0, %v374
  %v376 = vpop.f32.mrb[0].mxu0
  %v377 = vpop.f32.mrb[0].mxu0
  %v378 = vadd.f32 0.0, %v377
  %v379 = vpop.f32.mrb[0].mxu0
  %380 = vmatprep.mubr.bf16.mxu0 0
  %381 = vmatmul.mubr.bf16.gmra.mrb[0].mxu0 %v264
  %v382 = vpop.f32.mrb[0].mxu0
  %v383 = vadd.f32 0.0, %v382
  %v384 = vpop.f32.mrb[0].mxu0
  %v385 = vpop.f32.mrb[0].mxu0
  %v386 = vadd.f32 0.0, %v385
  %v387 = vpop.f32.mrb[0].mxu0
  %388 = vmatprep.mubr.bf16.mxu0 0
  %389 = vmatmul.mubr.bf16.gmra.mrb[0].mxu0 %v265
  %v390 = vpop.f32.mrb[0].mxu0
  %v391 = vadd.f32 0.0, %v390
  %v392 = vpop.f32.mrb[0].mxu0
  %v393 = vpop.f32.mrb[0].mxu0
  %v394 = vadd.f32 0.0, %v393
  %v395 = vpop.f32.mrb[0].mxu0
  %396 = vmatprep.mubr.bf16.mxu0 0
  %397 = vmatmul.mubr.bf16.gmra.mrb[0].mxu0 %v266
  %v398 = vpop.f32.mrb[0].mxu0
  %v399 = vadd.f32 0.0, %v398
  %v400 = vpop.f32.mrb[0].mxu0
  %v401 = vpop.f32.mrb[0].mxu0
  %v402 = vadd.f32 0.0, %v401
  %v403 = vpop.f32.mrb[0].mxu0
  %404 = vmatprep.mubr.bf16.mxu0 0
  %405 = vmatmul.mubr.bf16.gmra.mrb[0].mxu0 %v267
  %v406 = vpop.f32.mrb[0].mxu0
  %v407 = vadd.f32 0.0, %v406
  %v408 = vpop.f32.mrb[0].mxu0
  %v409 = vpop.f32.mrb[0].mxu0
  %v410 = vpop.f32.mrb[0].mxu0
  %411 = vdwg.mxu0
  %v412 = vld [vmem:[%s1] sm:$0xf]
  %v413 = vld [vmem:[%s1 + $0x4] sm:$0xf]
  %v414 = vld [vmem:[%s1 + $0x8] sm:$0xf]
  %v415 = vld [vmem:[%s1 + $0xc] sm:$0xf]
  %v416 = vld [vmem:[%s1 + $0x10] sm:$0xf]
  %v417 = vld [vmem:[%s1 + $0x14] sm:$0xf]
  %v418 = vld [vmem:[%s1 + $0x18] sm:$0xf]
  %v419 = vld [vmem:[%s1 + $0x1c] sm:$0xf]
  %v420 = vld [vmem:[%s1 + $0x20] sm:$0xf]
  %v421 = vld [vmem:[%s1 + $0x24] sm:$0xf]
  %v422 = vld [vmem:[%s1 + $0x28] sm:$0xf]
  %v423 = vpack.c.bf16 %v370, %v367
  %v424 = vpack.c.bf16 %v378, %v375
  %v425 = vpack.c.bf16 %v386, %v383
  %v426 = vpack.c.bf16 %v394, %v391
  %v427 = vpack.c.bf16 %v402, %v399
  %v428 = vpack.c.bf16 %v407, %v407
  %v440 = vunpack.c.l.b16 %v412
  %v441 = vunpack.c.l.b16 %v413
  %v442 = vunpack.c.l.b16 %v414
  %v443 = vunpack.c.l.b16 %v415
  %v444 = vunpack.c.l.b16 %v416
  %v445 = vunpack.c.l.b16 %v417
  %v446 = vunpack.c.l.b16 %v418
  %v447 = vunpack.c.l.b16 %v419
  %v448 = vunpack.c.l.b16 %v420
  %v449 = vunpack.c.l.b16 %v421
  %v450 = vunpack.c.l.b16 %v422
  %v451 = vpack.c.b16 %v441, %v440
  %v452 = vpack.c.b16 %v443, %v442
  %v453 = vpack.c.b16 %v445, %v444
  %v454 = vpack.c.b16 %v447, %v446
  %v455 = vpack.c.b16 %v449, %v448
  %v456 = vpack.c.b16 %v450, %v450
  %vm457 = vcmask 719872
  %v459 = vsel %vm457, %v451, 0
  %v462 = vsel %vm457, %v452, 0
  %v465 = vsel %vm457, %v453, 0
  %v468 = vsel %vm457, %v454, 0
  %v471 = vsel %vm457, %v455, 0
  %v474 = vsel %vm457, %v456, 0
  %vm476 = vcmask 1043456
  %v478 = vsel %vm476, %v428, 0
  %480 = vmatprep.subr.bf16.mxu0 0
  %481 = vmatpush1.bf16.msra.mxu0 %v423
  %482 = vmatprep.subr.bf16.mxu0 0
  %483 = vmatpush1.bf16.msra.mxu0 %v424
  %484 = vmatprep.subr.bf16.mxu0 0
  %485 = vmatpush1.bf16.msra.mxu0 %v425
  %486 = vmatprep.subr.bf16.mxu0 0
  %487 = vmatpush1.bf16.msra.mxu0 %v426
  %488 = vmatprep.subr.bf16.mxu0 0
  %489 = vmatpush1.bf16.msra.mxu0 %v427
  %490 = vmatprep.subr.bf16.mxu0 0
  %491 = vmatpush1.bf16.msra.mxu0 %v478
  %492 = vmatprep.subr.bf16.mxu0 0
  %493 = vmatpush1.bf16.msra.mxu0 0
  %494 = vmatprep.subr.bf16.mxu0 0
  %495 = vmatpush1.bf16.msra.mxu0 0
  %496 = vmatprep.subr.bf16.mxu0 0
  %497 = vmatpush1.bf16.msra.mxu0 0
  %498 = vmatprep.subr.bf16.mxu0 0
  %499 = vmatpush1.bf16.msra.mxu0 0
  %500 = vmatprep.subr.bf16.mxu0 0
  %501 = vmatpush1.bf16.msra.mxu0 0
  %502 = vmatprep.subr.bf16.mxu0 0
  %503 = vmatpush1.bf16.msra.mxu0 0
  %504 = vmatprep.subr.bf16.mxu0 0
  %505 = vmatpush1.bf16.msra.mxu0 0
  %506 = vmatprep.subr.bf16.mxu0 0
  %507 = vmatpush1.bf16.msra.mxu0 0
  %508 = vmatprep.subr.bf16.mxu0 0
  %509 = vmatpush1.bf16.msra.mxu0 0
  %510 = vmatprep.subr.bf16.mxu0 0
  %511 = vmatpush1.bf16.msra.mxu0 0
  %512 = vmatprep.mubr.bf16.mxu0 0
  %513 = vmatmul.mubr.bf16.gmra.mrb[0].mxu0 %v459
  %v514 = vpop.f32.mrb[0].mxu0
  %v515 = vadd.f32 0.0, %v514
  %v516 = vpop.f32.mrb[0].mxu0
  %v517 = vpop.f32.mrb[0].mxu0
  %v518 = vadd.f32 0.0, %v517
  %v519 = vpop.f32.mrb[0].mxu0
  %520 = vmatprep.mubr.bf16.mxu0 0
  %521 = vmatmul.mubr.bf16.gmra.mrb[0].mxu0 %v462
  %v522 = vpop.f32.mrb[0].mxu0
  %v523 = vadd.f32 0.0, %v522
  %v524 = vpop.f32.mrb[0].mxu0
  %v525 = vpop.f32.mrb[0].mxu0
  %v526 = vadd.f32 0.0, %v525
  %v527 = vpop.f32.mrb[0].mxu0
  %528 = vmatprep.mubr.bf16.mxu0 0
  %529 = vmatmul.mubr.bf16.gmra.mrb[0].mxu0 %v465
  %v530 = vpop.f32.mrb[0].mxu0
  %v531 = vadd.f32 0.0, %v530
  %v532 = vpop.f32.mrb[0].mxu0
  %v533 = vpop.f32.mrb[0].mxu0
  %v534 = vadd.f32 0.0, %v533
  %v535 = vpop.f32.mrb[0].mxu0
  %536 = vmatprep.mubr.bf16.mxu0 0
  %537 = vmatmul.mubr.bf16.gmra.mrb[0].mxu0 %v468
  %v538 = vpop.f32.mrb[0].mxu0
  %v539 = vadd.f32 0.0, %v538
  %v540 = vpop.f32.mrb[0].mxu0
  %v541 = vpop.f32.mrb[0].mxu0
  %v542 = vadd.f32 0.0, %v541
  %v543 = vpop.f32.mrb[0].mxu0
  %544 = vmatprep.mubr.bf16.mxu0 0
  %545 = vmatmul.mubr.bf16.gmra.mrb[0].mxu0 %v471
  %v546 = vpop.f32.mrb[0].mxu0
  %v547 = vadd.f32 0.0, %v546
  %v548 = vpop.f32.mrb[0].mxu0
  %v549 = vpop.f32.mrb[0].mxu0
  %v550 = vadd.f32 0.0, %v549
  %v551 = vpop.f32.mrb[0].mxu0
  %552 = vmatprep.mubr.bf16.mxu0 0
  %553 = vmatmul.mubr.bf16.gmra.mrb[0].mxu0 %v474
  %v554 = vpop.f32.mrb[0].mxu0
  %v555 = vadd.f32 0.0, %v554
  %v556 = vpop.f32.mrb[0].mxu0
  %v557 = vpop.f32.mrb[0].mxu0
  %v558 = vpop.f32.mrb[0].mxu0
  %559 = vdwg.mxu0
  %v560 = vmul.f32 %v515, %v515
  %v561 = vmul.f32 %v518, %v518
  %v562 = vmul.f32 %v523, %v523
  %v563 = vmul.f32 %v526, %v526
  %v564 = vmul.f32 %v531, %v531
  %v565 = vmul.f32 %v534, %v534
  %v566 = vmul.f32 %v539, %v539
  %v567 = vmul.f32 %v542, %v542
  %v568 = vmul.f32 %v547, %v547
  %v569 = vmul.f32 %v550, %v550
  %v570 = vmul.f32 %v555, %v555
  %571 = vmatprep.subr.mxu0 0.0
  %572 = vmatpush1.msra.mxu0 %v199
  %573 = vmatprep.subr.mxu0 0.0
  %574 = vmatpush1.msra.mxu0 %v200
  %575 = vmatprep.subr.mxu0 0.0
  %576 = vmatpush1.msra.mxu0 %v201
  %577 = vmatprep.subr.mxu0 0.0
  %578 = vmatpush1.msra.mxu0 %v202
  %579 = vmatprep.subr.mxu0 0.0
  %580 = vmatpush1.msra.mxu0 %v203
  %581 = vmatprep.subr.mxu0 0.0
  %582 = vmatpush1.msra.mxu0 %v204
  %583 = vmatprep.subr.mxu0 0.0
  %584 = vmatpush1.msra.mxu0 %v205
  %585 = vmatprep.subr.mxu0 0.0
  %586 = vmatpush1.msra.mxu0 %v206
  %587 = vmatprep.subr.mxu0 0.0
  %588 = vmatpush1.msra.mxu0 %v207
  %589 = vmatprep.subr.mxu0 0.0
  %590 = vmatpush1.msra.mxu0 %v208
  %591 = vmatprep.subr.mxu0 0.0
  %592 = vmatpush1.msra.mxu0 %v209
  %593 = vmatprep.subr.mxu0 0.0
  %594 = vmatpush1.msra.mxu0 %v210
  %595 = vmatprep.subr.mxu0 0.0
  %596 = vmatpush1.msra.mxu0 %v211
  %597 = vmatprep.subr.mxu0 0.0
  %598 = vmatpush1.msra.mxu0 %v212
  %599 = vmatprep.subr.mxu0 0.0
  %600 = vmatpush1.msra.mxu0 %v213
  %601 = vmatprep.subr.mxu0 0.0
  %602 = vmatpush1.msra.mxu0 %v214
  %603 = vmatprep.subr.mxu0 0.0
  %604 = vmatpush1.msra.mxu0 0.0
  %605 = vmatprep.subr.mxu0 0.0
  %606 = vmatpush1.msra.mxu0 0.0
  %607 = vmatprep.subr.mxu0 0.0
  %608 = vmatpush1.msra.mxu0 0.0
  %609 = vmatprep.subr.mxu0 0.0
  %610 = vmatpush1.msra.mxu0 0.0
  %611 = vmatprep.subr.mxu0 0.0
  %612 = vmatpush1.msra.mxu0 0.0
  %613 = vmatprep.subr.mxu0 0.0
  %614 = vmatpush1.msra.mxu0 0.0
  %615 = vmatprep.subr.mxu0 0.0
  %616 = vmatpush1.msra.mxu0 0.0
  %617 = vmatprep.subr.mxu0 0.0
  %618 = vmatpush1.msra.mxu0 0.0
  %619 = vmatprep.subr.mxu0 0.0
  %620 = vmatpush1.msra.mxu0 0.0
  %621 = vmatprep.subr.mxu0 0.0
  %622 = vmatpush1.msra.mxu0 0.0
  %623 = vmatprep.subr.mxu0 0.0
  %624 = vmatpush1.msra.mxu0 0.0
  %625 = vmatprep.subr.mxu0 0.0
  %626 = vmatpush1.msra.mxu0 0.0
  %627 = vmatprep.subr.mxu0 0.0
  %628 = vmatpush1.msra.mxu0 0.0
  %629 = vmatprep.subr.mxu0 0.0
  %630 = vmatpush1.msra.mxu0 0.0
  %631 = vmatprep.subr.mxu0 0.0
  %632 = vmatpush1.msra.mxu0 0.0
  %633 = vmatprep.subr.mxu0 0.0
  %634 = vmatpush1.msra.mxu0 0.0
  %635 = vmatprep.mubr.f32.mxu0 0.0
  %v636 = vand.u32 %v515, 4294901760
  %v637 = vsub.f32 %v515, %v636
  %v638 = vand.u32 %v637, 4294901760
  %v639 = vsub.f32 %v637, %v638
  %v640 = vand.u32 %v639, 4294901760
  %641 = vmatmul.mubr.f32.gmra.mrb[0].mxu0 %v640
  %v642 = vpop.f32.mrb[0].mxu0
  %v643 = vadd.f32 0.0, %v642
  %v644 = vpop.f32.mrb[0].mxu0
  %645 = vmatprep.mubr.f32.mxu0 0.0
  %v646 = vand.u32 %v518, 4294901760
  %v647 = vsub.f32 %v518, %v646
  %v648 = vand.u32 %v647, 4294901760
  %v649 = vsub.f32 %v647, %v648
  %v650 = vand.u32 %v649, 4294901760
  %651 = vmatmul.mubr.f32.gmra.mrb[0].mxu0 %v650
  %v652 = vpop.f32.mrb[0].mxu0
  %v653 = vadd.f32 0.0, %v652
  %v654 = vpop.f32.mrb[0].mxu0
  %655 = vmatprep.mubr.f32.mxu0 0.0
  %v656 = vand.u32 %v523, 4294901760
  %v657 = vsub.f32 %v523, %v656
  %v658 = vand.u32 %v657, 4294901760
  %v659 = vsub.f32 %v657, %v658
  %v660 = vand.u32 %v659, 4294901760
  %661 = vmatmul.mubr.f32.gmra.mrb[0].mxu0 %v660
  %v662 = vpop.f32.mrb[0].mxu0
  %v663 = vadd.f32 0.0, %v662
  %v664 = vpop.f32.mrb[0].mxu0
  %665 = vmatprep.mubr.f32.mxu0 0.0
  %v666 = vand.u32 %v526, 4294901760
  %v667 = vsub.f32 %v526, %v666
  %v668 = vand.u32 %v667, 4294901760
  %v669 = vsub.f32 %v667, %v668
  %v670 = vand.u32 %v669, 4294901760
  %671 = vmatmul.mubr.f32.gmra.mrb[0].mxu0 %v670
  %v672 = vpop.f32.mrb[0].mxu0
  %v673 = vadd.f32 0.0, %v672
  %v674 = vpop.f32.mrb[0].mxu0
  %675 = vmatprep.mubr.f32.mxu0 0.0
  %v676 = vand.u32 %v531, 4294901760
  %v677 = vsub.f32 %v531, %v676
  %v678 = vand.u32 %v677, 4294901760
  %v679 = vsub.f32 %v677, %v678
  %v680 = vand.u32 %v679, 4294901760
  %681 = vmatmul.mubr.f32.gmra.mrb[0].mxu0 %v680
  %v682 = vpop.f32.mrb[0].mxu0
  %v683 = vadd.f32 0.0, %v682
  %v684 = vpop.f32.mrb[0].mxu0
  %685 = vmatprep.mubr.f32.mxu0 0.0
  %v686 = vand.u32 %v534, 4294901760
  %v687 = vsub.f32 %v534, %v686
  %v688 = vand.u32 %v687, 4294901760
  %v689 = vsub.f32 %v687, %v688
  %v690 = vand.u32 %v689, 4294901760
  %691 = vmatmul.mubr.f32.gmra.mrb[0].mxu0 %v690
  %v692 = vpop.f32.mrb[0].mxu0
  %v693 = vadd.f32 0.0, %v692
  %v694 = vpop.f32.mrb[0].mxu0
  %695 = vmatprep.mubr.f32.mxu0 0.0
  %v696 = vand.u32 %v539, 4294901760
  %v697 = vsub.f32 %v539, %v696
  %v698 = vand.u32 %v697, 4294901760
  %v699 = vsub.f32 %v697, %v698
  %v700 = vand.u32 %v699, 4294901760
  %701 = vmatmul.mubr.f32.gmra.mrb[0].mxu0 %v700
  %v702 = vpop.f32.mrb[0].mxu0
  %v703 = vadd.f32 0.0, %v702
  %v704 = vpop.f32.mrb[0].mxu0
  %705 = vmatprep.mubr.f32.mxu0 0.0
  %v706 = vand.u32 %v542, 4294901760
  %v707 = vsub.f32 %v542, %v706
  %v708 = vand.u32 %v707, 4294901760
  %v709 = vsub.f32 %v707, %v708
  %v710 = vand.u32 %v709, 4294901760
  %711 = vmatmul.mubr.f32.gmra.mrb[0].mxu0 %v710
  %v712 = vpop.f32.mrb[0].mxu0
  %v713 = vadd.f32 0.0, %v712
  %v714 = vpop.f32.mrb[0].mxu0
  %715 = vmatprep.mubr.f32.mxu0 0.0
  %v716 = vand.u32 %v547, 4294901760
  %v717 = vsub.f32 %v547, %v716
  %v718 = vand.u32 %v717, 4294901760
  %v719 = vsub.f32 %v717, %v718
  %v720 = vand.u32 %v719, 4294901760
  %721 = vmatmul.mubr.f32.gmra.mrb[0].mxu0 %v720
  %v722 = vpop.f32.mrb[0].mxu0
  %v723 = vadd.f32 0.0, %v722
  %v724 = vpop.f32.mrb[0].mxu0
  %725 = vmatprep.mubr.f32.mxu0 0.0
  %v726 = vand.u32 %v550, 4294901760
  %v727 = vsub.f32 %v550, %v726
  %v728 = vand.u32 %v727, 4294901760
  %v729 = vsub.f32 %v727, %v728
  %v730 = vand.u32 %v729, 4294901760
  %731 = vmatmul.mubr.f32.gmra.mrb[0].mxu0 %v730
  %v732 = vpop.f32.mrb[0].mxu0
  %v733 = vadd.f32 0.0, %v732
  %v734 = vpop.f32.mrb[0].mxu0
  %735 = vmatprep.mubr.f32.mxu0 0.0
  %v736 = vand.u32 %v555, 4294901760
  %v737 = vsub.f32 %v555, %v736
  %v738 = vand.u32 %v737, 4294901760
  %v739 = vsub.f32 %v737, %v738
  %v740 = vand.u32 %v739, 4294901760
  %741 = vmatmul.mubr.f32.gmra.mrb[0].mxu0 %v740
  %v742 = vpop.f32.mrb[0].mxu0
  %v743 = vadd.f32 0.0, %v742
  %v744 = vpop.f32.mrb[0].mxu0
  %745 = vmatprep.mubr.f32.mxu0 0.0
  %v746 = vand.u32 %v560, 4294901760
  %v747 = vsub.f32 %v560, %v746
  %v748 = vand.u32 %v747, 4294901760
  %v749 = vsub.f32 %v747, %v748
  %v750 = vand.u32 %v749, 4294901760
  %751 = vmatmul.mubr.f32.gmra.mrb[0].mxu0 %v750
  %v752 = vpop.f32.mrb[0].mxu0
  %v753 = vadd.f32 0.0, %v752
  %v754 = vpop.f32.mrb[0].mxu0
  %755 = vmatprep.mubr.f32.mxu0 0.0
  %v756 = vand.u32 %v561, 4294901760
  %v757 = vsub.f32 %v561, %v756
  %v758 = vand.u32 %v757, 4294901760
  %v759 = vsub.f32 %v757, %v758
  %v760 = vand.u32 %v759, 4294901760
  %761 = vmatmul.mubr.f32.gmra.mrb[0].mxu0 %v760
  %v762 = vpop.f32.mrb[0].mxu0
  %v763 = vadd.f32 0.0, %v762
  %v764 = vpop.f32.mrb[0].mxu0
  %765 = vmatprep.mubr.f32.mxu0 0.0
  %v766 = vand.u32 %v562, 4294901760
  %v767 = vsub.f32 %v562, %v766
  %v768 = vand.u32 %v767, 4294901760
  %v769 = vsub.f32 %v767, %v768
  %v770 = vand.u32 %v769, 4294901760
  %771 = vmatmul.mubr.f32.gmra.mrb[0].mxu0 %v770
  %v772 = vpop.f32.mrb[0].mxu0
  %v773 = vadd.f32 0.0, %v772
  %v774 = vpop.f32.mrb[0].mxu0
  %775 = vmatprep.mubr.f32.mxu0 0.0
  %v776 = vand.u32 %v563, 4294901760
  %v777 = vsub.f32 %v563, %v776
  %v778 = vand.u32 %v777, 4294901760
  %v779 = vsub.f32 %v777, %v778
  %v780 = vand.u32 %v779, 4294901760
  %781 = vmatmul.mubr.f32.gmra.mrb[0].mxu0 %v780
  %v782 = vpop.f32.mrb[0].mxu0
  %v783 = vadd.f32 0.0, %v782
  %v784 = vpop.f32.mrb[0].mxu0
  %785 = vmatprep.mubr.f32.mxu0 0.0
  %v786 = vand.u32 %v564, 4294901760
  %v787 = vsub.f32 %v564, %v786
  %v788 = vand.u32 %v787, 4294901760
  %v789 = vsub.f32 %v787, %v788
  %v790 = vand.u32 %v789, 4294901760
  %791 = vmatmul.mubr.f32.gmra.mrb[0].mxu0 %v790
  %v792 = vpop.f32.mrb[0].mxu0
  %v793 = vadd.f32 0.0, %v792
  %v794 = vpop.f32.mrb[0].mxu0
  %795 = vmatprep.mubr.f32.mxu0 0.0
  %v796 = vand.u32 %v565, 4294901760
  %v797 = vsub.f32 %v565, %v796
  %v798 = vand.u32 %v797, 4294901760
  %v799 = vsub.f32 %v797, %v798
  %v800 = vand.u32 %v799, 4294901760
  %801 = vmatmul.mubr.f32.gmra.mrb[0].mxu0 %v800
  %v802 = vpop.f32.mrb[0].mxu0
  %v803 = vadd.f32 0.0, %v802
  %v804 = vpop.f32.mrb[0].mxu0
  %805 = vmatprep.mubr.f32.mxu0 0.0
  %v806 = vand.u32 %v566, 4294901760
  %v807 = vsub.f32 %v566, %v806
  %v808 = vand.u32 %v807, 4294901760
  %v809 = vsub.f32 %v807, %v808
  %v810 = vand.u32 %v809, 4294901760
  %811 = vmatmul.mubr.f32.gmra.mrb[0].mxu0 %v810
  %v812 = vpop.f32.mrb[0].mxu0
  %v813 = vadd.f32 0.0, %v812
  %v814 = vpop.f32.mrb[0].mxu0
  %815 = vmatprep.mubr.f32.mxu0 0.0
  %v816 = vand.u32 %v567, 4294901760
  %v817 = vsub.f32 %v567, %v816
  %v818 = vand.u32 %v817, 4294901760
  %v819 = vsub.f32 %v817, %v818
  %v820 = vand.u32 %v819, 4294901760
  %821 = vmatmul.mubr.f32.gmra.mrb[0].mxu0 %v820
  %v822 = vpop.f32.mrb[0].mxu0
  %v823 = vadd.f32 0.0, %v822
  %v824 = vpop.f32.mrb[0].mxu0
  %825 = vmatprep.mubr.f32.mxu0 0.0
  %v826 = vand.u32 %v568, 4294901760
  %v827 = vsub.f32 %v568, %v826
  %v828 = vand.u32 %v827, 4294901760
  %v829 = vsub.f32 %v827, %v828
  %v830 = vand.u32 %v829, 4294901760
  %831 = vmatmul.mubr.f32.gmra.mrb[0].mxu0 %v830
  %v832 = vpop.f32.mrb[0].mxu0
  %v833 = vadd.f32 0.0, %v832
  %v834 = vpop.f32.mrb[0].mxu0
  %835 = vmatprep.mubr.f32.mxu0 0.0
  %v836 = vand.u32 %v569, 4294901760
  %v837 = vsub.f32 %v569, %v836
  %v838 = vand.u32 %v837, 4294901760
  %v839 = vsub.f32 %v837, %v838
  %v840 = vand.u32 %v839, 4294901760
  %841 = vmatmul.mubr.f32.gmra.mrb[0].mxu0 %v840
  %v842 = vpop.f32.mrb[0].mxu0
  %v843 = vadd.f32 0.0, %v842
  %v844 = vpop.f32.mrb[0].mxu0
  %845 = vmatprep.mubr.f32.mxu0 0.0
  %v846 = vand.u32 %v570, 4294901760
  %v847 = vsub.f32 %v570, %v846
  %v848 = vand.u32 %v847, 4294901760
  %v849 = vsub.f32 %v847, %v848
  %v850 = vand.u32 %v849, 4294901760
  %851 = vmatmul.mubr.f32.gmra.mrb[0].mxu0 %v850
  %v852 = vpop.f32.mrb[0].mxu0
  %v853 = vadd.f32 0.0, %v852
  %v854 = vpop.f32.mrb[0].mxu0
  %855 = vdwg.mxu0
  %856 = vmatprep.subr.mxu0 0.0
  %v857 = vsub.f32 %v199, %v199
  %v858 = vand.u32 %v857, 4294901760
  %v859 = vsub.f32 %v857, %v858
  %v860 = vand.u32 %v859, 4294901760
  %861 = vmatpush1.msra.mxu0 %v860
  %862 = vmatprep.subr.mxu0 0.0
  %v863 = vsub.f32 %v200, %v200
  %v864 = vand.u32 %v863, 4294901760
  %v865 = vsub.f32 %v863, %v864
  %v866 = vand.u32 %v865, 4294901760
  %867 = vmatpush1.msra.mxu0 %v866
  %868 = vmatprep.subr.mxu0 0.0
  %v869 = vsub.f32 %v201, %v201
  %v870 = vand.u32 %v869, 4294901760
  %v871 = vsub.f32 %v869, %v870
  %v872 = vand.u32 %v871, 4294901760
  %873 = vmatpush1.msra.mxu0 %v872
  %874 = vmatprep.subr.mxu0 0.0
  %v875 = vsub.f32 %v202, %v202
  %v876 = vand.u32 %v875, 4294901760
  %v877 = vsub.f32 %v875, %v876
  %v878 = vand.u32 %v877, 4294901760
  %879 = vmatpush1.msra.mxu0 %v878
  %880 = vmatprep.subr.mxu0 0.0
  %v881 = vsub.f32 %v203, %v203
  %v882 = vand.u32 %v881, 4294901760
  %v883 = vsub.f32 %v881, %v882
  %v884 = vand.u32 %v883, 4294901760
  %885 = vmatpush1.msra.mxu0 %v884
  %886 = vmatprep.subr.mxu0 0.0
  %v887 = vsub.f32 %v204, %v204
  %v888 = vand.u32 %v887, 4294901760
  %v889 = vsub.f32 %v887, %v888
  %v890 = vand.u32 %v889, 4294901760
  %891 = vmatpush1.msra.mxu0 %v890
  %892 = vmatprep.subr.mxu0 0.0
  %v893 = vsub.f32 %v205, %v205
  %v894 = vand.u32 %v893, 4294901760
  %v895 = vsub.f32 %v893, %v894
  %v896 = vand.u32 %v895, 4294901760
  %897 = vmatpush1.msra.mxu0 %v896
  %898 = vmatprep.subr.mxu0 0.0
  %v899 = vsub.f32 %v206, %v206
  %v900 = vand.u32 %v899, 4294901760
  %v901 = vsub.f32 %v899, %v900
  %v902 = vand.u32 %v901, 4294901760
  %903 = vmatpush1.msra.mxu0 %v902
  %904 = vmatprep.subr.mxu0 0.0
  %v905 = vsub.f32 %v207, %v207
  %v906 = vand.u32 %v905, 4294901760
  %v907 = vsub.f32 %v905, %v906
  %v908 = vand.u32 %v907, 4294901760
  %909 = vmatpush1.msra.mxu0 %v908
  %910 = vmatprep.subr.mxu0 0.0
  %v911 = vsub.f32 %v208, %v208
  %v912 = vand.u32 %v911, 4294901760
  %v913 = vsub.f32 %v911, %v912
  %v914 = vand.u32 %v913, 4294901760
  %915 = vmatpush1.msra.mxu0 %v914
  %916 = vmatprep.subr.mxu0 0.0
  %v917 = vsub.f32 %v209, %v209
  %v918 = vand.u32 %v917, 4294901760
  %v919 = vsub.f32 %v917, %v918
  %v920 = vand.u32 %v919, 4294901760
  %921 = vmatpush1.msra.mxu0 %v920
  %922 = vmatprep.subr.mxu0 0.0
  %v923 = vsub.f32 %v210, %v210
  %v924 = vand.u32 %v923, 4294901760
  %v925 = vsub.f32 %v923, %v924
  %v926 = vand.u32 %v925, 4294901760
  %927 = vmatpush1.msra.mxu0 %v926
  %928 = vmatprep.subr.mxu0 0.0
  %v929 = vsub.f32 %v211, %v211
  %v930 = vand.u32 %v929, 4294901760
  %v931 = vsub.f32 %v929, %v930
  %v932 = vand.u32 %v931, 4294901760
  %933 = vmatpush1.msra.mxu0 %v932
  %934 = vmatprep.subr.mxu0 0.0
  %v935 = vsub.f32 %v212, %v212
  %v936 = vand.u32 %v935, 4294901760
  %v937 = vsub.f32 %v935, %v936
  %v938 = vand.u32 %v937, 4294901760
  %939 = vmatpush1.msra.mxu0 %v938
  %940 = vmatprep.subr.mxu0 0.0
  %v941 = vsub.f32 %v213, %v213
  %v942 = vand.u32 %v941, 4294901760
  %v943 = vsub.f32 %v941, %v942
  %v944 = vand.u32 %v943, 4294901760
  %945 = vmatpush1.msra.mxu0 %v944
  %946 = vmatprep.subr.mxu0 0.0
  %v947 = vsub.f32 %v214, %v214
  %v948 = vand.u32 %v947, 4294901760
  %v949 = vsub.f32 %v947, %v948
  %v950 = vand.u32 %v949, 4294901760
  %951 = vmatpush1.msra.mxu0 %v950
  %952 = vmatprep.subr.mxu0 0.0
  %953 = vmatpush1.msra.mxu0 0.0
  %954 = vmatprep.subr.mxu0 0.0
  %955 = vmatpush1.msra.mxu0 0.0
  %956 = vmatprep.subr.mxu0 0.0
  %957 = vmatpush1.msra.mxu0 0.0
  %958 = vmatprep.subr.mxu0 0.0
  %959 = vmatpush1.msra.mxu0 0.0
  %960 = vmatprep.subr.mxu0 0.0
  %961 = vmatpush1.msra.mxu0 0.0
  %962 = vmatprep.subr.mxu0 0.0
  %963 = vmatpush1.msra.mxu0 0.0
  %964 = vmatprep.subr.mxu0 0.0
  %965 = vmatpush1.msra.mxu0 0.0
  %966 = vmatprep.subr.mxu0 0.0
  %967 = vmatpush1.msra.mxu0 0.0
  %968 = vmatprep.subr.mxu0 0.0
  %969 = vmatpush1.msra.mxu0 0.0
  %970 = vmatprep.subr.mxu0 0.0
  %971 = vmatpush1.msra.mxu0 0.0
  %972 = vmatprep.subr.mxu0 0.0
  %973 = vmatpush1.msra.mxu0 0.0
  %974 = vmatprep.subr.mxu0 0.0
  %975 = vmatpush1.msra.mxu0 0.0
  %976 = vmatprep.subr.mxu0 0.0
  %977 = vmatpush1.msra.mxu0 0.0
  %978 = vmatprep.subr.mxu0 0.0
  %979 = vmatpush1.msra.mxu0 0.0
  %980 = vmatprep.subr.mxu0 0.0
  %981 = vmatpush1.msra.mxu0 0.0
  %982 = vmatprep.subr.mxu0 0.0
  %983 = vmatpush1.msra.mxu0 0.0
  %984 = vmatprep.mubr.f32.mxu0 0.0
  %v985 = vand.u32 %v515, 4294901760
  %986 = vmatmul.mubr.f32.gmra.mrb[0].mxu0 %v985
  %v987 = vpop.f32.mrb[0].mxu0
  %v988 = vadd.f32 %v643, %v987
  %v989 = vpop.f32.mrb[0].mxu0
  %990 = vmatprep.mubr.f32.mxu0 0.0
  %v991 = vand.u32 %v518, 4294901760
  %992 = vmatmul.mubr.f32.gmra.mrb[0].mxu0 %v991
  %v993 = vpop.f32.mrb[0].mxu0
  %v994 = vadd.f32 %v653, %v993
  %v995 = vpop.f32.mrb[0].mxu0
  %996 = vmatprep.mubr.f32.mxu0 0.0
  %v997 = vand.u32 %v523, 4294901760
  %998 = vmatmul.mubr.f32.gmra.mrb[0].mxu0 %v997
  %v999 = vpop.f32.mrb[0].mxu0
  %v1000 = vadd.f32 %v663, %v999
  %v1001 = vpop.f32.mrb[0].mxu0
  %1002 = vmatprep.mubr.f32.mxu0 0.0
  %v1003 = vand.u32 %v526, 4294901760
  %1004 = vmatmul.mubr.f32.gmra.mrb[0].mxu0 %v1003
  %v1005 = vpop.f32.mrb[0].mxu0
  %v1006 = vadd.f32 %v673, %v1005
  %v1007 = vpop.f32.mrb[0].mxu0
  %1008 = vmatprep.mubr.f32.mxu0 0.0
  %v1009 = vand.u32 %v531, 4294901760
  %1010 = vmatmul.mubr.f32.gmra.mrb[0].mxu0 %v1009
  %v1011 = vpop.f32.mrb[0].mxu0
  %v1012 = vadd.f32 %v683, %v1011
  %v1013 = vpop.f32.mrb[0].mxu0
  %1014 = vmatprep.mubr.f32.mxu0 0.0
  %v1015 = vand.u32 %v534, 4294901760
  %1016 = vmatmul.mubr.f32.gmra.mrb[0].mxu0 %v1015
  %v1017 = vpop.f32.mrb[0].mxu0
  %v1018 = vadd.f32 %v693, %v1017
  %v1019 = vpop.f32.mrb[0].mxu0
  %1020 = vmatprep.mubr.f32.mxu0 0.0
  %v1021 = vand.u32 %v539, 4294901760
  %1022 = vmatmul.mubr.f32.gmra.mrb[0].mxu0 %v1021
  %v1023 = vpop.f32.mrb[0].mxu0
  %v1024 = vadd.f32 %v703, %v1023
  %v1025 = vpop.f32.mrb[0].mxu0
  %1026 = vmatprep.mubr.f32.mxu0 0.0
  %v1027 = vand.u32 %v542, 4294901760
  %1028 = vmatmul.mubr.f32.gmra.mrb[0].mxu0 %v1027
  %v1029 = vpop.f32.mrb[0].mxu0
  %v1030 = vadd.f32 %v713, %v1029
  %v1031 = vpop.f32.mrb[0].mxu0
  %1032 = vmatprep.mubr.f32.mxu0 0.0
  %v1033 = vand.u32 %v547, 4294901760
  %1034 = vmatmul.mubr.f32.gmra.mrb[0].mxu0 %v1033
  %v1035 = vpop.f32.mrb[0].mxu0
  %v1036 = vadd.f32 %v723, %v1035
  %v1037 = vpop.f32.mrb[0].mxu0
  %1038 = vmatprep.mubr.f32.mxu0 0.0
  %v1039 = vand.u32 %v550, 4294901760
  %1040 = vmatmul.mubr.f32.gmra.mrb[0].mxu0 %v1039
  %v1041 = vpop.f32.mrb[0].mxu0
  %v1042 = vadd.f32 %v733, %v1041
  %v1043 = vpop.f32.mrb[0].mxu0
  %1044 = vmatprep.mubr.f32.mxu0 0.0
  %v1045 = vand.u32 %v555, 4294901760
  %1046 = vmatmul.mubr.f32.gmra.mrb[0].mxu0 %v1045
  %v1047 = vpop.f32.mrb[0].mxu0
  %v1048 = vadd.f32 %v743, %v1047
  %v1049 = vpop.f32.mrb[0].mxu0
  %1050 = vmatprep.mubr.f32.mxu0 0.0
  %v1051 = vand.u32 %v560, 4294901760
  %1052 = vmatmul.mubr.f32.gmra.mrb[0].mxu0 %v1051
  %v1053 = vpop.f32.mrb[0].mxu0
  %v1054 = vadd.f32 %v753, %v1053
  %v1055 = vpop.f32.mrb[0].mxu0
  %1056 = vmatprep.mubr.f32.mxu0 0.0
  %v1057 = vand.u32 %v561, 4294901760
  %1058 = vmatmul.mubr.f32.gmra.mrb[0].mxu0 %v1057
  %v1059 = vpop.f32.mrb[0].mxu0
  %v1060 = vadd.f32 %v763, %v1059
  %v1061 = vpop.f32.mrb[0].mxu0
  %1062 = vmatprep.mubr.f32.mxu0 0.0
  %v1063 = vand.u32 %v562, 4294901760
  %1064 = vmatmul.mubr.f32.gmra.mrb[0].mxu0 %v1063
  %v1065 = vpop.f32.mrb[0].mxu0
  %v1066 = vadd.f32 %v773, %v1065
  %v1067 = vpop.f32.mrb[0].mxu0
  %1068 = vmatprep.mubr.f32.mxu0 0.0
  %v1069 = vand.u32 %v563, 4294901760
  %1070 = vmatmul.mubr.f32.gmra.mrb[0].mxu0 %v1069
  %v1071 = vpop.f32.mrb[0].mxu0
  %v1072 = vadd.f32 %v783, %v1071
  %v1073 = vpop.f32.mrb[0].mxu0
  %1074 = vmatprep.mubr.f32.mxu0 0.0
  %v1075 = vand.u32 %v564, 4294901760
  %1076 = vmatmul.mubr.f32.gmra.mrb[0].mxu0 %v1075
  %v1077 = vpop.f32.mrb[0].mxu0
  %v1078 = vadd.f32 %v793, %v1077
  %v1079 = vpop.f32.mrb[0].mxu0
  %1080 = vmatprep.mubr.f32.mxu0 0.0
  %v1081 = vand.u32 %v565, 4294901760
  %1082 = vmatmul.mubr.f32.gmra.mrb[0].mxu0 %v1081
  %v1083 = vpop.f32.mrb[0].mxu0
  %v1084 = vadd.f32 %v803, %v1083
  %v1085 = vpop.f32.mrb[0].mxu0
  %1086 = vmatprep.mubr.f32.mxu0 0.0
  %v1087 = vand.u32 %v566, 4294901760
  %1088 = vmatmul.mubr.f32.gmra.mrb[0].mxu0 %v1087
  %v1089 = vpop.f32.mrb[0].mxu0
  %v1090 = vadd.f32 %v813, %v1089
  %v1091 = vpop.f32.mrb[0].mxu0
  %1092 = vmatprep.mubr.f32.mxu0 0.0
  %v1093 = vand.u32 %v567, 4294901760
  %1094 = vmatmul.mubr.f32.gmra.mrb[0].mxu0 %v1093
  %v1095 = vpop.f32.mrb[0].mxu0
  %v1096 = vadd.f32 %v823, %v1095
  %v1097 = vpop.f32.mrb[0].mxu0
  %1098 = vmatprep.mubr.f32.mxu0 0.0
  %v1099 = vand.u32 %v568, 4294901760
  %1100 = vmatmul.mubr.f32.gmra.mrb[0].mxu0 %v1099
  %v1101 = vpop.f32.mrb[0].mxu0
  %v1102 = vadd.f32 %v833, %v1101
  %v1103 = vpop.f32.mrb[0].mxu0
  %1104 = vmatprep.mubr.f32.mxu0 0.0
  %v1105 = vand.u32 %v569, 4294901760
  %1106 = vmatmul.mubr.f32.gmra.mrb[0].mxu0 %v1105
  %v1107 = vpop.f32.mrb[0].mxu0
  %v1108 = vadd.f32 %v843, %v1107
  %v1109 = vpop.f32.mrb[0].mxu0
  %1110 = vmatprep.mubr.f32.mxu0 0.0
  %v1111 = vand.u32 %v570, 4294901760
  %1112 = vmatmul.mubr.f32.gmra.mrb[0].mxu0 %v1111
  %v1113 = vpop.f32.mrb[0].mxu0
  %v1114 = vadd.f32 %v853, %v1113
  %v1115 = vpop.f32.mrb[0].mxu0
  %1116 = vdwg.mxu0
  %1117 = vmatprep.subr.mxu0 0.0
  %v1118 = vsub.f32 %v199, %v199
  %1119 = vmatpush1.msra.mxu0 %v1118
  %1120 = vmatprep.subr.mxu0 0.0
  %v1121 = vsub.f32 %v200, %v200
  %1122 = vmatpush1.msra.mxu0 %v1121
  %1123 = vmatprep.subr.mxu0 0.0
  %v1124 = vsub.f32 %v201, %v201
  %1125 = vmatpush1.msra.mxu0 %v1124
  %1126 = vmatprep.subr.mxu0 0.0
  %v1127 = vsub.f32 %v202, %v202
  %1128 = vmatpush1.msra.mxu0 %v1127
  %1129 = vmatprep.subr.mxu0 0.0
  %v1130 = vsub.f32 %v203, %v203
  %1131 = vmatpush1.msra.mxu0 %v1130
  %1132 = vmatprep.subr.mxu0 0.0
  %v1133 = vsub.f32 %v204, %v204
  %1134 = vmatpush1.msra.mxu0 %v1133
  %1135 = vmatprep.subr.mxu0 0.0
  %v1136 = vsub.f32 %v205, %v205
  %1137 = vmatpush1.msra.mxu0 %v1136
  %1138 = vmatprep.subr.mxu0 0.0
  %v1139 = vsub.f32 %v206, %v206
  %1140 = vmatpush1.msra.mxu0 %v1139
  %1141 = vmatprep.subr.mxu0 0.0
  %v1142 = vsub.f32 %v207, %v207
  %1143 = vmatpush1.msra.mxu0 %v1142
  %1144 = vmatprep.subr.mxu0 0.0
  %v1145 = vsub.f32 %v208, %v208
  %1146 = vmatpush1.msra.mxu0 %v1145
  %1147 = vmatprep.subr.mxu0 0.0
  %v1148 = vsub.f32 %v209, %v209
  %1149 = vmatpush1.msra.mxu0 %v1148
  %1150 = vmatprep.subr.mxu0 0.0
  %v1151 = vsub.f32 %v210, %v210
  %1152 = vmatpush1.msra.mxu0 %v1151
  %1153 = vmatprep.subr.mxu0 0.0
  %v1154 = vsub.f32 %v211, %v211
  %1155 = vmatpush1.msra.mxu0 %v1154
  %1156 = vmatprep.subr.mxu0 0.0
  %v1157 = vsub.f32 %v212, %v212
  %1158 = vmatpush1.msra.mxu0 %v1157
  %1159 = vmatprep.subr.mxu0 0.0
  %v1160 = vsub.f32 %v213, %v213
  %1161 = vmatpush1.msra.mxu0 %v1160
  %1162 = vmatprep.subr.mxu0 0.0
  %v1163 = vsub.f32 %v214, %v214
  %1164 = vmatpush1.msra.mxu0 %v1163
  %1165 = vmatprep.subr.mxu0 0.0
  %1166 = vmatpush1.msra.mxu0 0.0
  %1167 = vmatprep.subr.mxu0 0.0
  %1168 = vmatpush1.msra.mxu0 0.0
  %1169 = vmatprep.subr.mxu0 0.0
  %1170 = vmatpush1.msra.mxu0 0.0
  %1171 = vmatprep.subr.mxu0 0.0
  %1172 = vmatpush1.msra.mxu0 0.0
  %1173 = vmatprep.subr.mxu0 0.0
  %1174 = vmatpush1.msra.mxu0 0.0
  %1175 = vmatprep.subr.mxu0 0.0
  %1176 = vmatpush1.msra.mxu0 0.0
  %1177 = vmatprep.subr.mxu0 0.0
  %1178 = vmatpush1.msra.mxu0 0.0
  %1179 = vmatprep.subr.mxu0 0.0
  %1180 = vmatpush1.msra.mxu0 0.0
  %1181 = vmatprep.subr.mxu0 0.0
  %1182 = vmatpush1.msra.mxu0 0.0
  %1183 = vmatprep.subr.mxu0 0.0
  %1184 = vmatpush1.msra.mxu0 0.0
  %1185 = vmatprep.subr.mxu0 0.0
  %1186 = vmatpush1.msra.mxu0 0.0
  %1187 = vmatprep.subr.mxu0 0.0
  %1188 = vmatpush1.msra.mxu0 0.0
  %1189 = vmatprep.subr.mxu0 0.0
  %1190 = vmatpush1.msra.mxu0 0.0
  %1191 = vmatprep.subr.mxu0 0.0
  %1192 = vmatpush1.msra.mxu0 0.0
  %1193 = vmatprep.subr.mxu0 0.0
  %1194 = vmatpush1.msra.mxu0 0.0
  %1195 = vmatprep.subr.mxu0 0.0
  %1196 = vmatpush1.msra.mxu0 0.0
  %1197 = vmatprep.mubr.f32.mxu0 0.0
  %v1198 = vand.u32 %v515, 4294901760
  %v1199 = vsub.f32 %v515, %v1198
  %1200 = vmatmul.mubr.f32.gmra.mrb[0].mxu0 %v1199
  %v1201 = vpop.f32.mrb[0].mxu0
  %v1202 = vadd.f32 %v988, %v1201
  %v1203 = vpop.f32.mrb[0].mxu0
  %1204 = vmatprep.mubr.f32.mxu0 0.0
  %v1205 = vand.u32 %v518, 4294901760
  %v1206 = vsub.f32 %v518, %v1205
  %1207 = vmatmul.mubr.f32.gmra.mrb[0].mxu0 %v1206
  %v1208 = vpop.f32.mrb[0].mxu0
  %v1209 = vadd.f32 %v994, %v1208
  %v1210 = vpop.f32.mrb[0].mxu0
  %1211 = vmatprep.mubr.f32.mxu0 0.0
  %v1212 = vand.u32 %v523, 4294901760
  %v1213 = vsub.f32 %v523, %v1212
  %1214 = vmatmul.mubr.f32.gmra.mrb[0].mxu0 %v1213
  %v1215 = vpop.f32.mrb[0].mxu0
  %v1216 = vadd.f32 %v1000, %v1215
  %v1217 = vpop.f32.mrb[0].mxu0
  %1218 = vmatprep.mubr.f32.mxu0 0.0
  %v1219 = vand.u32 %v526, 4294901760
  %v1220 = vsub.f32 %v526, %v1219
  %1221 = vmatmul.mubr.f32.gmra.mrb[0].mxu0 %v1220
  %v1222 = vpop.f32.mrb[0].mxu0
  %v1223 = vadd.f32 %v1006, %v1222
  %v1224 = vpop.f32.mrb[0].mxu0
  %1225 = vmatprep.mubr.f32.mxu0 0.0
  %v1226 = vand.u32 %v531, 4294901760
  %v1227 = vsub.f32 %v531, %v1226
  %1228 = vmatmul.mubr.f32.gmra.mrb[0].mxu0 %v1227
  %v1229 = vpop.f32.mrb[0].mxu0
  %v1230 = vadd.f32 %v1012, %v1229
  %v1231 = vpop.f32.mrb[0].mxu0
  %1232 = vmatprep.mubr.f32.mxu0 0.0
  %v1233 = vand.u32 %v534, 4294901760
  %v1234 = vsub.f32 %v534, %v1233
  %1235 = vmatmul.mubr.f32.gmra.mrb[0].mxu0 %v1234
  %v1236 = vpop.f32.mrb[0].mxu0
  %v1237 = vadd.f32 %v1018, %v1236
  %v1238 = vpop.f32.mrb[0].mxu0
  %1239 = vmatprep.mubr.f32.mxu0 0.0
  %v1240 = vand.u32 %v539, 4294901760
  %v1241 = vsub.f32 %v539, %v1240
  %1242 = vmatmul.mubr.f32.gmra.mrb[0].mxu0 %v1241
  %v1243 = vpop.f32.mrb[0].mxu0
  %v1244 = vadd.f32 %v1024, %v1243
  %v1245 = vpop.f32.mrb[0].mxu0
  %1246 = vmatprep.mubr.f32.mxu0 0.0
  %v1247 = vand.u32 %v542, 4294901760
  %v1248 = vsub.f32 %v542, %v1247
  %1249 = vmatmul.mubr.f32.gmra.mrb[0].mxu0 %v1248
  %v1250 = vpop.f32.mrb[0].mxu0
  %v1251 = vadd.f32 %v1030, %v1250
  %v1252 = vpop.f32.mrb[0].mxu0
  %1253 = vmatprep.mubr.f32.mxu0 0.0
  %v1254 = vand.u32 %v547, 4294901760
  %v1255 = vsub.f32 %v547, %v1254
  %1256 = vmatmul.mubr.f32.gmra.mrb[0].mxu0 %v1255
  %v1257 = vpop.f32.mrb[0].mxu0
  %v1258 = vadd.f32 %v1036, %v1257
  %v1259 = vpop.f32.mrb[0].mxu0
  %1260 = vmatprep.mubr.f32.mxu0 0.0
  %v1261 = vand.u32 %v550, 4294901760
  %v1262 = vsub.f32 %v550, %v1261
  %1263 = vmatmul.mubr.f32.gmra.mrb[0].mxu0 %v1262
  %v1264 = vpop.f32.mrb[0].mxu0
  %v1265 = vadd.f32 %v1042, %v1264
  %v1266 = vpop.f32.mrb[0].mxu0
  %1267 = vmatprep.mubr.f32.mxu0 0.0
  %v1268 = vand.u32 %v555, 4294901760
  %v1269 = vsub.f32 %v555, %v1268
  %1270 = vmatmul.mubr.f32.gmra.mrb[0].mxu0 %v1269
  %v1271 = vpop.f32.mrb[0].mxu0
  %v1272 = vadd.f32 %v1048, %v1271
  %v1273 = vpop.f32.mrb[0].mxu0
  %1274 = vmatprep.mubr.f32.mxu0 0.0
  %v1275 = vand.u32 %v560, 4294901760
  %v1276 = vsub.f32 %v560, %v1275
  %1277 = vmatmul.mubr.f32.gmra.mrb[0].mxu0 %v1276
  %v1278 = vpop.f32.mrb[0].mxu0
  %v1279 = vadd.f32 %v1054, %v1278
  %v1280 = vpop.f32.mrb[0].mxu0
  %1281 = vmatprep.mubr.f32.mxu0 0.0
  %v1282 = vand.u32 %v561, 4294901760
  %v1283 = vsub.f32 %v561, %v1282
  %1284 = vmatmul.mubr.f32.gmra.mrb[0].mxu0 %v1283
  %v1285 = vpop.f32.mrb[0].mxu0
  %v1286 = vadd.f32 %v1060, %v1285
  %v1287 = vpop.f32.mrb[0].mxu0
  %1288 = vmatprep.mubr.f32.mxu0 0.0
  %v1289 = vand.u32 %v562, 4294901760
  %v1290 = vsub.f32 %v562, %v1289
  %1291 = vmatmul.mubr.f32.gmra.mrb[0].mxu0 %v1290
  %v1292 = vpop.f32.mrb[0].mxu0
  %v1293 = vadd.f32 %v1066, %v1292
  %v1294 = vpop.f32.mrb[0].mxu0
  %1295 = vmatprep.mubr.f32.mxu0 0.0
  %v1296 = vand.u32 %v563, 4294901760
  %v1297 = vsub.f32 %v563, %v1296
  %1298 = vmatmul.mubr.f32.gmra.mrb[0].mxu0 %v1297
  %v1299 = vpop.f32.mrb[0].mxu0
  %v1300 = vadd.f32 %v1072, %v1299
  %v1301 = vpop.f32.mrb[0].mxu0
  %1302 = vmatprep.mubr.f32.mxu0 0.0
  %v1303 = vand.u32 %v564, 4294901760
  %v1304 = vsub.f32 %v564, %v1303
  %1305 = vmatmul.mubr.f32.gmra.mrb[0].mxu0 %v1304
  %v1306 = vpop.f32.mrb[0].mxu0
  %v1307 = vadd.f32 %v1078, %v1306
  %v1308 = vpop.f32.mrb[0].mxu0
  %1309 = vmatprep.mubr.f32.mxu0 0.0
  %v1310 = vand.u32 %v565, 4294901760
  %v1311 = vsub.f32 %v565, %v1310
  %1312 = vmatmul.mubr.f32.gmra.mrb[0].mxu0 %v1311
  %v1313 = vpop.f32.mrb[0].mxu0
  %v1314 = vadd.f32 %v1084, %v1313
  %v1315 = vpop.f32.mrb[0].mxu0
  %1316 = vmatprep.mubr.f32.mxu0 0.0
  %v1317 = vand.u32 %v566, 4294901760
  %v1318 = vsub.f32 %v566, %v1317
  %1319 = vmatmul.mubr.f32.gmra.mrb[0].mxu0 %v1318
  %v1320 = vpop.f32.mrb[0].mxu0
  %v1321 = vadd.f32 %v1090, %v1320
  %v1322 = vpop.f32.mrb[0].mxu0
  %1323 = vmatprep.mubr.f32.mxu0 0.0
  %v1324 = vand.u32 %v567, 4294901760
  %v1325 = vsub.f32 %v567, %v1324
  %1326 = vmatmul.mubr.f32.gmra.mrb[0].mxu0 %v1325
  %v1327 = vpop.f32.mrb[0].mxu0
  %v1328 = vadd.f32 %v1096, %v1327
  %v1329 = vpop.f32.mrb[0].mxu0
  %1330 = vmatprep.mubr.f32.mxu0 0.0
  %v1331 = vand.u32 %v568, 4294901760
  %v1332 = vsub.f32 %v568, %v1331
  %1333 = vmatmul.mubr.f32.gmra.mrb[0].mxu0 %v1332
  %v1334 = vpop.f32.mrb[0].mxu0
  %v1335 = vadd.f32 %v1102, %v1334
  %v1336 = vpop.f32.mrb[0].mxu0
  %1337 = vmatprep.mubr.f32.mxu0 0.0
  %v1338 = vand.u32 %v569, 4294901760
  %v1339 = vsub.f32 %v569, %v1338
  %1340 = vmatmul.mubr.f32.gmra.mrb[0].mxu0 %v1339
  %v1341 = vpop.f32.mrb[0].mxu0
  %v1342 = vadd.f32 %v1108, %v1341
  %v1343 = vpop.f32.mrb[0].mxu0
  %1344 = vmatprep.mubr.f32.mxu0 0.0
  %v1345 = vand.u32 %v570, 4294901760
  %v1346 = vsub.f32 %v570, %v1345
  %1347 = vmatmul.mubr.f32.gmra.mrb[0].mxu0 %v1346
  %v1348 = vpop.f32.mrb[0].mxu0
  %v1349 = vadd.f32 %v1114, %v1348
  %v1350 = vpop.f32.mrb[0].mxu0
  %1351 = vdwg.mxu0
  %1352 = vmatprep.subr.mxu0 0.0
  %1353 = vmatpush1.msra.mxu0 %v199
  %1354 = vmatprep.subr.mxu0 0.0
  %1355 = vmatpush1.msra.mxu0 %v200
  %1356 = vmatprep.subr.mxu0 0.0
  %1357 = vmatpush1.msra.mxu0 %v201
  %1358 = vmatprep.subr.mxu0 0.0
  %1359 = vmatpush1.msra.mxu0 %v202
  %1360 = vmatprep.subr.mxu0 0.0
  %1361 = vmatpush1.msra.mxu0 %v203
  %1362 = vmatprep.subr.mxu0 0.0
  %1363 = vmatpush1.msra.mxu0 %v204
  %1364 = vmatprep.subr.mxu0 0.0
  %1365 = vmatpush1.msra.mxu0 %v205
  %1366 = vmatprep.subr.mxu0 0.0
  %1367 = vmatpush1.msra.mxu0 %v206
  %1368 = vmatprep.subr.mxu0 0.0
  %1369 = vmatpush1.msra.mxu0 %v207
  %1370 = vmatprep.subr.mxu0 0.0
  %1371 = vmatpush1.msra.mxu0 %v208
  %1372 = vmatprep.subr.mxu0 0.0
  %1373 = vmatpush1.msra.mxu0 %v209
  %1374 = vmatprep.subr.mxu0 0.0
  %1375 = vmatpush1.msra.mxu0 %v210
  %1376 = vmatprep.subr.mxu0 0.0
  %1377 = vmatpush1.msra.mxu0 %v211
  %1378 = vmatprep.subr.mxu0 0.0
  %1379 = vmatpush1.msra.mxu0 %v212
  %1380 = vmatprep.subr.mxu0 0.0
  %1381 = vmatpush1.msra.mxu0 %v213
  %1382 = vmatprep.subr.mxu0 0.0
  %1383 = vmatpush1.msra.mxu0 %v214
  %1384 = vmatprep.subr.mxu0 0.0
  %1385 = vmatpush1.msra.mxu0 0.0
  %1386 = vmatprep.subr.mxu0 0.0
  %1387 = vmatpush1.msra.mxu0 0.0
  %1388 = vmatprep.subr.mxu0 0.0
  %1389 = vmatpush1.msra.mxu0 0.0
  %1390 = vmatprep.subr.mxu0 0.0
  %1391 = vmatpush1.msra.mxu0 0.0
  %1392 = vmatprep.subr.mxu0 0.0
  %1393 = vmatpush1.msra.mxu0 0.0
  %1394 = vmatprep.subr.mxu0 0.0
  %1395 = vmatpush1.msra.mxu0 0.0
  %1396 = vmatprep.subr.mxu0 0.0
  %1397 = vmatpush1.msra.mxu0 0.0
  %1398 = vmatprep.subr.mxu0 0.0
  %1399 = vmatpush1.msra.mxu0 0.0
  %1400 = vmatprep.subr.mxu0 0.0
  %1401 = vmatpush1.msra.mxu0 0.0
  %1402 = vmatprep.subr.mxu0 0.0
  %1403 = vmatpush1.msra.mxu0 0.0
  %1404 = vmatprep.subr.mxu0 0.0
  %1405 = vmatpush1.msra.mxu0 0.0
  %1406 = vmatprep.subr.mxu0 0.0
  %1407 = vmatpush1.msra.mxu0 0.0
  %1408 = vmatprep.subr.mxu0 0.0
  %1409 = vmatpush1.msra.mxu0 0.0
  %1410 = vmatprep.subr.mxu0 0.0
  %1411 = vmatpush1.msra.mxu0 0.0
  %1412 = vmatprep.subr.mxu0 0.0
  %1413 = vmatpush1.msra.mxu0 0.0
  %1414 = vmatprep.subr.mxu0 0.0
  %1415 = vmatpush1.msra.mxu0 0.0
  %1416 = vmatprep.mubr.f32.mxu0 0.0
  %v1417 = vand.u32 %v515, 4294901760
  %v1418 = vsub.f32 %v515, %v1417
  %v1419 = vand.u32 %v1418, 4294901760
  %1420 = vmatmul.mubr.f32.gmra.mrb[0].mxu0 %v1419
  %v1421 = vpop.f32.mrb[0].mxu0
  %v1422 = vadd.f32 %v1202, %v1421
  %v1423 = vpop.f32.mrb[0].mxu0
  %1424 = vmatprep.mubr.f32.mxu0 0.0
  %v1425 = vand.u32 %v518, 4294901760
  %v1426 = vsub.f32 %v518, %v1425
  %v1427 = vand.u32 %v1426, 4294901760
  %1428 = vmatmul.mubr.f32.gmra.mrb[0].mxu0 %v1427
  %v1429 = vpop.f32.mrb[0].mxu0
  %v1430 = vadd.f32 %v1209, %v1429
  %v1431 = vpop.f32.mrb[0].mxu0
  %1432 = vmatprep.mubr.f32.mxu0 0.0
  %v1433 = vand.u32 %v523, 4294901760
  %v1434 = vsub.f32 %v523, %v1433
  %v1435 = vand.u32 %v1434, 4294901760
  %1436 = vmatmul.mubr.f32.gmra.mrb[0].mxu0 %v1435
  %v1437 = vpop.f32.mrb[0].mxu0
  %v1438 = vadd.f32 %v1216, %v1437
  %v1439 = vpop.f32.mrb[0].mxu0
  %1440 = vmatprep.mubr.f32.mxu0 0.0
  %v1441 = vand.u32 %v526, 4294901760
  %v1442 = vsub.f32 %v526, %v1441
  %v1443 = vand.u32 %v1442, 4294901760
  %1444 = vmatmul.mubr.f32.gmra.mrb[0].mxu0 %v1443
  %v1445 = vpop.f32.mrb[0].mxu0
  %v1446 = vadd.f32 %v1223, %v1445
  %v1447 = vpop.f32.mrb[0].mxu0
  %1448 = vmatprep.mubr.f32.mxu0 0.0
  %v1449 = vand.u32 %v531, 4294901760
  %v1450 = vsub.f32 %v531, %v1449
  %v1451 = vand.u32 %v1450, 4294901760
  %1452 = vmatmul.mubr.f32.gmra.mrb[0].mxu0 %v1451
  %v1453 = vpop.f32.mrb[0].mxu0
  %v1454 = vadd.f32 %v1230, %v1453
  %v1455 = vpop.f32.mrb[0].mxu0
  %1456 = vmatprep.mubr.f32.mxu0 0.0
  %v1457 = vand.u32 %v534, 4294901760
  %v1458 = vsub.f32 %v534, %v1457
  %v1459 = vand.u32 %v1458, 4294901760
  %1460 = vmatmul.mubr.f32.gmra.mrb[0].mxu0 %v1459
  %v1461 = vpop.f32.mrb[0].mxu0
  %v1462 = vadd.f32 %v1237, %v1461
  %v1463 = vpop.f32.mrb[0].mxu0
  %1464 = vmatprep.mubr.f32.mxu0 0.0
  %v1465 = vand.u32 %v539, 4294901760
  %v1466 = vsub.f32 %v539, %v1465
  %v1467 = vand.u32 %v1466, 4294901760
  %1468 = vmatmul.mubr.f32.gmra.mrb[0].mxu0 %v1467
  %v1469 = vpop.f32.mrb[0].mxu0
  %v1470 = vadd.f32 %v1244, %v1469
  %v1471 = vpop.f32.mrb[0].mxu0
  %1472 = vmatprep.mubr.f32.mxu0 0.0
  %v1473 = vand.u32 %v542, 4294901760
  %v1474 = vsub.f32 %v542, %v1473
  %v1475 = vand.u32 %v1474, 4294901760
  %1476 = vmatmul.mubr.f32.gmra.mrb[0].mxu0 %v1475
  %v1477 = vpop.f32.mrb[0].mxu0
  %v1478 = vadd.f32 %v1251, %v1477
  %v1479 = vpop.f32.mrb[0].mxu0
  %1480 = vmatprep.mubr.f32.mxu0 0.0
  %v1481 = vand.u32 %v547, 4294901760
  %v1482 = vsub.f32 %v547, %v1481
  %v1483 = vand.u32 %v1482, 4294901760
  %1484 = vmatmul.mubr.f32.gmra.mrb[0].mxu0 %v1483
  %v1485 = vpop.f32.mrb[0].mxu0
  %v1486 = vadd.f32 %v1258, %v1485
  %v1487 = vpop.f32.mrb[0].mxu0
  %1488 = vmatprep.mubr.f32.mxu0 0.0
  %v1489 = vand.u32 %v550, 4294901760
  %v1490 = vsub.f32 %v550, %v1489
  %v1491 = vand.u32 %v1490, 4294901760
  %1492 = vmatmul.mubr.f32.gmra.mrb[0].mxu0 %v1491
  %v1493 = vpop.f32.mrb[0].mxu0
  %v1494 = vadd.f32 %v1265, %v1493
  %v1495 = vpop.f32.mrb[0].mxu0
  %1496 = vmatprep.mubr.f32.mxu0 0.0
  %v1497 = vand.u32 %v555, 4294901760
  %v1498 = vsub.f32 %v555, %v1497
  %v1499 = vand.u32 %v1498, 4294901760
  %1500 = vmatmul.mubr.f32.gmra.mrb[0].mxu0 %v1499
  %v1501 = vpop.f32.mrb[0].mxu0
  %v1502 = vadd.f32 %v1272, %v1501
  %v1503 = vpop.f32.mrb[0].mxu0
  %1504 = vmatprep.mubr.f32.mxu0 0.0
  %v1505 = vand.u32 %v560, 4294901760
  %v1506 = vsub.f32 %v560, %v1505
  %v1507 = vand.u32 %v1506, 4294901760
  %1508 = vmatmul.mubr.f32.gmra.mrb[0].mxu0 %v1507
  %v1509 = vpop.f32.mrb[0].mxu0
  %v1510 = vadd.f32 %v1279, %v1509
  %v1511 = vpop.f32.mrb[0].mxu0
  %1512 = vmatprep.mubr.f32.mxu0 0.0
  %v1513 = vand.u32 %v561, 4294901760
  %v1514 = vsub.f32 %v561, %v1513
  %v1515 = vand.u32 %v1514, 4294901760
  %1516 = vmatmul.mubr.f32.gmra.mrb[0].mxu0 %v1515
  %v1517 = vpop.f32.mrb[0].mxu0
  %v1518 = vadd.f32 %v1286, %v1517
  %v1519 = vpop.f32.mrb[0].mxu0
  %1520 = vmatprep.mubr.f32.mxu0 0.0
  %v1521 = vand.u32 %v562, 4294901760
  %v1522 = vsub.f32 %v562, %v1521
  %v1523 = vand.u32 %v1522, 4294901760
  %1524 = vmatmul.mubr.f32.gmra.mrb[0].mxu0 %v1523
  %v1525 = vpop.f32.mrb[0].mxu0
  %v1526 = vadd.f32 %v1293, %v1525
  %v1527 = vpop.f32.mrb[0].mxu0
  %1528 = vmatprep.mubr.f32.mxu0 0.0
  %v1529 = vand.u32 %v563, 4294901760
  %v1530 = vsub.f32 %v563, %v1529
  %v1531 = vand.u32 %v1530, 4294901760
  %1532 = vmatmul.mubr.f32.gmra.mrb[0].mxu0 %v1531
  %v1533 = vpop.f32.mrb[0].mxu0
  %v1534 = vadd.f32 %v1300, %v1533
  %v1535 = vpop.f32.mrb[0].mxu0
  %1536 = vmatprep.mubr.f32.mxu0 0.0
  %v1537 = vand.u32 %v564, 4294901760
  %v1538 = vsub.f32 %v564, %v1537
  %v1539 = vand.u32 %v1538, 4294901760
  %1540 = vmatmul.mubr.f32.gmra.mrb[0].mxu0 %v1539
  %v1541 = vpop.f32.mrb[0].mxu0
  %v1542 = vadd.f32 %v1307, %v1541
  %v1543 = vpop.f32.mrb[0].mxu0
  %1544 = vmatprep.mubr.f32.mxu0 0.0
  %v1545 = vand.u32 %v565, 4294901760
  %v1546 = vsub.f32 %v565, %v1545
  %v1547 = vand.u32 %v1546, 4294901760
  %1548 = vmatmul.mubr.f32.gmra.mrb[0].mxu0 %v1547
  %v1549 = vpop.f32.mrb[0].mxu0
  %v1550 = vadd.f32 %v1314, %v1549
  %v1551 = vpop.f32.mrb[0].mxu0
  %1552 = vmatprep.mubr.f32.mxu0 0.0
  %v1553 = vand.u32 %v566, 4294901760
  %v1554 = vsub.f32 %v566, %v1553
  %v1555 = vand.u32 %v1554, 4294901760
  %1556 = vmatmul.mubr.f32.gmra.mrb[0].mxu0 %v1555
  %v1557 = vpop.f32.mrb[0].mxu0
  %v1558 = vadd.f32 %v1321, %v1557
  %v1559 = vpop.f32.mrb[0].mxu0
  %1560 = vmatprep.mubr.f32.mxu0 0.0
  %v1561 = vand.u32 %v567, 4294901760
  %v1562 = vsub.f32 %v567, %v1561
  %v1563 = vand.u32 %v1562, 4294901760
  %1564 = vmatmul.mubr.f32.gmra.mrb[0].mxu0 %v1563
  %v1565 = vpop.f32.mrb[0].mxu0
  %v1566 = vadd.f32 %v1328, %v1565
  %v1567 = vpop.f32.mrb[0].mxu0
  %1568 = vmatprep.mubr.f32.mxu0 0.0
  %v1569 = vand.u32 %v568, 4294901760
  %v1570 = vsub.f32 %v568, %v1569
  %v1571 = vand.u32 %v1570, 4294901760
  %1572 = vmatmul.mubr.f32.gmra.mrb[0].mxu0 %v1571
  %v1573 = vpop.f32.mrb[0].mxu0
  %v1574 = vadd.f32 %v1335, %v1573
  %v1575 = vpop.f32.mrb[0].mxu0
  %1576 = vmatprep.mubr.f32.mxu0 0.0
  %v1577 = vand.u32 %v569, 4294901760
  %v1578 = vsub.f32 %v569, %v1577
  %v1579 = vand.u32 %v1578, 4294901760
  %1580 = vmatmul.mubr.f32.gmra.mrb[0].mxu0 %v1579
  %v1581 = vpop.f32.mrb[0].mxu0
  %v1582 = vadd.f32 %v1342, %v1581
  %v1583 = vpop.f32.mrb[0].mxu0
  %1584 = vmatprep.mubr.f32.mxu0 0.0
  %v1585 = vand.u32 %v570, 4294901760
  %v1586 = vsub.f32 %v570, %v1585
  %v1587 = vand.u32 %v1586, 4294901760
  %1588 = vmatmul.mubr.f32.gmra.mrb[0].mxu0 %v1587
  %v1589 = vpop.f32.mrb[0].mxu0
  %v1590 = vadd.f32 %v1349, %v1589
  %v1591 = vpop.f32.mrb[0].mxu0
  %1592 = vdwg.mxu0
  %1593 = vmatprep.subr.mxu0 0.0
  %v1594 = vsub.f32 %v199, %v199
  %v1595 = vand.u32 %v1594, 4294901760
  %1596 = vmatpush1.msra.mxu0 %v1595
  %1597 = vmatprep.subr.mxu0 0.0
  %v1598 = vsub.f32 %v200, %v200
  %v1599 = vand.u32 %v1598, 4294901760
  %1600 = vmatpush1.msra.mxu0 %v1599
  %1601 = vmatprep.subr.mxu0 0.0
  %v1602 = vsub.f32 %v201, %v201
  %v1603 = vand.u32 %v1602, 4294901760
  %1604 = vmatpush1.msra.mxu0 %v1603
  %1605 = vmatprep.subr.mxu0 0.0
  %v1606 = vsub.f32 %v202, %v202
  %v1607 = vand.u32 %v1606, 4294901760
  %1608 = vmatpush1.msra.mxu0 %v1607
  %1609 = vmatprep.subr.mxu0 0.0
  %v1610 = vsub.f32 %v203, %v203
  %v1611 = vand.u32 %v1610, 4294901760
  %1612 = vmatpush1.msra.mxu0 %v1611
  %1613 = vmatprep.subr.mxu0 0.0
  %v1614 = vsub.f32 %v204, %v204
  %v1615 = vand.u32 %v1614, 4294901760
  %1616 = vmatpush1.msra.mxu0 %v1615
  %1617 = vmatprep.subr.mxu0 0.0
  %v1618 = vsub.f32 %v205, %v205
  %v1619 = vand.u32 %v1618, 4294901760
  %1620 = vmatpush1.msra.mxu0 %v1619
  %1621 = vmatprep.subr.mxu0 0.0
  %v1622 = vsub.f32 %v206, %v206
  %v1623 = vand.u32 %v1622, 4294901760
  %1624 = vmatpush1.msra.mxu0 %v1623
  %1625 = vmatprep.subr.mxu0 0.0
  %v1626 = vsub.f32 %v207, %v207
  %v1627 = vand.u32 %v1626, 4294901760
  %1628 = vmatpush1.msra.mxu0 %v1627
  %1629 = vmatprep.subr.mxu0 0.0
  %v1630 = vsub.f32 %v208, %v208
  %v1631 = vand.u32 %v1630, 4294901760
  %1632 = vmatpush1.msra.mxu0 %v1631
  %1633 = vmatprep.subr.mxu0 0.0
  %v1634 = vsub.f32 %v209, %v209
  %v1635 = vand.u32 %v1634, 4294901760
  %1636 = vmatpush1.msra.mxu0 %v1635
  %1637 = vmatprep.subr.mxu0 0.0
  %v1638 = vsub.f32 %v210, %v210
  %v1639 = vand.u32 %v1638, 4294901760
  %1640 = vmatpush1.msra.mxu0 %v1639
  %1641 = vmatprep.subr.mxu0 0.0
  %v1642 = vsub.f32 %v211, %v211
  %v1643 = vand.u32 %v1642, 4294901760
  %1644 = vmatpush1.msra.mxu0 %v1643
  %1645 = vmatprep.subr.mxu0 0.0
  %v1646 = vsub.f32 %v212, %v212
  %v1647 = vand.u32 %v1646, 4294901760
  %1648 = vmatpush1.msra.mxu0 %v1647
  %1649 = vmatprep.subr.mxu0 0.0
  %v1650 = vsub.f32 %v213, %v213
  %v1651 = vand.u32 %v1650, 4294901760
  %1652 = vmatpush1.msra.mxu0 %v1651
  %1653 = vmatprep.subr.mxu0 0.0
  %v1654 = vsub.f32 %v214, %v214
  %v1655 = vand.u32 %v1654, 4294901760
  %1656 = vmatpush1.msra.mxu0 %v1655
  %1657 = vmatprep.subr.mxu0 0.0
  %1658 = vmatpush1.msra.mxu0 0.0
  %1659 = vmatprep.subr.mxu0 0.0
  %1660 = vmatpush1.msra.mxu0 0.0
  %1661 = vmatprep.subr.mxu0 0.0
  %1662 = vmatpush1.msra.mxu0 0.0
  %1663 = vmatprep.subr.mxu0 0.0
  %1664 = vmatpush1.msra.mxu0 0.0
  %1665 = vmatprep.subr.mxu0 0.0
  %1666 = vmatpush1.msra.mxu0 0.0
  %1667 = vmatprep.subr.mxu0 0.0
  %1668 = vmatpush1.msra.mxu0 0.0
  %1669 = vmatprep.subr.mxu0 0.0
  %1670 = vmatpush1.msra.mxu0 0.0
  %1671 = vmatprep.subr.mxu0 0.0
  %1672 = vmatpush1.msra.mxu0 0.0
  %1673 = vmatprep.subr.mxu0 0.0
  %1674 = vmatpush1.msra.mxu0 0.0
  %1675 = vmatprep.subr.mxu0 0.0
  %1676 = vmatpush1.msra.mxu0 0.0
  %1677 = vmatprep.subr.mxu0 0.0
  %1678 = vmatpush1.msra.mxu0 0.0
  %1679 = vmatprep.subr.mxu0 0.0
  %1680 = vmatpush1.msra.mxu0 0.0
  %1681 = vmatprep.subr.mxu0 0.0
  %1682 = vmatpush1.msra.mxu0 0.0
  %1683 = vmatprep.subr.mxu0 0.0
  %1684 = vmatpush1.msra.mxu0 0.0
  %1685 = vmatprep.subr.mxu0 0.0
  %1686 = vmatpush1.msra.mxu0 0.0
  %1687 = vmatprep.subr.mxu0 0.0
  %1688 = vmatpush1.msra.mxu0 0.0
  %1689 = vmatprep.mubr.f32.mxu0 0.0
  %v1690 = vand.u32 %v515, 4294901760
  %1691 = vmatmul.mubr.f32.gmra.mrb[0].mxu0 %v1690
  %v1692 = vpop.f32.mrb[0].mxu0
  %v1693 = vadd.f32 %v1422, %v1692
  %v1694 = vpop.f32.mrb[0].mxu0
  %1695 = vmatprep.mubr.f32.mxu0 0.0
  %v1696 = vand.u32 %v518, 4294901760
  %1697 = vmatmul.mubr.f32.gmra.mrb[0].mxu0 %v1696
  %v1698 = vpop.f32.mrb[0].mxu0
  %v1699 = vadd.f32 %v1430, %v1698
  %v1700 = vpop.f32.mrb[0].mxu0
  %1701 = vmatprep.mubr.f32.mxu0 0.0
  %v1702 = vand.u32 %v523, 4294901760
  %1703 = vmatmul.mubr.f32.gmra.mrb[0].mxu0 %v1702
  %v1704 = vpop.f32.mrb[0].mxu0
  %v1705 = vadd.f32 %v1438, %v1704
  %v1706 = vpop.f32.mrb[0].mxu0
  %1707 = vmatprep.mubr.f32.mxu0 0.0
  %v1708 = vand.u32 %v526, 4294901760
  %1709 = vmatmul.mubr.f32.gmra.mrb[0].mxu0 %v1708
  %v1710 = vpop.f32.mrb[0].mxu0
  %v1711 = vadd.f32 %v1446, %v1710
  %v1712 = vpop.f32.mrb[0].mxu0
  %1713 = vmatprep.mubr.f32.mxu0 0.0
  %v1714 = vand.u32 %v531, 4294901760
  %1715 = vmatmul.mubr.f32.gmra.mrb[0].mxu0 %v1714
  %v1716 = vpop.f32.mrb[0].mxu0
  %v1717 = vadd.f32 %v1454, %v1716
  %v1718 = vpop.f32.mrb[0].mxu0
  %1719 = vmatprep.mubr.f32.mxu0 0.0
  %v1720 = vand.u32 %v534, 4294901760
  %1721 = vmatmul.mubr.f32.gmra.mrb[0].mxu0 %v1720
  %v1722 = vpop.f32.mrb[0].mxu0
  %v1723 = vadd.f32 %v1462, %v1722
  %v1724 = vpop.f32.mrb[0].mxu0
  %1725 = vmatprep.mubr.f32.mxu0 0.0
  %v1726 = vand.u32 %v539, 4294901760
  %1727 = vmatmul.mubr.f32.gmra.mrb[0].mxu0 %v1726
  %v1728 = vpop.f32.mrb[0].mxu0
  %v1729 = vadd.f32 %v1470, %v1728
  %v1730 = vpop.f32.mrb[0].mxu0
  %1731 = vmatprep.mubr.f32.mxu0 0.0
  %v1732 = vand.u32 %v542, 4294901760
  %1733 = vmatmul.mubr.f32.gmra.mrb[0].mxu0 %v1732
  %v1734 = vpop.f32.mrb[0].mxu0
  %v1735 = vadd.f32 %v1478, %v1734
  %v1736 = vpop.f32.mrb[0].mxu0
  %1737 = vmatprep.mubr.f32.mxu0 0.0
  %v1738 = vand.u32 %v547, 4294901760
  %1739 = vmatmul.mubr.f32.gmra.mrb[0].mxu0 %v1738
  %v1740 = vpop.f32.mrb[0].mxu0
  %v1741 = vadd.f32 %v1486, %v1740
  %v1742 = vpop.f32.mrb[0].mxu0
  %1743 = vmatprep.mubr.f32.mxu0 0.0
  %v1744 = vand.u32 %v550, 4294901760
  %1745 = vmatmul.mubr.f32.gmra.mrb[0].mxu0 %v1744
  %v1746 = vpop.f32.mrb[0].mxu0
  %v1747 = vadd.f32 %v1494, %v1746
  %v1748 = vpop.f32.mrb[0].mxu0
  %1749 = vmatprep.mubr.f32.mxu0 0.0
  %v1750 = vand.u32 %v555, 4294901760
  %1751 = vmatmul.mubr.f32.gmra.mrb[0].mxu0 %v1750
  %v1752 = vpop.f32.mrb[0].mxu0
  %v1753 = vadd.f32 %v1502, %v1752
  %v1754 = vpop.f32.mrb[0].mxu0
  %1755 = vmatprep.mubr.f32.mxu0 0.0
  %v1756 = vand.u32 %v560, 4294901760
  %1757 = vmatmul.mubr.f32.gmra.mrb[0].mxu0 %v1756
  %v1758 = vpop.f32.mrb[0].mxu0
  %v1759 = vadd.f32 %v1510, %v1758
  %v1760 = vpop.f32.mrb[0].mxu0
  %1761 = vmatprep.mubr.f32.mxu0 0.0
  %v1762 = vand.u32 %v561, 4294901760
  %1763 = vmatmul.mubr.f32.gmra.mrb[0].mxu0 %v1762
  %v1764 = vpop.f32.mrb[0].mxu0
  %v1765 = vadd.f32 %v1518, %v1764
  %v1766 = vpop.f32.mrb[0].mxu0
  %1767 = vmatprep.mubr.f32.mxu0 0.0
  %v1768 = vand.u32 %v562, 4294901760
  %1769 = vmatmul.mubr.f32.gmra.mrb[0].mxu0 %v1768
  %v1770 = vpop.f32.mrb[0].mxu0
  %v1771 = vadd.f32 %v1526, %v1770
  %v1772 = vpop.f32.mrb[0].mxu0
  %1773 = vmatprep.mubr.f32.mxu0 0.0
  %v1774 = vand.u32 %v563, 4294901760
  %1775 = vmatmul.mubr.f32.gmra.mrb[0].mxu0 %v1774
  %v1776 = vpop.f32.mrb[0].mxu0
  %v1777 = vadd.f32 %v1534, %v1776
  %v1778 = vpop.f32.mrb[0].mxu0
  %1779 = vmatprep.mubr.f32.mxu0 0.0
  %v1780 = vand.u32 %v564, 4294901760
  %1781 = vmatmul.mubr.f32.gmra.mrb[0].mxu0 %v1780
  %v1782 = vpop.f32.mrb[0].mxu0
  %v1783 = vadd.f32 %v1542, %v1782
  %v1784 = vpop.f32.mrb[0].mxu0
  %1785 = vmatprep.mubr.f32.mxu0 0.0
  %v1786 = vand.u32 %v565, 4294901760
  %1787 = vmatmul.mubr.f32.gmra.mrb[0].mxu0 %v1786
  %v1788 = vpop.f32.mrb[0].mxu0
  %v1789 = vadd.f32 %v1550, %v1788
  %v1790 = vpop.f32.mrb[0].mxu0
  %1791 = vmatprep.mubr.f32.mxu0 0.0
  %v1792 = vand.u32 %v566, 4294901760
  %1793 = vmatmul.mubr.f32.gmra.mrb[0].mxu0 %v1792
  %v1794 = vpop.f32.mrb[0].mxu0
  %v1795 = vadd.f32 %v1558, %v1794
  %v1796 = vpop.f32.mrb[0].mxu0
  %1797 = vmatprep.mubr.f32.mxu0 0.0
  %v1798 = vand.u32 %v567, 4294901760
  %1799 = vmatmul.mubr.f32.gmra.mrb[0].mxu0 %v1798
  %v1800 = vpop.f32.mrb[0].mxu0
  %v1801 = vadd.f32 %v1566, %v1800
  %v1802 = vpop.f32.mrb[0].mxu0
  %1803 = vmatprep.mubr.f32.mxu0 0.0
  %v1804 = vand.u32 %v568, 4294901760
  %1805 = vmatmul.mubr.f32.gmra.mrb[0].mxu0 %v1804
  %v1806 = vpop.f32.mrb[0].mxu0
  %v1807 = vadd.f32 %v1574, %v1806
  %v1808 = vpop.f32.mrb[0].mxu0
  %1809 = vmatprep.mubr.f32.mxu0 0.0
  %v1810 = vand.u32 %v569, 4294901760
  %1811 = vmatmul.mubr.f32.gmra.mrb[0].mxu0 %v1810
  %v1812 = vpop.f32.mrb[0].mxu0
  %v1813 = vadd.f32 %v1582, %v1812
  %v1814 = vpop.f32.mrb[0].mxu0
  %1815 = vmatprep.mubr.f32.mxu0 0.0
  %v1816 = vand.u32 %v570, 4294901760
  %1817 = vmatmul.mubr.f32.gmra.mrb[0].mxu0 %v1816
  %v1818 = vpop.f32.mrb[0].mxu0
  %v1819 = vadd.f32 %v1590, %v1818
  %v1820 = vpop.f32.mrb[0].mxu0
  %1821 = vdwg.mxu0
  %1822 = vmatprep.subr.mxu0 0.0
  %1823 = vmatpush1.msra.mxu0 %v199
  %1824 = vmatprep.subr.mxu0 0.0
  %1825 = vmatpush1.msra.mxu0 %v200
  %1826 = vmatprep.subr.mxu0 0.0
  %1827 = vmatpush1.msra.mxu0 %v201
  %1828 = vmatprep.subr.mxu0 0.0
  %1829 = vmatpush1.msra.mxu0 %v202
  %1830 = vmatprep.subr.mxu0 0.0
  %1831 = vmatpush1.msra.mxu0 %v203
  %1832 = vmatprep.subr.mxu0 0.0
  %1833 = vmatpush1.msra.mxu0 %v204
  %1834 = vmatprep.subr.mxu0 0.0
  %1835 = vmatpush1.msra.mxu0 %v205
  %1836 = vmatprep.subr.mxu0 0.0
  %1837 = vmatpush1.msra.mxu0 %v206
  %1838 = vmatprep.subr.mxu0 0.0
  %1839 = vmatpush1.msra.mxu0 %v207
  %1840 = vmatprep.subr.mxu0 0.0
  %1841 = vmatpush1.msra.mxu0 %v208
  %1842 = vmatprep.subr.mxu0 0.0
  %1843 = vmatpush1.msra.mxu0 %v209
  %1844 = vmatprep.subr.mxu0 0.0
  %1845 = vmatpush1.msra.mxu0 %v210
  %1846 = vmatprep.subr.mxu0 0.0
  %1847 = vmatpush1.msra.mxu0 %v211
  %1848 = vmatprep.subr.mxu0 0.0
  %1849 = vmatpush1.msra.mxu0 %v212
  %1850 = vmatprep.subr.mxu0 0.0
  %1851 = vmatpush1.msra.mxu0 %v213
  %1852 = vmatprep.subr.mxu0 0.0
  %1853 = vmatpush1.msra.mxu0 %v214
  %1854 = vmatprep.subr.mxu0 0.0
  %1855 = vmatpush1.msra.mxu0 0.0
  %1856 = vmatprep.subr.mxu0 0.0
  %1857 = vmatpush1.msra.mxu0 0.0
  %1858 = vmatprep.subr.mxu0 0.0
  %1859 = vmatpush1.msra.mxu0 0.0
  %1860 = vmatprep.subr.mxu0 0.0
  %1861 = vmatpush1.msra.mxu0 0.0
  %1862 = vmatprep.subr.mxu0 0.0
  %1863 = vmatpush1.msra.mxu0 0.0
  %1864 = vmatprep.subr.mxu0 0.0
  %1865 = vmatpush1.msra.mxu0 0.0
  %1866 = vmatprep.subr.mxu0 0.0
  %1867 = vmatpush1.msra.mxu0 0.0
  %1868 = vmatprep.subr.mxu0 0.0
  %1869 = vmatpush1.msra.mxu0 0.0
  %1870 = vmatprep.subr.mxu0 0.0
  %1871 = vmatpush1.msra.mxu0 0.0
  %1872 = vmatprep.subr.mxu0 0.0
  %1873 = vmatpush1.msra.mxu0 0.0
  %1874 = vmatprep.subr.mxu0 0.0
  %1875 = vmatpush1.msra.mxu0 0.0
  %1876 = vmatprep.subr.mxu0 0.0
  %1877 = vmatpush1.msra.mxu0 0.0
  %1878 = vmatprep.subr.mxu0 0.0
  %1879 = vmatpush1.msra.mxu0 0.0
  %1880 = vmatprep.subr.mxu0 0.0
  %1881 = vmatpush1.msra.mxu0 0.0
  %1882 = vmatprep.subr.mxu0 0.0
  %1883 = vmatpush1.msra.mxu0 0.0
  %1884 = vmatprep.subr.mxu0 0.0
  %1885 = vmatpush1.msra.mxu0 0.0
  %1886 = vmatprep.mubr.f32.mxu0 0.0
  %v1887 = vand.u32 %v515, 4294901760
  %1888 = vmatmul.mubr.f32.gmra.mrb[0].mxu0 %v1887
  %v1889 = vpop.f32.mrb[0].mxu0
  %v1890 = vadd.f32 %v1693, %v1889
  %v1891 = vpop.f32.mrb[0].mxu0
  %1892 = vmatprep.mubr.f32.mxu0 0.0
  %v1893 = vand.u32 %v518, 4294901760
  %1894 = vmatmul.mubr.f32.gmra.mrb[0].mxu0 %v1893
  %v1895 = vpop.f32.mrb[0].mxu0
  %v1896 = vadd.f32 %v1699, %v1895
  %v1897 = vpop.f32.mrb[0].mxu0
  %1898 = vmatprep.mubr.f32.mxu0 0.0
  %v1899 = vand.u32 %v523, 4294901760
  %1900 = vmatmul.mubr.f32.gmra.mrb[0].mxu0 %v1899
  %v1901 = vpop.f32.mrb[0].mxu0
  %v1902 = vadd.f32 %v1705, %v1901
  %v1903 = vpop.f32.mrb[0].mxu0
  %1904 = vmatprep.mubr.f32.mxu0 0.0
  %v1905 = vand.u32 %v526, 4294901760
  %1906 = vmatmul.mubr.f32.gmra.mrb[0].mxu0 %v1905
  %v1907 = vpop.f32.mrb[0].mxu0
  %v1908 = vadd.f32 %v1711, %v1907
  %v1909 = vpop.f32.mrb[0].mxu0
  %1910 = vmatprep.mubr.f32.mxu0 0.0
  %v1911 = vand.u32 %v531, 4294901760
  %1912 = vmatmul.mubr.f32.gmra.mrb[0].mxu0 %v1911
  %v1913 = vpop.f32.mrb[0].mxu0
  %v1914 = vadd.f32 %v1717, %v1913
  %v1915 = vpop.f32.mrb[0].mxu0
  %1916 = vmatprep.mubr.f32.mxu0 0.0
  %v1917 = vand.u32 %v534, 4294901760
  %1918 = vmatmul.mubr.f32.gmra.mrb[0].mxu0 %v1917
  %v1919 = vpop.f32.mrb[0].mxu0
  %v1920 = vadd.f32 %v1723, %v1919
  %v1921 = vpop.f32.mrb[0].mxu0
  %1922 = vmatprep.mubr.f32.mxu0 0.0
  %v1923 = vand.u32 %v539, 4294901760
  %1924 = vmatmul.mubr.f32.gmra.mrb[0].mxu0 %v1923
  %v1925 = vpop.f32.mrb[0].mxu0
  %v1926 = vadd.f32 %v1729, %v1925
  %v1927 = vpop.f32.mrb[0].mxu0
  %1928 = vmatprep.mubr.f32.mxu0 0.0
  %v1929 = vand.u32 %v542, 4294901760
  %1930 = vmatmul.mubr.f32.gmra.mrb[0].mxu0 %v1929
  %v1931 = vpop.f32.mrb[0].mxu0
  %v1932 = vadd.f32 %v1735, %v1931
  %v1933 = vpop.f32.mrb[0].mxu0
  %1934 = vmatprep.mubr.f32.mxu0 0.0
  %v1935 = vand.u32 %v547, 4294901760
  %1936 = vmatmul.mubr.f32.gmra.mrb[0].mxu0 %v1935
  %v1937 = vpop.f32.mrb[0].mxu0
  %v1938 = vadd.f32 %v1741, %v1937
  %v1939 = vpop.f32.mrb[0].mxu0
  %1940 = vmatprep.mubr.f32.mxu0 0.0
  %v1941 = vand.u32 %v550, 4294901760
  %1942 = vmatmul.mubr.f32.gmra.mrb[0].mxu0 %v1941
  %v1943 = vpop.f32.mrb[0].mxu0
  %v1944 = vadd.f32 %v1747, %v1943
  %v1945 = vpop.f32.mrb[0].mxu0
  %1946 = vmatprep.mubr.f32.mxu0 0.0
  %v1947 = vand.u32 %v555, 4294901760
  %1948 = vmatmul.mubr.f32.gmra.mrb[0].mxu0 %v1947
  %v1949 = vpop.f32.mrb[0].mxu0
  %v1950 = vadd.f32 %v1753, %v1949
  %v1951 = vpop.f32.mrb[0].mxu0
  %1952 = vmatprep.mubr.f32.mxu0 0.0
  %v1953 = vand.u32 %v560, 4294901760
  %1954 = vmatmul.mubr.f32.gmra.mrb[0].mxu0 %v1953
  %v1955 = vpop.f32.mrb[0].mxu0
  %v1956 = vadd.f32 %v1759, %v1955
  %v1957 = vpop.f32.mrb[0].mxu0
  %1958 = vmatprep.mubr.f32.mxu0 0.0
  %v1959 = vand.u32 %v561, 4294901760
  %1960 = vmatmul.mubr.f32.gmra.mrb[0].mxu0 %v1959
  %v1961 = vpop.f32.mrb[0].mxu0
  %v1962 = vadd.f32 %v1765, %v1961
  %v1963 = vpop.f32.mrb[0].mxu0
  %1964 = vmatprep.mubr.f32.mxu0 0.0
  %v1965 = vand.u32 %v562, 4294901760
  %1966 = vmatmul.mubr.f32.gmra.mrb[0].mxu0 %v1965
  %v1967 = vpop.f32.mrb[0].mxu0
  %v1968 = vadd.f32 %v1771, %v1967
  %v1969 = vpop.f32.mrb[0].mxu0
  %1970 = vmatprep.mubr.f32.mxu0 0.0
  %v1971 = vand.u32 %v563, 4294901760
  %1972 = vmatmul.mubr.f32.gmra.mrb[0].mxu0 %v1971
  %v1973 = vpop.f32.mrb[0].mxu0
  %v1974 = vadd.f32 %v1777, %v1973
  %v1975 = vpop.f32.mrb[0].mxu0
  %1976 = vmatprep.mubr.f32.mxu0 0.0
  %v1977 = vand.u32 %v564, 4294901760
  %1978 = vmatmul.mubr.f32.gmra.mrb[0].mxu0 %v1977
  %v1979 = vpop.f32.mrb[0].mxu0
  %v1980 = vadd.f32 %v1783, %v1979
  %v1981 = vpop.f32.mrb[0].mxu0
  %1982 = vmatprep.mubr.f32.mxu0 0.0
  %v1983 = vand.u32 %v565, 4294901760
  %1984 = vmatmul.mubr.f32.gmra.mrb[0].mxu0 %v1983
  %v1985 = vpop.f32.mrb[0].mxu0
  %v1986 = vadd.f32 %v1789, %v1985
  %v1987 = vpop.f32.mrb[0].mxu0
  %1988 = vmatprep.mubr.f32.mxu0 0.0
  %v1989 = vand.u32 %v566, 4294901760
  %1990 = vmatmul.mubr.f32.gmra.mrb[0].mxu0 %v1989
  %v1991 = vpop.f32.mrb[0].mxu0
  %v1992 = vadd.f32 %v1795, %v1991
  %v1993 = vpop.f32.mrb[0].mxu0
  %1994 = vmatprep.mubr.f32.mxu0 0.0
  %v1995 = vand.u32 %v567, 4294901760
  %1996 = vmatmul.mubr.f32.gmra.mrb[0].mxu0 %v1995
  %v1997 = vpop.f32.mrb[0].mxu0
  %v1998 = vadd.f32 %v1801, %v1997
  %v1999 = vpop.f32.mrb[0].mxu0
  %2000 = vmatprep.mubr.f32.mxu0 0.0
  %v2001 = vand.u32 %v568, 4294901760
  %2002 = vmatmul.mubr.f32.gmra.mrb[0].mxu0 %v2001
  %v2003 = vpop.f32.mrb[0].mxu0
  %v2004 = vadd.f32 %v1807, %v2003
  %v2005 = vpop.f32.mrb[0].mxu0
  %2006 = vmatprep.mubr.f32.mxu0 0.0
  %v2007 = vand.u32 %v569, 4294901760
  %2008 = vmatmul.mubr.f32.gmra.mrb[0].mxu0 %v2007
  %v2009 = vpop.f32.mrb[0].mxu0
  %v2010 = vadd.f32 %v1813, %v2009
  %v2011 = vpop.f32.mrb[0].mxu0
  %2012 = vmatprep.mubr.f32.mxu0 0.0
  %v2013 = vand.u32 %v570, 4294901760
  %2014 = vmatmul.mubr.f32.gmra.mrb[0].mxu0 %v2013
  %v2015 = vpop.f32.mrb[0].mxu0
  %v2016 = vadd.f32 %v1819, %v2015
  %v2017 = vpop.f32.mrb[0].mxu0
  %2018 = vdwg.mxu0
  %v2019 = vmul.f32 %v1890, 0.25
  %v2020 = vmul.f32 %v1896, 0.25
  %v2021 = vmul.f32 %v1902, 0.25
  %v2022 = vmul.f32 %v1908, 0.25
  %v2023 = vmul.f32 %v1914, 0.25
  %v2024 = vmul.f32 %v1920, 0.25
  %v2025 = vmul.f32 %v1926, 0.25
  %v2026 = vmul.f32 %v1932, 0.25
  %v2027 = vmul.f32 %v1938, 0.25
  %v2028 = vmul.f32 %v1944, 0.25
  %v2029 = vmul.f32 %v1950, 0.25
  %v2030 = vmul.f32 %v1956, 0.25
  %v2031 = vmul.f32 %v1962, 0.25
  %v2032 = vmul.f32 %v1968, 0.25
  %v2033 = vmul.f32 %v1974, 0.25
  %v2034 = vmul.f32 %v1980, 0.25
  %v2035 = vmul.f32 %v1986, 0.25
  %v2036 = vmul.f32 %v1992, 0.25
  %v2037 = vmul.f32 %v1998, 0.25
  %v2038 = vmul.f32 %v2004, 0.25
  %v2039 = vmul.f32 %v2010, 0.25
  %v2040 = vmul.f32 %v2016, 0.25
  %v2041 = vmul.f32 %v2019, %v2019
  %v2042 = vmul.f32 %v2020, %v2020
  %v2043 = vmul.f32 %v2021, %v2021
  %v2044 = vmul.f32 %v2022, %v2022
  %v2045 = vmul.f32 %v2023, %v2023
  %v2046 = vmul.f32 %v2024, %v2024
  %v2047 = vmul.f32 %v2025, %v2025
  %v2048 = vmul.f32 %v2026, %v2026
  %v2049 = vmul.f32 %v2027, %v2027
  %v2050 = vmul.f32 %v2028, %v2028
  %v2051 = vmul.f32 %v2029, %v2029
  %v2052 = vsub.f32 %v2030, %v2041
  %v2053 = vsub.f32 %v2031, %v2042
  %v2054 = vsub.f32 %v2032, %v2043
  %v2055 = vsub.f32 %v2033, %v2044
  %v2056 = vsub.f32 %v2034, %v2045
  %v2057 = vsub.f32 %v2035, %v2046
  %v2058 = vsub.f32 %v2036, %v2047
  %v2059 = vsub.f32 %v2037, %v2048
  %v2060 = vsub.f32 %v2038, %v2049
  %v2061 = vsub.f32 %v2039, %v2050
  %v2062 = vsub.f32 %v2040, %v2051
  %v2063 = vmax.f32 %v2052, 0.0
  %v2064 = vmax.f32 %v2053, 0.0
  %v2065 = vmax.f32 %v2054, 0.0
  %v2066 = vmax.f32 %v2055, 0.0
  %v2067 = vmax.f32 %v2056, 0.0
  %v2068 = vmax.f32 %v2057, 0.0
  %v2069 = vmax.f32 %v2058, 0.0
  %v2070 = vmax.f32 %v2059, 0.0
  %v2071 = vmax.f32 %v2060, 0.0
  %v2072 = vmax.f32 %v2061, 0.0
  %v2073 = vmax.f32 %v2062, 0.0
  %v2074 = vld [vmem:[%s3] sm:$0xff]
  %v2075 = vld [vmem:[%s3 + $0x8] sm:$0xff]
  %v2076 = vld [vmem:[%s3 + $0x10] sm:$0xff]
  %v2077 = vld [vmem:[%s3 + $0x18] sm:$0xff]
  %v2078 = vld [vmem:[%s3 + $0x20] sm:$0xff]
  %v2079 = vld [vmem:[%s3 + $0x28] sm:$0xff]
  %v2080 = vld [vmem:[%s3 + $0x30] sm:$0xff]
  %v2081 = vld [vmem:[%s3 + $0x38] sm:$0xff]
  %v2082 = vld [vmem:[%s3 + $0x40] sm:$0xff]
  %v2083 = vld [vmem:[%s3 + $0x48] sm:$0xff]
  %v2084 = vld [vmem:[%s3 + $0x50] sm:$0xff]
  %v2085 = vadd.f32 %v2063, 1e-05
  %v2086 = vadd.f32 %v2064, 1e-05
  %v2087 = vadd.f32 %v2065, 1e-05
  %v2088 = vadd.f32 %v2066, 1e-05
  %v2089 = vadd.f32 %v2067, 1e-05
  %v2090 = vadd.f32 %v2068, 1e-05
  %v2091 = vadd.f32 %v2069, 1e-05
  %v2092 = vadd.f32 %v2070, 1e-05
  %v2093 = vadd.f32 %v2071, 1e-05
  %v2094 = vadd.f32 %v2072, 1e-05
  %v2095 = vadd.f32 %v2073, 1e-05
  %v2096 = vrsqrt.pop %v2085
  %v2097 = vrsqrt.pop %v2086
  %v2098 = vrsqrt.pop %v2087
  %v2099 = vrsqrt.pop %v2088
  %v2100 = vrsqrt.pop %v2089
  %v2101 = vrsqrt.pop %v2090
  %v2102 = vrsqrt.pop %v2091
  %v2103 = vrsqrt.pop %v2092
  %v2104 = vrsqrt.pop %v2093
  %v2105 = vrsqrt.pop %v2094
  %v2106 = vrsqrt.pop %v2095
  %v2107 = vmul.f32 %v2074, %v2096
  %v2108 = vmul.f32 %v2075, %v2097
  %v2109 = vmul.f32 %v2076, %v2098
  %v2110 = vmul.f32 %v2077, %v2099
  %v2111 = vmul.f32 %v2078, %v2100
  %v2112 = vmul.f32 %v2079, %v2101
  %v2113 = vmul.f32 %v2080, %v2102
  %v2114 = vmul.f32 %v2081, %v2103
  %v2115 = vmul.f32 %v2082, %v2104
  %v2116 = vmul.f32 %v2083, %v2105
  %v2117 = vmul.f32 %v2084, %v2106
  %v2118 = vld [vmem:[%s4] sm:$0xff]
  %v2119 = vld [vmem:[%s4 + $0x8] sm:$0xff]
  %v2120 = vld [vmem:[%s4 + $0x10] sm:$0xff]
  %v2121 = vld [vmem:[%s4 + $0x18] sm:$0xff]
  %v2122 = vld [vmem:[%s4 + $0x20] sm:$0xff]
  %v2123 = vld [vmem:[%s4 + $0x28] sm:$0xff]
  %v2124 = vld [vmem:[%s4 + $0x30] sm:$0xff]
  %v2125 = vld [vmem:[%s4 + $0x38] sm:$0xff]
  %v2126 = vld [vmem:[%s4 + $0x40] sm:$0xff]
  %v2127 = vld [vmem:[%s4 + $0x48] sm:$0xff]
  %v2128 = vld [vmem:[%s4 + $0x50] sm:$0xff]
  %v2129 = vmul.f32 %v2019, %v2107
  %v2130 = vmul.f32 %v2020, %v2108
  %v2131 = vmul.f32 %v2021, %v2109
  %v2132 = vmul.f32 %v2022, %v2110
  %v2133 = vmul.f32 %v2023, %v2111
  %v2134 = vmul.f32 %v2024, %v2112
  %v2135 = vmul.f32 %v2025, %v2113
  %v2136 = vmul.f32 %v2026, %v2114
  %v2137 = vmul.f32 %v2027, %v2115
  %v2138 = vmul.f32 %v2028, %v2116
  %v2139 = vmul.f32 %v2029, %v2117
  %v2140 = vsub.f32 %v2118, %v2129
  %v2141 = vsub.f32 %v2119, %v2130
  %v2142 = vsub.f32 %v2120, %v2131
  %v2143 = vsub.f32 %v2121, %v2132
  %v2144 = vsub.f32 %v2122, %v2133
  %v2145 = vsub.f32 %v2123, %v2134
  %v2146 = vsub.f32 %v2124, %v2135
  %v2147 = vsub.f32 %v2125, %v2136
  %v2148 = vsub.f32 %v2126, %v2137
  %v2149 = vsub.f32 %v2127, %v2138
  %v2150 = vsub.f32 %v2128, %v2139
  %vm2151 = vcmask 162816
  %v2153 = vsel %vm2151, %v2107, 0
  %v2156 = vsel %vm2151, %v2108, 0
  %v2159 = vsel %vm2151, %v2109, 0
  %v2162 = vsel %vm2151, %v2110, 0
  %v2165 = vsel %vm2151, %v2111, 0
  %v2168 = vsel %vm2151, %v2112, 0
  %v2171 = vsel %vm2151, %v2113, 0
  %v2174 = vsel %vm2151, %v2114, 0
  %v2177 = vsel %vm2151, %v2115, 0
  %v2180 = vsel %vm2151, %v2116, 0
  %v2183 = vsel %vm2151, %v2117, 0
  %v2186 = vsel %vm2151, %v2140, 0
  %v2189 = vsel %vm2151, %v2141, 0
  %v2192 = vsel %vm2151, %v2142, 0
  %v2195 = vsel %vm2151, %v2143, 0
  %v2198 = vsel %vm2151, %v2144, 0
  %v2201 = vsel %vm2151, %v2145, 0
  %v2204 = vsel %vm2151, %v2146, 0
  %v2207 = vsel %vm2151, %v2147, 0
  %v2210 = vsel %vm2151, %v2148, 0
  %v2213 = vsel %vm2151, %v2149, 0
  %v2216 = vsel %vm2151, %v2150, 0
  %v2219 = vsel %vm476, %v250, 0
  %2221 = vmatprep.subr.mxu0 0.0
  %2222 = vmatpush1.msra.mxu0 %v248
  %2223 = vmatprep.subr.mxu0 0.0
  %2224 = vmatpush1.msra.mxu0 %v249
  %2225 = vmatprep.subr.mxu0 0.0
  %2226 = vmatpush1.msra.mxu0 %v2219
  %2227 = vmatprep.subr.mxu0 0.0
  %2228 = vmatpush1.msra.mxu0 0.0
  %2229 = vmatprep.subr.mxu0 0.0
  %2230 = vmatpush1.msra.mxu0 0.0
  %2231 = vmatprep.subr.mxu0 0.0
  %2232 = vmatpush1.msra.mxu0 0.0
  %2233 = vmatprep.subr.mxu0 0.0
  %2234 = vmatpush1.msra.mxu0 0.0
  %2235 = vmatprep.subr.mxu0 0.0
  %2236 = vmatpush1.msra.mxu0 0.0
  %2237 = vmatprep.subr.mxu0 0.0
  %2238 = vmatpush1.msra.mxu0 0.0
  %2239 = vmatprep.subr.mxu0 0.0
  %2240 = vmatpush1.msra.mxu0 0.0
  %2241 = vmatprep.subr.mxu0 0.0
  %2242 = vmatpush1.msra.mxu0 0.0
  %2243 = vmatprep.subr.mxu0 0.0
  %2244 = vmatpush1.msra.mxu0 0.0
  %2245 = vmatprep.subr.mxu0 0.0
  %2246 = vmatpush1.msra.mxu0 0.0
  %2247 = vmatprep.subr.mxu0 0.0
  %2248 = vmatpush1.msra.mxu0 0.0
  %2249 = vmatprep.subr.mxu0 0.0
  %2250 = vmatpush1.msra.mxu0 0.0
  %2251 = vmatprep.subr.mxu0 0.0
  %2252 = vmatpush1.msra.mxu0 0.0
  %2253 = vmatprep.subr.mxu0 0.0
  %2254 = vmatpush1.msra.mxu0 0.0
  %2255 = vmatprep.subr.mxu0 0.0
  %2256 = vmatpush1.msra.mxu0 0.0
  %2257 = vmatprep.subr.mxu0 0.0
  %2258 = vmatpush1.msra.mxu0 0.0
  %2259 = vmatprep.subr.mxu0 0.0
  %2260 = vmatpush1.msra.mxu0 0.0
  %2261 = vmatprep.subr.mxu0 0.0
  %2262 = vmatpush1.msra.mxu0 0.0
  %2263 = vmatprep.subr.mxu0 0.0
  %2264 = vmatpush1.msra.mxu0 0.0
  %2265 = vmatprep.subr.mxu0 0.0
  %2266 = vmatpush1.msra.mxu0 0.0
  %2267 = vmatprep.subr.mxu0 0.0
  %2268 = vmatpush1.msra.mxu0 0.0
  %2269 = vmatprep.subr.mxu0 0.0
  %2270 = vmatpush1.msra.mxu0 0.0
  %2271 = vmatprep.subr.mxu0 0.0
  %2272 = vmatpush1.msra.mxu0 0.0
  %2273 = vmatprep.subr.mxu0 0.0
  %2274 = vmatpush1.msra.mxu0 0.0
  %2275 = vmatprep.subr.mxu0 0.0
  %2276 = vmatpush1.msra.mxu0 0.0
  %2277 = vmatprep.subr.mxu0 0.0
  %2278 = vmatpush1.msra.mxu0 0.0
  %2279 = vmatprep.subr.mxu0 0.0
  %2280 = vmatpush1.msra.mxu0 0.0
  %2281 = vmatprep.subr.mxu0 0.0
  %2282 = vmatpush1.msra.mxu0 0.0
  %2283 = vmatprep.subr.mxu0 0.0
  %2284 = vmatpush1.msra.mxu0 0.0
  %2285 = vmatprep.mubr.f32.mxu0 0.0
  %2286 = vmatmul.mubr.f32.gmra.mrb[0].mxu0 %v2153
  %v2287 = vpop.f32.mrb[0].mxu0
  %v2288 = vadd.f32 0.0, %v2287
  %v2289 = vpop.f32.mrb[0].mxu0
  %2290 = vmatprep.mubr.f32.mxu0 0.0
  %2291 = vmatmul.mubr.f32.gmra.mrb[0].mxu0 %v2156
  %v2292 = vpop.f32.mrb[0].mxu0
  %v2293 = vadd.f32 0.0, %v2292
  %v2294 = vpop.f32.mrb[0].mxu0
  %2295 = vmatprep.mubr.f32.mxu0 0.0
  %2296 = vmatmul.mubr.f32.gmra.mrb[0].mxu0 %v2159
  %v2297 = vpop.f32.mrb[0].mxu0
  %v2298 = vadd.f32 0.0, %v2297
  %v2299 = vpop.f32.mrb[0].mxu0
  %2300 = vmatprep.mubr.f32.mxu0 0.0
  %2301 = vmatmul.mubr.f32.gmra.mrb[0].mxu0 %v2162
  %v2302 = vpop.f32.mrb[0].mxu0
  %v2303 = vadd.f32 0.0, %v2302
  %v2304 = vpop.f32.mrb[0].mxu0
  %2305 = vmatprep.mubr.f32.mxu0 0.0
  %2306 = vmatmul.mubr.f32.gmra.mrb[0].mxu0 %v2165
  %v2307 = vpop.f32.mrb[0].mxu0
  %v2308 = vadd.f32 0.0, %v2307
  %v2309 = vpop.f32.mrb[0].mxu0
  %2310 = vmatprep.mubr.f32.mxu0 0.0
  %2311 = vmatmul.mubr.f32.gmra.mrb[0].mxu0 %v2168
  %v2312 = vpop.f32.mrb[0].mxu0
  %v2313 = vadd.f32 0.0, %v2312
  %v2314 = vpop.f32.mrb[0].mxu0
  %2315 = vmatprep.mubr.f32.mxu0 0.0
  %2316 = vmatmul.mubr.f32.gmra.mrb[0].mxu0 %v2171
  %v2317 = vpop.f32.mrb[0].mxu0
  %v2318 = vadd.f32 0.0, %v2317
  %v2319 = vpop.f32.mrb[0].mxu0
  %2320 = vmatprep.mubr.f32.mxu0 0.0
  %2321 = vmatmul.mubr.f32.gmra.mrb[0].mxu0 %v2174
  %v2322 = vpop.f32.mrb[0].mxu0
  %v2323 = vadd.f32 0.0, %v2322
  %v2324 = vpop.f32.mrb[0].mxu0
  %2325 = vmatprep.mubr.f32.mxu0 0.0
  %2326 = vmatmul.mubr.f32.gmra.mrb[0].mxu0 %v2177
  %v2327 = vpop.f32.mrb[0].mxu0
  %v2328 = vadd.f32 0.0, %v2327
  %v2329 = vpop.f32.mrb[0].mxu0
  %2330 = vmatprep.mubr.f32.mxu0 0.0
  %2331 = vmatmul.mubr.f32.gmra.mrb[0].mxu0 %v2180
  %v2332 = vpop.f32.mrb[0].mxu0
  %v2333 = vadd.f32 0.0, %v2332
  %v2334 = vpop.f32.mrb[0].mxu0
  %2335 = vmatprep.mubr.f32.mxu0 0.0
  %2336 = vmatmul.mubr.f32.gmra.mrb[0].mxu0 %v2183
  %v2337 = vpop.f32.mrb[0].mxu0
  %v2338 = vadd.f32 0.0, %v2337
  %v2339 = vpop.f32.mrb[0].mxu0
  %2340 = vmatprep.mubr.f32.mxu0 0.0
  %2341 = vmatmul.mubr.f32.gmra.mrb[0].mxu0 %v2186
  %v2342 = vpop.f32.mrb[0].mxu0
  %v2343 = vadd.f32 0.0, %v2342
  %v2344 = vpop.f32.mrb[0].mxu0
  %2345 = vmatprep.mubr.f32.mxu0 0.0
  %2346 = vmatmul.mubr.f32.gmra.mrb[0].mxu0 %v2189
  %v2347 = vpop.f32.mrb[0].mxu0
  %v2348 = vadd.f32 0.0, %v2347
  %v2349 = vpop.f32.mrb[0].mxu0
  %2350 = vmatprep.mubr.f32.mxu0 0.0
  %2351 = vmatmul.mubr.f32.gmra.mrb[0].mxu0 %v2192
  %v2352 = vpop.f32.mrb[0].mxu0
  %v2353 = vadd.f32 0.0, %v2352
  %v2354 = vpop.f32.mrb[0].mxu0
  %2355 = vmatprep.mubr.f32.mxu0 0.0
  %2356 = vmatmul.mubr.f32.gmra.mrb[0].mxu0 %v2195
  %v2357 = vpop.f32.mrb[0].mxu0
  %v2358 = vadd.f32 0.0, %v2357
  %v2359 = vpop.f32.mrb[0].mxu0
  %2360 = vmatprep.mubr.f32.mxu0 0.0
  %2361 = vmatmul.mubr.f32.gmra.mrb[0].mxu0 %v2198
  %v2362 = vpop.f32.mrb[0].mxu0
  %v2363 = vadd.f32 0.0, %v2362
  %v2364 = vpop.f32.mrb[0].mxu0
  %2365 = vmatprep.mubr.f32.mxu0 0.0
  %2366 = vmatmul.mubr.f32.gmra.mrb[0].mxu0 %v2201
  %v2367 = vpop.f32.mrb[0].mxu0
  %v2368 = vadd.f32 0.0, %v2367
  %v2369 = vpop.f32.mrb[0].mxu0
  %2370 = vmatprep.mubr.f32.mxu0 0.0
  %2371 = vmatmul.mubr.f32.gmra.mrb[0].mxu0 %v2204
  %v2372 = vpop.f32.mrb[0].mxu0
  %v2373 = vadd.f32 0.0, %v2372
  %v2374 = vpop.f32.mrb[0].mxu0
  %2375 = vmatprep.mubr.f32.mxu0 0.0
  %2376 = vmatmul.mubr.f32.gmra.mrb[0].mxu0 %v2207
  %v2377 = vpop.f32.mrb[0].mxu0
  %v2378 = vadd.f32 0.0, %v2377
  %v2379 = vpop.f32.mrb[0].mxu0
  %2380 = vmatprep.mubr.f32.mxu0 0.0
  %2381 = vmatmul.mubr.f32.gmra.mrb[0].mxu0 %v2210
  %v2382 = vpop.f32.mrb[0].mxu0
  %v2383 = vadd.f32 0.0, %v2382
  %v2384 = vpop.f32.mrb[0].mxu0
  %2385 = vmatprep.mubr.f32.mxu0 0.0
  %2386 = vmatmul.mubr.f32.gmra.mrb[0].mxu0 %v2213
  %v2387 = vpop.f32.mrb[0].mxu0
  %v2388 = vadd.f32 0.0, %v2387
  %v2389 = vpop.f32.mrb[0].mxu0
  %2390 = vmatprep.mubr.f32.mxu0 0.0
  %2391 = vmatmul.mubr.f32.gmra.mrb[0].mxu0 %v2216
  %v2392 = vpop.f32.mrb[0].mxu0
  %v2393 = vadd.f32 0.0, %v2392
  %v2394 = vpop.f32.mrb[0].mxu0
  %2395 = vdwg.mxu0
  %v2396 = vmul.f32 %v515, %v2288
  %v2397 = vmul.f32 %v518, %v2293
  %v2398 = vmul.f32 %v523, %v2298
  %v2399 = vmul.f32 %v526, %v2303
  %v2400 = vmul.f32 %v531, %v2308
  %v2401 = vmul.f32 %v534, %v2313
  %v2402 = vmul.f32 %v539, %v2318
  %v2403 = vmul.f32 %v542, %v2323
  %v2404 = vmul.f32 %v547, %v2328
  %v2405 = vmul.f32 %v550, %v2333
  %v2406 = vmul.f32 %v555, %v2338
  %v2407 = vadd.f32 %v2396, %v2343
  %v2408 = vadd.f32 %v2397, %v2348
  %v2409 = vadd.f32 %v2398, %v2353
  %v2410 = vadd.f32 %v2399, %v2358
  %v2411 = vadd.f32 %v2400, %v2363
  %v2412 = vadd.f32 %v2401, %v2368
  %v2413 = vadd.f32 %v2402, %v2373
  %v2414 = vadd.f32 %v2403, %v2378
  %v2415 = vadd.f32 %v2404, %v2383
  %v2416 = vadd.f32 %v2405, %v2388
  %v2417 = vadd.f32 %v2406, %v2393
  %v2418 = vtanh.pop %v2407
  %v2419 = vtanh.pop %v2408
  %v2420 = vtanh.pop %v2409
  %v2421 = vtanh.pop %v2410
  %v2422 = vtanh.pop %v2411
  %v2423 = vtanh.pop %v2412
  %v2424 = vtanh.pop %v2413
  %v2425 = vtanh.pop %v2414
  %v2426 = vtanh.pop %v2415
  %v2427 = vtanh.pop %v2416
  %v2428 = vtanh.pop %v2417
  %v2429 = vpack.c.bf16 %v2419, %v2418
  %v2430 = vpack.c.bf16 %v2421, %v2420
  %v2431 = vpack.c.bf16 %v2423, %v2422
  %v2432 = vpack.c.bf16 %v2425, %v2424
  %v2433 = vpack.c.bf16 %v2427, %v2426
  %v2434 = vpack.c.bf16 %v2428, %v2428
  %v2435 = vld [vmem:[%s6] sm:$0xf]
  %v2436 = vld [vmem:[%s6 + $0x4] sm:$0xf]
  %v2437 = vld [vmem:[%s6 + $0x8] sm:$0xf]
  %v2438 = vld [vmem:[%s6 + $0xc] sm:$0xf]
  %v2439 = vld [vmem:[%s6 + $0x10] sm:$0xf]
  %v2440 = vld [vmem:[%s6 + $0x14] sm:$0xf]
  %v2441 = vld [vmem:[%s6 + $0x18] sm:$0xf]
  %v2442 = vld [vmem:[%s6 + $0x1c] sm:$0xf]
  %v2443 = vld [vmem:[%s6 + $0x20] sm:$0xf]
  %v2444 = vld [vmem:[%s6 + $0x24] sm:$0xf]
  %v2445 = vld [vmem:[%s6 + $0x28] sm:$0xf]
  %v2446 = vld [vmem:[%s6 + $0x2c] sm:$0xf]
  %v2447 = vld [vmem:[%s6 + $0x30] sm:$0xf]
  %v2448 = vld [vmem:[%s6 + $0x34] sm:$0xf]
  %v2449 = vld [vmem:[%s6 + $0x38] sm:$0xf]
  %v2450 = vld [vmem:[%s6 + $0x3c] sm:$0xf]
  %v2467 = vunpack.c.l.b16 %v2435
  %v2468 = vunpack.c.l.b16 %v2436
  %v2469 = vunpack.c.l.b16 %v2437
  %v2470 = vunpack.c.l.b16 %v2438
  %v2471 = vunpack.c.l.b16 %v2439
  %v2472 = vunpack.c.l.b16 %v2440
  %v2473 = vunpack.c.l.b16 %v2441
  %v2474 = vunpack.c.l.b16 %v2442
  %v2475 = vunpack.c.l.b16 %v2443
  %v2476 = vunpack.c.l.b16 %v2444
  %v2477 = vunpack.c.l.b16 %v2445
  %v2478 = vunpack.c.l.b16 %v2446
  %v2479 = vunpack.c.l.b16 %v2447
  %v2480 = vunpack.c.l.b16 %v2448
  %v2481 = vunpack.c.l.b16 %v2449
  %v2482 = vunpack.c.l.b16 %v2450
  %v2483 = vpack.c.b16 %v2468, %v2467
  %v2484 = vpack.c.b16 %v2470, %v2469
  %v2485 = vpack.c.b16 %v2472, %v2471
  %v2486 = vpack.c.b16 %v2474, %v2473
  %v2487 = vpack.c.b16 %v2476, %v2475
  %v2488 = vpack.c.b16 %v2478, %v2477
  %v2489 = vpack.c.b16 %v2480, %v2479
  %v2490 = vpack.c.b16 %v2482, %v2481
  %2499 = vmatprep.subr.bf16.mxu0 0
  %2500 = vmatpush1.bf16.msra.mxu0 %v2483
  %2501 = vmatprep.subr.bf16.mxu0 0
  %2502 = vmatpush1.bf16.msra.mxu0 %v2484
  %2503 = vmatprep.subr.bf16.mxu0 0
  %2504 = vmatpush1.bf16.msra.mxu0 %v2485
  %2505 = vmatprep.subr.bf16.mxu0 0
  %2506 = vmatpush1.bf16.msra.mxu0 %v2486
  %2507 = vmatprep.subr.bf16.mxu0 0
  %2508 = vmatpush1.bf16.msra.mxu0 %v2487
  %2509 = vmatprep.subr.bf16.mxu0 0
  %2510 = vmatpush1.bf16.msra.mxu0 %v2488
  %2511 = vmatprep.subr.bf16.mxu0 0
  %2512 = vmatpush1.bf16.msra.mxu0 %v2489
  %2513 = vmatprep.subr.bf16.mxu0 0
  %2514 = vmatpush1.bf16.msra.mxu0 %v2490
  %2515 = vmatprep.subr.bf16.mxu0 0
  %2516 = vmatpush1.bf16.msra.mxu0 0
  %2517 = vmatprep.subr.bf16.mxu0 0
  %2518 = vmatpush1.bf16.msra.mxu0 0
  %2519 = vmatprep.subr.bf16.mxu0 0
  %2520 = vmatpush1.bf16.msra.mxu0 0
  %2521 = vmatprep.subr.bf16.mxu0 0
  %2522 = vmatpush1.bf16.msra.mxu0 0
  %2523 = vmatprep.subr.bf16.mxu0 0
  %2524 = vmatpush1.bf16.msra.mxu0 0
  %2525 = vmatprep.subr.bf16.mxu0 0
  %2526 = vmatpush1.bf16.msra.mxu0 0
  %2527 = vmatprep.subr.bf16.mxu0 0
  %2528 = vmatpush1.bf16.msra.mxu0 0
  %2529 = vmatprep.subr.bf16.mxu0 0
  %2530 = vmatpush1.bf16.msra.mxu0 0
  %2531 = vmatprep.mubr.bf16.mxu0 0
  %2532 = vmatmul.mubr.bf16.gmra.mrb[0].mxu0 %v2429
  %v2533 = vpop.f32.mrb[0].mxu0
  %v2534 = vadd.f32 0.0, %v2533
  %v2535 = vpop.f32.mrb[0].mxu0
  %v2536 = vpop.f32.mrb[0].mxu0
  %v2537 = vadd.f32 0.0, %v2536
  %v2538 = vpop.f32.mrb[0].mxu0
  %2539 = vmatprep.mubr.bf16.mxu0 0
  %2540 = vmatmul.mubr.bf16.gmra.mrb[0].mxu0 %v2430
  %v2541 = vpop.f32.mrb[0].mxu0
  %v2542 = vadd.f32 0.0, %v2541
  %v2543 = vpop.f32.mrb[0].mxu0
  %v2544 = vpop.f32.mrb[0].mxu0
  %v2545 = vadd.f32 0.0, %v2544
  %v2546 = vpop.f32.mrb[0].mxu0
  %2547 = vmatprep.mubr.bf16.mxu0 0
  %2548 = vmatmul.mubr.bf16.gmra.mrb[0].mxu0 %v2431
  %v2549 = vpop.f32.mrb[0].mxu0
  %v2550 = vadd.f32 0.0, %v2549
  %v2551 = vpop.f32.mrb[0].mxu0
  %v2552 = vpop.f32.mrb[0].mxu0
  %v2553 = vadd.f32 0.0, %v2552
  %v2554 = vpop.f32.mrb[0].mxu0
  %2555 = vmatprep.mubr.bf16.mxu0 0
  %2556 = vmatmul.mubr.bf16.gmra.mrb[0].mxu0 %v2432
  %v2557 = vpop.f32.mrb[0].mxu0
  %v2558 = vadd.f32 0.0, %v2557
  %v2559 = vpop.f32.mrb[0].mxu0
  %v2560 = vpop.f32.mrb[0].mxu0
  %v2561 = vadd.f32 0.0, %v2560
  %v2562 = vpop.f32.mrb[0].mxu0
  %2563 = vmatprep.mubr.bf16.mxu0 0
  %2564 = vmatmul.mubr.bf16.gmra.mrb[0].mxu0 %v2433
  %v2565 = vpop.f32.mrb[0].mxu0
  %v2566 = vadd.f32 0.0, %v2565
  %v2567 = vpop.f32.mrb[0].mxu0
  %v2568 = vpop.f32.mrb[0].mxu0
  %v2569 = vadd.f32 0.0, %v2568
  %v2570 = vpop.f32.mrb[0].mxu0
  %2571 = vmatprep.mubr.bf16.mxu0 0
  %2572 = vmatmul.mubr.bf16.gmra.mrb[0].mxu0 %v2434
  %v2573 = vpop.f32.mrb[0].mxu0
  %v2574 = vadd.f32 0.0, %v2573
  %v2575 = vpop.f32.mrb[0].mxu0
  %v2576 = vpop.f32.mrb[0].mxu0
  %v2577 = vpop.f32.mrb[0].mxu0
  %2578 = vdwg.mxu0
  %v2579 = vld [vmem:[%s5] sm:$0xf]
  %v2580 = vld [vmem:[%s5 + $0x4] sm:$0xf]
  %v2581 = vld [vmem:[%s5 + $0x8] sm:$0xf]
  %v2582 = vld [vmem:[%s5 + $0xc] sm:$0xf]
  %v2583 = vld [vmem:[%s5 + $0x10] sm:$0xf]
  %v2584 = vld [vmem:[%s5 + $0x14] sm:$0xf]
  %v2585 = vld [vmem:[%s5 + $0x18] sm:$0xf]
  %v2586 = vld [vmem:[%s5 + $0x1c] sm:$0xf]
  %v2587 = vld [vmem:[%s5 + $0x20] sm:$0xf]
  %v2588 = vld [vmem:[%s5 + $0x24] sm:$0xf]
  %v2589 = vld [vmem:[%s5 + $0x28] sm:$0xf]
  %v2590 = vpack.c.bf16 %v2537, %v2534
  %v2591 = vpack.c.bf16 %v2545, %v2542
  %v2592 = vpack.c.bf16 %v2553, %v2550
  %v2593 = vpack.c.bf16 %v2561, %v2558
  %v2594 = vpack.c.bf16 %v2569, %v2566
  %v2595 = vpack.c.bf16 %v2574, %v2574
  %v2607 = vunpack.c.l.b16 %v2579
  %v2608 = vunpack.c.l.b16 %v2580
  %v2609 = vunpack.c.l.b16 %v2581
  %v2610 = vunpack.c.l.b16 %v2582
  %v2611 = vunpack.c.l.b16 %v2583
  %v2612 = vunpack.c.l.b16 %v2584
  %v2613 = vunpack.c.l.b16 %v2585
  %v2614 = vunpack.c.l.b16 %v2586
  %v2615 = vunpack.c.l.b16 %v2587
  %v2616 = vunpack.c.l.b16 %v2588
  %v2617 = vunpack.c.l.b16 %v2589
  %v2618 = vpack.c.b16 %v2608, %v2607
  %v2619 = vpack.c.b16 %v2610, %v2609
  %v2620 = vpack.c.b16 %v2612, %v2611
  %v2621 = vpack.c.b16 %v2614, %v2613
  %v2622 = vpack.c.b16 %v2616, %v2615
  %v2623 = vpack.c.b16 %v2617, %v2617
  %v2625 = vsel %vm457, %v2618, 0
  %v2628 = vsel %vm457, %v2619, 0
  %v2631 = vsel %vm457, %v2620, 0
  %v2634 = vsel %vm457, %v2621, 0
  %v2637 = vsel %vm457, %v2622, 0
  %v2640 = vsel %vm457, %v2623, 0
  %v2643 = vsel %vm476, %v2595, 0
  %2645 = vmatprep.subr.bf16.mxu0 0
  %2646 = vmatpush1.bf16.msra.mxu0 %v2590
  %2647 = vmatprep.subr.bf16.mxu0 0
  %2648 = vmatpush1.bf16.msra.mxu0 %v2591
  %2649 = vmatprep.subr.bf16.mxu0 0
  %2650 = vmatpush1.bf16.msra.mxu0 %v2592
  %2651 = vmatprep.subr.bf16.mxu0 0
  %2652 = vmatpush1.bf16.msra.mxu0 %v2593
  %2653 = vmatprep.subr.bf16.mxu0 0
  %2654 = vmatpush1.bf16.msra.mxu0 %v2594
  %2655 = vmatprep.subr.bf16.mxu0 0
  %2656 = vmatpush1.bf16.msra.mxu0 %v2643
  %2657 = vmatprep.subr.bf16.mxu0 0
  %2658 = vmatpush1.bf16.msra.mxu0 0
  %2659 = vmatprep.subr.bf16.mxu0 0
  %2660 = vmatpush1.bf16.msra.mxu0 0
  %2661 = vmatprep.subr.bf16.mxu0 0
  %2662 = vmatpush1.bf16.msra.mxu0 0
  %2663 = vmatprep.subr.bf16.mxu0 0
  %2664 = vmatpush1.bf16.msra.mxu0 0
  %2665 = vmatprep.subr.bf16.mxu0 0
  %2666 = vmatpush1.bf16.msra.mxu0 0
  %2667 = vmatprep.subr.bf16.mxu0 0
  %2668 = vmatpush1.bf16.msra.mxu0 0
  %2669 = vmatprep.subr.bf16.mxu0 0
  %2670 = vmatpush1.bf16.msra.mxu0 0
  %2671 = vmatprep.subr.bf16.mxu0 0
  %2672 = vmatpush1.bf16.msra.mxu0 0
  %2673 = vmatprep.subr.bf16.mxu0 0
  %2674 = vmatpush1.bf16.msra.mxu0 0
  %2675 = vmatprep.subr.bf16.mxu0 0
  %2676 = vmatpush1.bf16.msra.mxu0 0
  %2677 = vmatprep.mubr.bf16.mxu0 0
  %2678 = vmatmul.mubr.bf16.gmra.mrb[0].mxu0 %v2625
  %v2679 = vpop.f32.mrb[0].mxu0
  %v2680 = vadd.f32 0.0, %v2679
  %v2681 = vpop.f32.mrb[0].mxu0
  %v2682 = vpop.f32.mrb[0].mxu0
  %v2683 = vadd.f32 0.0, %v2682
  %v2684 = vpop.f32.mrb[0].mxu0
  %2685 = vmatprep.mubr.bf16.mxu0 0
  %2686 = vmatmul.mubr.bf16.gmra.mrb[0].mxu0 %v2628
  %v2687 = vpop.f32.mrb[0].mxu0
  %v2688 = vadd.f32 0.0, %v2687
  %v2689 = vpop.f32.mrb[0].mxu0
  %v2690 = vpop.f32.mrb[0].mxu0
  %v2691 = vadd.f32 0.0, %v2690
  %v2692 = vpop.f32.mrb[0].mxu0
  %2693 = vmatprep.mubr.bf16.mxu0 0
  %2694 = vmatmul.mubr.bf16.gmra.mrb[0].mxu0 %v2631
  %v2695 = vpop.f32.mrb[0].mxu0
  %v2696 = vadd.f32 0.0, %v2695
  %v2697 = vpop.f32.mrb[0].mxu0
  %v2698 = vpop.f32.mrb[0].mxu0
  %v2699 = vadd.f32 0.0, %v2698
  %v2700 = vpop.f32.mrb[0].mxu0
  %2701 = vmatprep.mubr.bf16.mxu0 0
  %2702 = vmatmul.mubr.bf16.gmra.mrb[0].mxu0 %v2634
  %v2703 = vpop.f32.mrb[0].mxu0
  %v2704 = vadd.f32 0.0, %v2703
  %v2705 = vpop.f32.mrb[0].mxu0
  %v2706 = vpop.f32.mrb[0].mxu0
  %v2707 = vadd.f32 0.0, %v2706
  %v2708 = vpop.f32.mrb[0].mxu0
  %2709 = vmatprep.mubr.bf16.mxu0 0
  %2710 = vmatmul.mubr.bf16.gmra.mrb[0].mxu0 %v2637
  %v2711 = vpop.f32.mrb[0].mxu0
  %v2712 = vadd.f32 0.0, %v2711
  %v2713 = vpop.f32.mrb[0].mxu0
  %v2714 = vpop.f32.mrb[0].mxu0
  %v2715 = vadd.f32 0.0, %v2714
  %v2716 = vpop.f32.mrb[0].mxu0
  %2717 = vmatprep.mubr.bf16.mxu0 0
  %2718 = vmatmul.mubr.bf16.gmra.mrb[0].mxu0 %v2640
  %v2719 = vpop.f32.mrb[0].mxu0
  %v2720 = vadd.f32 0.0, %v2719
  %v2721 = vpop.f32.mrb[0].mxu0
  %v2722 = vpop.f32.mrb[0].mxu0
  %v2723 = vpop.f32.mrb[0].mxu0
  %2724 = vdwg.mxu0
  %v2725 = vmul.f32 %v2680, %v2680
  %v2726 = vmul.f32 %v2683, %v2683
  %v2727 = vmul.f32 %v2688, %v2688
  %v2728 = vmul.f32 %v2691, %v2691
  %v2729 = vmul.f32 %v2696, %v2696
  %v2730 = vmul.f32 %v2699, %v2699
  %v2731 = vmul.f32 %v2704, %v2704
  %v2732 = vmul.f32 %v2707, %v2707
  %v2733 = vmul.f32 %v2712, %v2712
  %v2734 = vmul.f32 %v2715, %v2715
  %v2735 = vmul.f32 %v2720, %v2720
  %2736 = vmatprep.subr.mxu0 0.0
  %2737 = vmatpush1.msra.mxu0 %v199
  %2738 = vmatprep.subr.mxu0 0.0
  %2739 = vmatpush1.msra.mxu0 %v200
  %2740 = vmatprep.subr.mxu0 0.0
  %2741 = vmatpush1.msra.mxu0 %v201
  %2742 = vmatprep.subr.mxu0 0.0
  %2743 = vmatpush1.msra.mxu0 %v202
  %2744 = vmatprep.subr.mxu0 0.0
  %2745 = vmatpush1.msra.mxu0 %v203
  %2746 = vmatprep.subr.mxu0 0.0
  %2747 = vmatpush1.msra.mxu0 %v204
  %2748 = vmatprep.subr.mxu0 0.0
  %2749 = vmatpush1.msra.mxu0 %v205
  %2750 = vmatprep.subr.mxu0 0.0
  %2751 = vmatpush1.msra.mxu0 %v206
  %2752 = vmatprep.subr.mxu0 0.0
  %2753 = vmatpush1.msra.mxu0 %v207
  %2754 = vmatprep.subr.mxu0 0.0
  %2755 = vmatpush1.msra.mxu0 %v208
  %2756 = vmatprep.subr.mxu0 0.0
  %2757 = vmatpush1.msra.mxu0 %v209
  %2758 = vmatprep.subr.mxu0 0.0
  %2759 = vmatpush1.msra.mxu0 %v210
  %2760 = vmatprep.subr.mxu0 0.0
  %2761 = vmatpush1.msra.mxu0 %v211
  %2762 = vmatprep.subr.mxu0 0.0
  %2763 = vmatpush1.msra.mxu0 %v212
  %2764 = vmatprep.subr.mxu0 0.0
  %2765 = vmatpush1.msra.mxu0 %v213
  %2766 = vmatprep.subr.mxu0 0.0
  %2767 = vmatpush1.msra.mxu0 %v214
  %2768 = vmatprep.subr.mxu0 0.0
  %2769 = vmatpush1.msra.mxu0 0.0
  %2770 = vmatprep.subr.mxu0 0.0
  %2771 = vmatpush1.msra.mxu0 0.0
  %2772 = vmatprep.subr.mxu0 0.0
  %2773 = vmatpush1.msra.mxu0 0.0
  %2774 = vmatprep.subr.mxu0 0.0
  %2775 = vmatpush1.msra.mxu0 0.0
  %2776 = vmatprep.subr.mxu0 0.0
  %2777 = vmatpush1.msra.mxu0 0.0
  %2778 = vmatprep.subr.mxu0 0.0
  %2779 = vmatpush1.msra.mxu0 0.0
  %2780 = vmatprep.subr.mxu0 0.0
  %2781 = vmatpush1.msra.mxu0 0.0
  %2782 = vmatprep.subr.mxu0 0.0
  %2783 = vmatpush1.msra.mxu0 0.0
  %2784 = vmatprep.subr.mxu0 0.0
  %2785 = vmatpush1.msra.mxu0 0.0
  %2786 = vmatprep.subr.mxu0 0.0
  %2787 = vmatpush1.msra.mxu0 0.0
  %2788 = vmatprep.subr.mxu0 0.0
  %2789 = vmatpush1.msra.mxu0 0.0
  %2790 = vmatprep.subr.mxu0 0.0
  %2791 = vmatpush1.msra.mxu0 0.0
  %2792 = vmatprep.subr.mxu0 0.0
  %2793 = vmatpush1.msra.mxu0 0.0
  %2794 = vmatprep.subr.mxu0 0.0
  %2795 = vmatpush1.msra.mxu0 0.0
  %2796 = vmatprep.subr.mxu0 0.0
  %2797 = vmatpush1.msra.mxu0 0.0
  %2798 = vmatprep.subr.mxu0 0.0
  %2799 = vmatpush1.msra.mxu0 0.0
  %2800 = vmatprep.mubr.f32.mxu0 0.0
  %v2801 = vand.u32 %v2680, 4294901760
  %v2802 = vsub.f32 %v2680, %v2801
  %v2803 = vand.u32 %v2802, 4294901760
  %v2804 = vsub.f32 %v2802, %v2803
  %v2805 = vand.u32 %v2804, 4294901760
  %2806 = vmatmul.mubr.f32.gmra.mrb[0].mxu0 %v2805
  %v2807 = vpop.f32.mrb[0].mxu0
  %v2808 = vadd.f32 0.0, %v2807
  %v2809 = vpop.f32.mrb[0].mxu0
  %2810 = vmatprep.mubr.f32.mxu0 0.0
  %v2811 = vand.u32 %v2683, 4294901760
  %v2812 = vsub.f32 %v2683, %v2811
  %v2813 = vand.u32 %v2812, 4294901760
  %v2814 = vsub.f32 %v2812, %v2813
  %v2815 = vand.u32 %v2814, 4294901760
  %2816 = vmatmul.mubr.f32.gmra.mrb[0].mxu0 %v2815
  %v2817 = vpop.f32.mrb[0].mxu0
  %v2818 = vadd.f32 0.0, %v2817
  %v2819 = vpop.f32.mrb[0].mxu0
  %2820 = vmatprep.mubr.f32.mxu0 0.0
  %v2821 = vand.u32 %v2688, 4294901760
  %v2822 = vsub.f32 %v2688, %v2821
  %v2823 = vand.u32 %v2822, 4294901760
  %v2824 = vsub.f32 %v2822, %v2823
  %v2825 = vand.u32 %v2824, 4294901760
  %2826 = vmatmul.mubr.f32.gmra.mrb[0].mxu0 %v2825
  %v2827 = vpop.f32.mrb[0].mxu0
  %v2828 = vadd.f32 0.0, %v2827
  %v2829 = vpop.f32.mrb[0].mxu0
  %2830 = vmatprep.mubr.f32.mxu0 0.0
  %v2831 = vand.u32 %v2691, 4294901760
  %v2832 = vsub.f32 %v2691, %v2831
  %v2833 = vand.u32 %v2832, 4294901760
  %v2834 = vsub.f32 %v2832, %v2833
  %v2835 = vand.u32 %v2834, 4294901760
  %2836 = vmatmul.mubr.f32.gmra.mrb[0].mxu0 %v2835
  %v2837 = vpop.f32.mrb[0].mxu0
  %v2838 = vadd.f32 0.0, %v2837
  %v2839 = vpop.f32.mrb[0].mxu0
  %2840 = vmatprep.mubr.f32.mxu0 0.0
  %v2841 = vand.u32 %v2696, 4294901760
  %v2842 = vsub.f32 %v2696, %v2841
  %v2843 = vand.u32 %v2842, 4294901760
  %v2844 = vsub.f32 %v2842, %v2843
  %v2845 = vand.u32 %v2844, 4294901760
  %2846 = vmatmul.mubr.f32.gmra.mrb[0].mxu0 %v2845
  %v2847 = vpop.f32.mrb[0].mxu0
  %v2848 = vadd.f32 0.0, %v2847
  %v2849 = vpop.f32.mrb[0].mxu0
  %2850 = vmatprep.mubr.f32.mxu0 0.0
  %v2851 = vand.u32 %v2699, 4294901760
  %v2852 = vsub.f32 %v2699, %v2851
  %v2853 = vand.u32 %v2852, 4294901760
  %v2854 = vsub.f32 %v2852, %v2853
  %v2855 = vand.u32 %v2854, 4294901760
  %2856 = vmatmul.mubr.f32.gmra.mrb[0].mxu0 %v2855
  %v2857 = vpop.f32.mrb[0].mxu0
  %v2858 = vadd.f32 0.0, %v2857
  %v2859 = vpop.f32.mrb[0].mxu0
  %2860 = vmatprep.mubr.f32.mxu0 0.0
  %v2861 = vand.u32 %v2704, 4294901760
  %v2862 = vsub.f32 %v2704, %v2861
  %v2863 = vand.u32 %v2862, 4294901760
  %v2864 = vsub.f32 %v2862, %v2863
  %v2865 = vand.u32 %v2864, 4294901760
  %2866 = vmatmul.mubr.f32.gmra.mrb[0].mxu0 %v2865
  %v2867 = vpop.f32.mrb[0].mxu0
  %v2868 = vadd.f32 0.0, %v2867
  %v2869 = vpop.f32.mrb[0].mxu0
  %2870 = vmatprep.mubr.f32.mxu0 0.0
  %v2871 = vand.u32 %v2707, 4294901760
  %v2872 = vsub.f32 %v2707, %v2871
  %v2873 = vand.u32 %v2872, 4294901760
  %v2874 = vsub.f32 %v2872, %v2873
  %v2875 = vand.u32 %v2874, 4294901760
  %2876 = vmatmul.mubr.f32.gmra.mrb[0].mxu0 %v2875
  %v2877 = vpop.f32.mrb[0].mxu0
  %v2878 = vadd.f32 0.0, %v2877
  %v2879 = vpop.f32.mrb[0].mxu0
  %2880 = vmatprep.mubr.f32.mxu0 0.0
  %v2881 = vand.u32 %v2712, 4294901760
  %v2882 = vsub.f32 %v2712, %v2881
  %v2883 = vand.u32 %v2882, 4294901760
  %v2884 = vsub.f32 %v2882, %v2883
  %v2885 = vand.u32 %v2884, 4294901760
  %2886 = vmatmul.mubr.f32.gmra.mrb[0].mxu0 %v2885
  %v2887 = vpop.f32.mrb[0].mxu0
  %v2888 = vadd.f32 0.0, %v2887
  %v2889 = vpop.f32.mrb[0].mxu0
  %2890 = vmatprep.mubr.f32.mxu0 0.0
  %v2891 = vand.u32 %v2715, 4294901760
  %v2892 = vsub.f32 %v2715, %v2891
  %v2893 = vand.u32 %v2892, 4294901760
  %v2894 = vsub.f32 %v2892, %v2893
  %v2895 = vand.u32 %v2894, 4294901760
  %2896 = vmatmul.mubr.f32.gmra.mrb[0].mxu0 %v2895
  %v2897 = vpop.f32.mrb[0].mxu0
  %v2898 = vadd.f32 0.0, %v2897
  %v2899 = vpop.f32.mrb[0].mxu0
  %2900 = vmatprep.mubr.f32.mxu0 0.0
  %v2901 = vand.u32 %v2720, 4294901760
  %v2902 = vsub.f32 %v2720, %v2901
  %v2903 = vand.u32 %v2902, 4294901760
  %v2904 = vsub.f32 %v2902, %v2903
  %v2905 = vand.u32 %v2904, 4294901760
  %2906 = vmatmul.mubr.f32.gmra.mrb[0].mxu0 %v2905
  %v2907 = vpop.f32.mrb[0].mxu0
  %v2908 = vadd.f32 0.0, %v2907
  %v2909 = vpop.f32.mrb[0].mxu0
  %2910 = vmatprep.mubr.f32.mxu0 0.0
  %v2911 = vand.u32 %v2725, 4294901760
  %v2912 = vsub.f32 %v2725, %v2911
  %v2913 = vand.u32 %v2912, 4294901760
  %v2914 = vsub.f32 %v2912, %v2913
  %v2915 = vand.u32 %v2914, 4294901760
  %2916 = vmatmul.mubr.f32.gmra.mrb[0].mxu0 %v2915
  %v2917 = vpop.f32.mrb[0].mxu0
  %v2918 = vadd.f32 0.0, %v2917
  %v2919 = vpop.f32.mrb[0].mxu0
  %2920 = vmatprep.mubr.f32.mxu0 0.0
  %v2921 = vand.u32 %v2726, 4294901760
  %v2922 = vsub.f32 %v2726, %v2921
  %v2923 = vand.u32 %v2922, 4294901760
  %v2924 = vsub.f32 %v2922, %v2923
  %v2925 = vand.u32 %v2924, 4294901760
  %2926 = vmatmul.mubr.f32.gmra.mrb[0].mxu0 %v2925
  %v2927 = vpop.f32.mrb[0].mxu0
  %v2928 = vadd.f32 0.0, %v2927
  %v2929 = vpop.f32.mrb[0].mxu0
  %2930 = vmatprep.mubr.f32.mxu0 0.0
  %v2931 = vand.u32 %v2727, 4294901760
  %v2932 = vsub.f32 %v2727, %v2931
  %v2933 = vand.u32 %v2932, 4294901760
  %v2934 = vsub.f32 %v2932, %v2933
  %v2935 = vand.u32 %v2934, 4294901760
  %2936 = vmatmul.mubr.f32.gmra.mrb[0].mxu0 %v2935
  %v2937 = vpop.f32.mrb[0].mxu0
  %v2938 = vadd.f32 0.0, %v2937
  %v2939 = vpop.f32.mrb[0].mxu0
  %2940 = vmatprep.mubr.f32.mxu0 0.0
  %v2941 = vand.u32 %v2728, 4294901760
  %v2942 = vsub.f32 %v2728, %v2941
  %v2943 = vand.u32 %v2942, 4294901760
  %v2944 = vsub.f32 %v2942, %v2943
  %v2945 = vand.u32 %v2944, 4294901760
  %2946 = vmatmul.mubr.f32.gmra.mrb[0].mxu0 %v2945
  %v2947 = vpop.f32.mrb[0].mxu0
  %v2948 = vadd.f32 0.0, %v2947
  %v2949 = vpop.f32.mrb[0].mxu0
  %2950 = vmatprep.mubr.f32.mxu0 0.0
  %v2951 = vand.u32 %v2729, 4294901760
  %v2952 = vsub.f32 %v2729, %v2951
  %v2953 = vand.u32 %v2952, 4294901760
  %v2954 = vsub.f32 %v2952, %v2953
  %v2955 = vand.u32 %v2954, 4294901760
  %2956 = vmatmul.mubr.f32.gmra.mrb[0].mxu0 %v2955
  %v2957 = vpop.f32.mrb[0].mxu0
  %v2958 = vadd.f32 0.0, %v2957
  %v2959 = vpop.f32.mrb[0].mxu0
  %2960 = vmatprep.mubr.f32.mxu0 0.0
  %v2961 = vand.u32 %v2730, 4294901760
  %v2962 = vsub.f32 %v2730, %v2961
  %v2963 = vand.u32 %v2962, 4294901760
  %v2964 = vsub.f32 %v2962, %v2963
  %v2965 = vand.u32 %v2964, 4294901760
  %2966 = vmatmul.mubr.f32.gmra.mrb[0].mxu0 %v2965
  %v2967 = vpop.f32.mrb[0].mxu0
  %v2968 = vadd.f32 0.0, %v2967
  %v2969 = vpop.f32.mrb[0].mxu0
  %2970 = vmatprep.mubr.f32.mxu0 0.0
  %v2971 = vand.u32 %v2731, 4294901760
  %v2972 = vsub.f32 %v2731, %v2971
  %v2973 = vand.u32 %v2972, 4294901760
  %v2974 = vsub.f32 %v2972, %v2973
  %v2975 = vand.u32 %v2974, 4294901760
  %2976 = vmatmul.mubr.f32.gmra.mrb[0].mxu0 %v2975
  %v2977 = vpop.f32.mrb[0].mxu0
  %v2978 = vadd.f32 0.0, %v2977
  %v2979 = vpop.f32.mrb[0].mxu0
  %2980 = vmatprep.mubr.f32.mxu0 0.0
  %v2981 = vand.u32 %v2732, 4294901760
  %v2982 = vsub.f32 %v2732, %v2981
  %v2983 = vand.u32 %v2982, 4294901760
  %v2984 = vsub.f32 %v2982, %v2983
  %v2985 = vand.u32 %v2984, 4294901760
  %2986 = vmatmul.mubr.f32.gmra.mrb[0].mxu0 %v2985
  %v2987 = vpop.f32.mrb[0].mxu0
  %v2988 = vadd.f32 0.0, %v2987
  %v2989 = vpop.f32.mrb[0].mxu0
  %2990 = vmatprep.mubr.f32.mxu0 0.0
  %v2991 = vand.u32 %v2733, 4294901760
  %v2992 = vsub.f32 %v2733, %v2991
  %v2993 = vand.u32 %v2992, 4294901760
  %v2994 = vsub.f32 %v2992, %v2993
  %v2995 = vand.u32 %v2994, 4294901760
  %2996 = vmatmul.mubr.f32.gmra.mrb[0].mxu0 %v2995
  %v2997 = vpop.f32.mrb[0].mxu0
  %v2998 = vadd.f32 0.0, %v2997
  %v2999 = vpop.f32.mrb[0].mxu0
  %3000 = vmatprep.mubr.f32.mxu0 0.0
  %v3001 = vand.u32 %v2734, 4294901760
  %v3002 = vsub.f32 %v2734, %v3001
  %v3003 = vand.u32 %v3002, 4294901760
  %v3004 = vsub.f32 %v3002, %v3003
  %v3005 = vand.u32 %v3004, 4294901760
  %3006 = vmatmul.mubr.f32.gmra.mrb[0].mxu0 %v3005
  %v3007 = vpop.f32.mrb[0].mxu0
  %v3008 = vadd.f32 0.0, %v3007
  %v3009 = vpop.f32.mrb[0].mxu0
  %3010 = vmatprep.mubr.f32.mxu0 0.0
  %v3011 = vand.u32 %v2735, 4294901760
  %v3012 = vsub.f32 %v2735, %v3011
  %v3013 = vand.u32 %v3012, 4294901760
  %v3014 = vsub.f32 %v3012, %v3013
  %v3015 = vand.u32 %v3014, 4294901760
  %3016 = vmatmul.mubr.f32.gmra.mrb[0].mxu0 %v3015
  %v3017 = vpop.f32.mrb[0].mxu0
  %v3018 = vadd.f32 0.0, %v3017
  %v3019 = vpop.f32.mrb[0].mxu0
  %3020 = vdwg.mxu0
  %3021 = vmatprep.subr.mxu0 0.0
  %v3022 = vsub.f32 %v199, %v199
  %v3023 = vand.u32 %v3022, 4294901760
  %v3024 = vsub.f32 %v3022, %v3023
  %v3025 = vand.u32 %v3024, 4294901760
  %3026 = vmatpush1.msra.mxu0 %v3025
  %3027 = vmatprep.subr.mxu0 0.0
  %v3028 = vsub.f32 %v200, %v200
  %v3029 = vand.u32 %v3028, 4294901760
  %v3030 = vsub.f32 %v3028, %v3029
  %v3031 = vand.u32 %v3030, 4294901760
  %3032 = vmatpush1.msra.mxu0 %v3031
  %3033 = vmatprep.subr.mxu0 0.0
  %v3034 = vsub.f32 %v201, %v201
  %v3035 = vand.u32 %v3034, 4294901760
  %v3036 = vsub.f32 %v3034, %v3035
  %v3037 = vand.u32 %v3036, 4294901760
  %3038 = vmatpush1.msra.mxu0 %v3037
  %3039 = vmatprep.subr.mxu0 0.0
  %v3040 = vsub.f32 %v202, %v202
  %v3041 = vand.u32 %v3040, 4294901760
  %v3042 = vsub.f32 %v3040, %v3041
  %v3043 = vand.u32 %v3042, 4294901760
  %3044 = vmatpush1.msra.mxu0 %v3043
  %3045 = vmatprep.subr.mxu0 0.0
  %v3046 = vsub.f32 %v203, %v203
  %v3047 = vand.u32 %v3046, 4294901760
  %v3048 = vsub.f32 %v3046, %v3047
  %v3049 = vand.u32 %v3048, 4294901760
  %3050 = vmatpush1.msra.mxu0 %v3049
  %3051 = vmatprep.subr.mxu0 0.0
  %v3052 = vsub.f32 %v204, %v204
  %v3053 = vand.u32 %v3052, 4294901760
  %v3054 = vsub.f32 %v3052, %v3053
  %v3055 = vand.u32 %v3054, 4294901760
  %3056 = vmatpush1.msra.mxu0 %v3055
  %3057 = vmatprep.subr.mxu0 0.0
  %v3058 = vsub.f32 %v205, %v205
  %v3059 = vand.u32 %v3058, 4294901760
  %v3060 = vsub.f32 %v3058, %v3059
  %v3061 = vand.u32 %v3060, 4294901760
  %3062 = vmatpush1.msra.mxu0 %v3061
  %3063 = vmatprep.subr.mxu0 0.0
  %v3064 = vsub.f32 %v206, %v206
  %v3065 = vand.u32 %v3064, 4294901760
  %v3066 = vsub.f32 %v3064, %v3065
  %v3067 = vand.u32 %v3066, 4294901760
  %3068 = vmatpush1.msra.mxu0 %v3067
  %3069 = vmatprep.subr.mxu0 0.0
  %v3070 = vsub.f32 %v207, %v207
  %v3071 = vand.u32 %v3070, 4294901760
  %v3072 = vsub.f32 %v3070, %v3071
  %v3073 = vand.u32 %v3072, 4294901760
  %3074 = vmatpush1.msra.mxu0 %v3073
  %3075 = vmatprep.subr.mxu0 0.0
  %v3076 = vsub.f32 %v208, %v208
  %v3077 = vand.u32 %v3076, 4294901760
  %v3078 = vsub.f32 %v3076, %v3077
  %v3079 = vand.u32 %v3078, 4294901760
  %3080 = vmatpush1.msra.mxu0 %v3079
  %3081 = vmatprep.subr.mxu0 0.0
  %v3082 = vsub.f32 %v209, %v209
  %v3083 = vand.u32 %v3082, 4294901760
  %v3084 = vsub.f32 %v3082, %v3083
  %v3085 = vand.u32 %v3084, 4294901760
  %3086 = vmatpush1.msra.mxu0 %v3085
  %3087 = vmatprep.subr.mxu0 0.0
  %v3088 = vsub.f32 %v210, %v210
  %v3089 = vand.u32 %v3088, 4294901760
  %v3090 = vsub.f32 %v3088, %v3089
  %v3091 = vand.u32 %v3090, 4294901760
  %3092 = vmatpush1.msra.mxu0 %v3091
  %3093 = vmatprep.subr.mxu0 0.0
  %v3094 = vsub.f32 %v211, %v211
  %v3095 = vand.u32 %v3094, 4294901760
  %v3096 = vsub.f32 %v3094, %v3095
  %v3097 = vand.u32 %v3096, 4294901760
  %3098 = vmatpush1.msra.mxu0 %v3097
  %3099 = vmatprep.subr.mxu0 0.0
  %v3100 = vsub.f32 %v212, %v212
  %v3101 = vand.u32 %v3100, 4294901760
  %v3102 = vsub.f32 %v3100, %v3101
  %v3103 = vand.u32 %v3102, 4294901760
  %3104 = vmatpush1.msra.mxu0 %v3103
  %3105 = vmatprep.subr.mxu0 0.0
  %v3106 = vsub.f32 %v213, %v213
  %v3107 = vand.u32 %v3106, 4294901760
  %v3108 = vsub.f32 %v3106, %v3107
  %v3109 = vand.u32 %v3108, 4294901760
  %3110 = vmatpush1.msra.mxu0 %v3109
  %3111 = vmatprep.subr.mxu0 0.0
  %v3112 = vsub.f32 %v214, %v214
  %v3113 = vand.u32 %v3112, 4294901760
  %v3114 = vsub.f32 %v3112, %v3113
  %v3115 = vand.u32 %v3114, 4294901760
  %3116 = vmatpush1.msra.mxu0 %v3115
  %3117 = vmatprep.subr.mxu0 0.0
  %3118 = vmatpush1.msra.mxu0 0.0
  %3119 = vmatprep.subr.mxu0 0.0
  %3120 = vmatpush1.msra.mxu0 0.0
  %3121 = vmatprep.subr.mxu0 0.0
  %3122 = vmatpush1.msra.mxu0 0.0
  %3123 = vmatprep.subr.mxu0 0.0
  %3124 = vmatpush1.msra.mxu0 0.0
  %3125 = vmatprep.subr.mxu0 0.0
  %3126 = vmatpush1.msra.mxu0 0.0
  %3127 = vmatprep.subr.mxu0 0.0
  %3128 = vmatpush1.msra.mxu0 0.0
  %3129 = vmatprep.subr.mxu0 0.0
  %3130 = vmatpush1.msra.mxu0 0.0
  %3131 = vmatprep.subr.mxu0 0.0
  %3132 = vmatpush1.msra.mxu0 0.0
  %3133 = vmatprep.subr.mxu0 0.0
  %3134 = vmatpush1.msra.mxu0 0.0
  %3135 = vmatprep.subr.mxu0 0.0
  %3136 = vmatpush1.msra.mxu0 0.0
  %3137 = vmatprep.subr.mxu0 0.0
  %3138 = vmatpush1.msra.mxu0 0.0
  %3139 = vmatprep.subr.mxu0 0.0
  %3140 = vmatpush1.msra.mxu0 0.0
  %3141 = vmatprep.subr.mxu0 0.0
  %3142 = vmatpush1.msra.mxu0 0.0
  %3143 = vmatprep.subr.mxu0 0.0
  %3144 = vmatpush1.msra.mxu0 0.0
  %3145 = vmatprep.subr.mxu0 0.0
  %3146 = vmatpush1.msra.mxu0 0.0
  %3147 = vmatprep.subr.mxu0 0.0
  %3148 = vmatpush1.msra.mxu0 0.0
  %3149 = vmatprep.mubr.f32.mxu0 0.0
  %v3150 = vand.u32 %v2680, 4294901760
  %3151 = vmatmul.mubr.f32.gmra.mrb[0].mxu0 %v3150
  %v3152 = vpop.f32.mrb[0].mxu0
  %v3153 = vadd.f32 %v2808, %v3152
  %v3154 = vpop.f32.mrb[0].mxu0
  %3155 = vmatprep.mubr.f32.mxu0 0.0
  %v3156 = vand.u32 %v2683, 4294901760
  %3157 = vmatmul.mubr.f32.gmra.mrb[0].mxu0 %v3156
  %v3158 = vpop.f32.mrb[0].mxu0
  %v3159 = vadd.f32 %v2818, %v3158
  %v3160 = vpop.f32.mrb[0].mxu0
  %3161 = vmatprep.mubr.f32.mxu0 0.0
  %v3162 = vand.u32 %v2688, 4294901760
  %3163 = vmatmul.mubr.f32.gmra.mrb[0].mxu0 %v3162
  %v3164 = vpop.f32.mrb[0].mxu0
  %v3165 = vadd.f32 %v2828, %v3164
  %v3166 = vpop.f32.mrb[0].mxu0
  %3167 = vmatprep.mubr.f32.mxu0 0.0
  %v3168 = vand.u32 %v2691, 4294901760
  %3169 = vmatmul.mubr.f32.gmra.mrb[0].mxu0 %v3168
  %v3170 = vpop.f32.mrb[0].mxu0
  %v3171 = vadd.f32 %v2838, %v3170
  %v3172 = vpop.f32.mrb[0].mxu0
  %3173 = vmatprep.mubr.f32.mxu0 0.0
  %v3174 = vand.u32 %v2696, 4294901760
  %3175 = vmatmul.mubr.f32.gmra.mrb[0].mxu0 %v3174
  %v3176 = vpop.f32.mrb[0].mxu0
  %v3177 = vadd.f32 %v2848, %v3176
  %v3178 = vpop.f32.mrb[0].mxu0
  %3179 = vmatprep.mubr.f32.mxu0 0.0
  %v3180 = vand.u32 %v2699, 4294901760
  %3181 = vmatmul.mubr.f32.gmra.mrb[0].mxu0 %v3180
  %v3182 = vpop.f32.mrb[0].mxu0
  %v3183 = vadd.f32 %v2858, %v3182
  %v3184 = vpop.f32.mrb[0].mxu0
  %3185 = vmatprep.mubr.f32.mxu0 0.0
  %v3186 = vand.u32 %v2704, 4294901760
  %3187 = vmatmul.mubr.f32.gmra.mrb[0].mxu0 %v3186
  %v3188 = vpop.f32.mrb[0].mxu0
  %v3189 = vadd.f32 %v2868, %v3188
  %v3190 = vpop.f32.mrb[0].mxu0
  %3191 = vmatprep.mubr.f32.mxu0 0.0
  %v3192 = vand.u32 %v2707, 4294901760
  %3193 = vmatmul.mubr.f32.gmra.mrb[0].mxu0 %v3192
  %v3194 = vpop.f32.mrb[0].mxu0
  %v3195 = vadd.f32 %v2878, %v3194
  %v3196 = vpop.f32.mrb[0].mxu0
  %3197 = vmatprep.mubr.f32.mxu0 0.0
  %v3198 = vand.u32 %v2712, 4294901760
  %3199 = vmatmul.mubr.f32.gmra.mrb[0].mxu0 %v3198
  %v3200 = vpop.f32.mrb[0].mxu0
  %v3201 = vadd.f32 %v2888, %v3200
  %v3202 = vpop.f32.mrb[0].mxu0
  %3203 = vmatprep.mubr.f32.mxu0 0.0
  %v3204 = vand.u32 %v2715, 4294901760
  %3205 = vmatmul.mubr.f32.gmra.mrb[0].mxu0 %v3204
  %v3206 = vpop.f32.mrb[0].mxu0
  %v3207 = vadd.f32 %v2898, %v3206
  %v3208 = vpop.f32.mrb[0].mxu0
  %3209 = vmatprep.mubr.f32.mxu0 0.0
  %v3210 = vand.u32 %v2720, 4294901760
  %3211 = vmatmul.mubr.f32.gmra.mrb[0].mxu0 %v3210
  %v3212 = vpop.f32.mrb[0].mxu0
  %v3213 = vadd.f32 %v2908, %v3212
  %v3214 = vpop.f32.mrb[0].mxu0
  %3215 = vmatprep.mubr.f32.mxu0 0.0
  %v3216 = vand.u32 %v2725, 4294901760
  %3217 = vmatmul.mubr.f32.gmra.mrb[0].mxu0 %v3216
  %v3218 = vpop.f32.mrb[0].mxu0
  %v3219 = vadd.f32 %v2918, %v3218
  %v3220 = vpop.f32.mrb[0].mxu0
  %3221 = vmatprep.mubr.f32.mxu0 0.0
  %v3222 = vand.u32 %v2726, 4294901760
  %3223 = vmatmul.mubr.f32.gmra.mrb[0].mxu0 %v3222
  %v3224 = vpop.f32.mrb[0].mxu0
  %v3225 = vadd.f32 %v2928, %v3224
  %v3226 = vpop.f32.mrb[0].mxu0
  %3227 = vmatprep.mubr.f32.mxu0 0.0
  %v3228 = vand.u32 %v2727, 4294901760
  %3229 = vmatmul.mubr.f32.gmra.mrb[0].mxu0 %v3228
  %v3230 = vpop.f32.mrb[0].mxu0
  %v3231 = vadd.f32 %v2938, %v3230
  %v3232 = vpop.f32.mrb[0].mxu0
  %3233 = vmatprep.mubr.f32.mxu0 0.0
  %v3234 = vand.u32 %v2728, 4294901760
  %3235 = vmatmul.mubr.f32.gmra.mrb[0].mxu0 %v3234
  %v3236 = vpop.f32.mrb[0].mxu0
  %v3237 = vadd.f32 %v2948, %v3236
  %v3238 = vpop.f32.mrb[0].mxu0
  %3239 = vmatprep.mubr.f32.mxu0 0.0
  %v3240 = vand.u32 %v2729, 4294901760
  %3241 = vmatmul.mubr.f32.gmra.mrb[0].mxu0 %v3240
  %v3242 = vpop.f32.mrb[0].mxu0
  %v3243 = vadd.f32 %v2958, %v3242
  %v3244 = vpop.f32.mrb[0].mxu0
  %3245 = vmatprep.mubr.f32.mxu0 0.0
  %v3246 = vand.u32 %v2730, 4294901760
  %3247 = vmatmul.mubr.f32.gmra.mrb[0].mxu0 %v3246
  %v3248 = vpop.f32.mrb[0].mxu0
  %v3249 = vadd.f32 %v2968, %v3248
  %v3250 = vpop.f32.mrb[0].mxu0
  %3251 = vmatprep.mubr.f32.mxu0 0.0
  %v3252 = vand.u32 %v2731, 4294901760
  %3253 = vmatmul.mubr.f32.gmra.mrb[0].mxu0 %v3252
  %v3254 = vpop.f32.mrb[0].mxu0
  %v3255 = vadd.f32 %v2978, %v3254
  %v3256 = vpop.f32.mrb[0].mxu0
  %3257 = vmatprep.mubr.f32.mxu0 0.0
  %v3258 = vand.u32 %v2732, 4294901760
  %3259 = vmatmul.mubr.f32.gmra.mrb[0].mxu0 %v3258
  %v3260 = vpop.f32.mrb[0].mxu0
  %v3261 = vadd.f32 %v2988, %v3260
  %v3262 = vpop.f32.mrb[0].mxu0
  %3263 = vmatprep.mubr.f32.mxu0 0.0
  %v3264 = vand.u32 %v2733, 4294901760
  %3265 = vmatmul.mubr.f32.gmra.mrb[0].mxu0 %v3264
  %v3266 = vpop.f32.mrb[0].mxu0
  %v3267 = vadd.f32 %v2998, %v3266
  %v3268 = vpop.f32.mrb[0].mxu0
  %3269 = vmatprep.mubr.f32.mxu0 0.0
  %v3270 = vand.u32 %v2734, 4294901760
  %3271 = vmatmul.mubr.f32.gmra.mrb[0].mxu0 %v3270
  %v3272 = vpop.f32.mrb[0].mxu0
  %v3273 = vadd.f32 %v3008, %v3272
  %v3274 = vpop.f32.mrb[0].mxu0
  %3275 = vmatprep.mubr.f32.mxu0 0.0
  %v3276 = vand.u32 %v2735, 4294901760
  %3277 = vmatmul.mubr.f32.gmra.mrb[0].mxu0 %v3276
  %v3278 = vpop.f32.mrb[0].mxu0
  %v3279 = vadd.f32 %v3018, %v3278
  %v3280 = vpop.f32.mrb[0].mxu0
  %3281 = vdwg.mxu0
  %3282 = vmatprep.subr.mxu0 0.0
  %v3283 = vsub.f32 %v199, %v199
  %3284 = vmatpush1.msra.mxu0 %v3283
  %3285 = vmatprep.subr.mxu0 0.0
  %v3286 = vsub.f32 %v200, %v200
  %3287 = vmatpush1.msra.mxu0 %v3286
  %3288 = vmatprep.subr.mxu0 0.0
  %v3289 = vsub.f32 %v201, %v201
  %3290 = vmatpush1.msra.mxu0 %v3289
  %3291 = vmatprep.subr.mxu0 0.0
  %v3292 = vsub.f32 %v202, %v202
  %3293 = vmatpush1.msra.mxu0 %v3292
  %3294 = vmatprep.subr.mxu0 0.0
  %v3295 = vsub.f32 %v203, %v203
  %3296 = vmatpush1.msra.mxu0 %v3295
  %3297 = vmatprep.subr.mxu0 0.0
  %v3298 = vsub.f32 %v204, %v204
  %3299 = vmatpush1.msra.mxu0 %v3298
  %3300 = vmatprep.subr.mxu0 0.0
  %v3301 = vsub.f32 %v205, %v205
  %3302 = vmatpush1.msra.mxu0 %v3301
  %3303 = vmatprep.subr.mxu0 0.0
  %v3304 = vsub.f32 %v206, %v206
  %3305 = vmatpush1.msra.mxu0 %v3304
  %3306 = vmatprep.subr.mxu0 0.0
  %v3307 = vsub.f32 %v207, %v207
  %3308 = vmatpush1.msra.mxu0 %v3307
  %3309 = vmatprep.subr.mxu0 0.0
  %v3310 = vsub.f32 %v208, %v208
  %3311 = vmatpush1.msra.mxu0 %v3310
  %3312 = vmatprep.subr.mxu0 0.0
  %v3313 = vsub.f32 %v209, %v209
  %3314 = vmatpush1.msra.mxu0 %v3313
  %3315 = vmatprep.subr.mxu0 0.0
  %v3316 = vsub.f32 %v210, %v210
  %3317 = vmatpush1.msra.mxu0 %v3316
  %3318 = vmatprep.subr.mxu0 0.0
  %v3319 = vsub.f32 %v211, %v211
  %3320 = vmatpush1.msra.mxu0 %v3319
  %3321 = vmatprep.subr.mxu0 0.0
  %v3322 = vsub.f32 %v212, %v212
  %3323 = vmatpush1.msra.mxu0 %v3322
  %3324 = vmatprep.subr.mxu0 0.0
  %v3325 = vsub.f32 %v213, %v213
  %3326 = vmatpush1.msra.mxu0 %v3325
  %3327 = vmatprep.subr.mxu0 0.0
  %v3328 = vsub.f32 %v214, %v214
  %3329 = vmatpush1.msra.mxu0 %v3328
  %3330 = vmatprep.subr.mxu0 0.0
  %3331 = vmatpush1.msra.mxu0 0.0
  %3332 = vmatprep.subr.mxu0 0.0
  %3333 = vmatpush1.msra.mxu0 0.0
  %3334 = vmatprep.subr.mxu0 0.0
  %3335 = vmatpush1.msra.mxu0 0.0
  %3336 = vmatprep.subr.mxu0 0.0
  %3337 = vmatpush1.msra.mxu0 0.0
  %3338 = vmatprep.subr.mxu0 0.0
  %3339 = vmatpush1.msra.mxu0 0.0
  %3340 = vmatprep.subr.mxu0 0.0
  %3341 = vmatpush1.msra.mxu0 0.0
  %3342 = vmatprep.subr.mxu0 0.0
  %3343 = vmatpush1.msra.mxu0 0.0
  %3344 = vmatprep.subr.mxu0 0.0
  %3345 = vmatpush1.msra.mxu0 0.0
  %3346 = vmatprep.subr.mxu0 0.0
  %3347 = vmatpush1.msra.mxu0 0.0
  %3348 = vmatprep.subr.mxu0 0.0
  %3349 = vmatpush1.msra.mxu0 0.0
  %3350 = vmatprep.subr.mxu0 0.0
  %3351 = vmatpush1.msra.mxu0 0.0
  %3352 = vmatprep.subr.mxu0 0.0
  %3353 = vmatpush1.msra.mxu0 0.0
  %3354 = vmatprep.subr.mxu0 0.0
  %3355 = vmatpush1.msra.mxu0 0.0
  %3356 = vmatprep.subr.mxu0 0.0
  %3357 = vmatpush1.msra.mxu0 0.0
  %3358 = vmatprep.subr.mxu0 0.0
  %3359 = vmatpush1.msra.mxu0 0.0
  %3360 = vmatprep.subr.mxu0 0.0
  %3361 = vmatpush1.msra.mxu0 0.0
  %3362 = vmatprep.mubr.f32.mxu0 0.0
  %v3363 = vand.u32 %v2680, 4294901760
  %v3364 = vsub.f32 %v2680, %v3363
  %3365 = vmatmul.mubr.f32.gmra.mrb[0].mxu0 %v3364
  %v3366 = vpop.f32.mrb[0].mxu0
  %v3367 = vadd.f32 %v3153, %v3366
  %v3368 = vpop.f32.mrb[0].mxu0
  %3369 = vmatprep.mubr.f32.mxu0 0.0
  %v3370 = vand.u32 %v2683, 4294901760
  %v3371 = vsub.f32 %v2683, %v3370
  %3372 = vmatmul.mubr.f32.gmra.mrb[0].mxu0 %v3371
  %v3373 = vpop.f32.mrb[0].mxu0
  %v3374 = vadd.f32 %v3159, %v3373
  %v3375 = vpop.f32.mrb[0].mxu0
  %3376 = vmatprep.mubr.f32.mxu0 0.0
  %v3377 = vand.u32 %v2688, 4294901760
  %v3378 = vsub.f32 %v2688, %v3377
  %3379 = vmatmul.mubr.f32.gmra.mrb[0].mxu0 %v3378
  %v3380 = vpop.f32.mrb[0].mxu0
  %v3381 = vadd.f32 %v3165, %v3380
  %v3382 = vpop.f32.mrb[0].mxu0
  %3383 = vmatprep.mubr.f32.mxu0 0.0
  %v3384 = vand.u32 %v2691, 4294901760
  %v3385 = vsub.f32 %v2691, %v3384
  %3386 = vmatmul.mubr.f32.gmra.mrb[0].mxu0 %v3385
  %v3387 = vpop.f32.mrb[0].mxu0
  %v3388 = vadd.f32 %v3171, %v3387
  %v3389 = vpop.f32.mrb[0].mxu0
  %3390 = vmatprep.mubr.f32.mxu0 0.0
  %v3391 = vand.u32 %v2696, 4294901760
  %v3392 = vsub.f32 %v2696, %v3391
  %3393 = vmatmul.mubr.f32.gmra.mrb[0].mxu0 %v3392
  %v3394 = vpop.f32.mrb[0].mxu0
  %v3395 = vadd.f32 %v3177, %v3394
  %v3396 = vpop.f32.mrb[0].mxu0
  %3397 = vmatprep.mubr.f32.mxu0 0.0
  %v3398 = vand.u32 %v2699, 4294901760
  %v3399 = vsub.f32 %v2699, %v3398
  %3400 = vmatmul.mubr.f32.gmra.mrb[0].mxu0 %v3399
  %v3401 = vpop.f32.mrb[0].mxu0
  %v3402 = vadd.f32 %v3183, %v3401
  %v3403 = vpop.f32.mrb[0].mxu0
  %3404 = vmatprep.mubr.f32.mxu0 0.0
  %v3405 = vand.u32 %v2704, 4294901760
  %v3406 = vsub.f32 %v2704, %v3405
  %3407 = vmatmul.mubr.f32.gmra.mrb[0].mxu0 %v3406
  %v3408 = vpop.f32.mrb[0].mxu0
  %v3409 = vadd.f32 %v3189, %v3408
  %v3410 = vpop.f32.mrb[0].mxu0
  %3411 = vmatprep.mubr.f32.mxu0 0.0
  %v3412 = vand.u32 %v2707, 4294901760
  %v3413 = vsub.f32 %v2707, %v3412
  %3414 = vmatmul.mubr.f32.gmra.mrb[0].mxu0 %v3413
  %v3415 = vpop.f32.mrb[0].mxu0
  %v3416 = vadd.f32 %v3195, %v3415
  %v3417 = vpop.f32.mrb[0].mxu0
  %3418 = vmatprep.mubr.f32.mxu0 0.0
  %v3419 = vand.u32 %v2712, 4294901760
  %v3420 = vsub.f32 %v2712, %v3419
  %3421 = vmatmul.mubr.f32.gmra.mrb[0].mxu0 %v3420
  %v3422 = vpop.f32.mrb[0].mxu0
  %v3423 = vadd.f32 %v3201, %v3422
  %v3424 = vpop.f32.mrb[0].mxu0
  %3425 = vmatprep.mubr.f32.mxu0 0.0
  %v3426 = vand.u32 %v2715, 4294901760
  %v3427 = vsub.f32 %v2715, %v3426
  %3428 = vmatmul.mubr.f32.gmra.mrb[0].mxu0 %v3427
  %v3429 = vpop.f32.mrb[0].mxu0
  %v3430 = vadd.f32 %v3207, %v3429
  %v3431 = vpop.f32.mrb[0].mxu0
  %3432 = vmatprep.mubr.f32.mxu0 0.0
  %v3433 = vand.u32 %v2720, 4294901760
  %v3434 = vsub.f32 %v2720, %v3433
  %3435 = vmatmul.mubr.f32.gmra.mrb[0].mxu0 %v3434
  %v3436 = vpop.f32.mrb[0].mxu0
  %v3437 = vadd.f32 %v3213, %v3436
  %v3438 = vpop.f32.mrb[0].mxu0
  %3439 = vmatprep.mubr.f32.mxu0 0.0
  %v3440 = vand.u32 %v2725, 4294901760
  %v3441 = vsub.f32 %v2725, %v3440
  %3442 = vmatmul.mubr.f32.gmra.mrb[0].mxu0 %v3441
  %v3443 = vpop.f32.mrb[0].mxu0
  %v3444 = vadd.f32 %v3219, %v3443
  %v3445 = vpop.f32.mrb[0].mxu0
  %3446 = vmatprep.mubr.f32.mxu0 0.0
  %v3447 = vand.u32 %v2726, 4294901760
  %v3448 = vsub.f32 %v2726, %v3447
  %3449 = vmatmul.mubr.f32.gmra.mrb[0].mxu0 %v3448
  %v3450 = vpop.f32.mrb[0].mxu0
  %v3451 = vadd.f32 %v3225, %v3450
  %v3452 = vpop.f32.mrb[0].mxu0
  %3453 = vmatprep.mubr.f32.mxu0 0.0
  %v3454 = vand.u32 %v2727, 4294901760
  %v3455 = vsub.f32 %v2727, %v3454
  %3456 = vmatmul.mubr.f32.gmra.mrb[0].mxu0 %v3455
  %v3457 = vpop.f32.mrb[0].mxu0
  %v3458 = vadd.f32 %v3231, %v3457
  %v3459 = vpop.f32.mrb[0].mxu0
  %3460 = vmatprep.mubr.f32.mxu0 0.0
  %v3461 = vand.u32 %v2728, 4294901760
  %v3462 = vsub.f32 %v2728, %v3461
  %3463 = vmatmul.mubr.f32.gmra.mrb[0].mxu0 %v3462
  %v3464 = vpop.f32.mrb[0].mxu0
  %v3465 = vadd.f32 %v3237, %v3464
  %v3466 = vpop.f32.mrb[0].mxu0
  %3467 = vmatprep.mubr.f32.mxu0 0.0
  %v3468 = vand.u32 %v2729, 4294901760
  %v3469 = vsub.f32 %v2729, %v3468
  %3470 = vmatmul.mubr.f32.gmra.mrb[0].mxu0 %v3469
  %v3471 = vpop.f32.mrb[0].mxu0
  %v3472 = vadd.f32 %v3243, %v3471
  %v3473 = vpop.f32.mrb[0].mxu0
  %3474 = vmatprep.mubr.f32.mxu0 0.0
  %v3475 = vand.u32 %v2730, 4294901760
  %v3476 = vsub.f32 %v2730, %v3475
  %3477 = vmatmul.mubr.f32.gmra.mrb[0].mxu0 %v3476
  %v3478 = vpop.f32.mrb[0].mxu0
  %v3479 = vadd.f32 %v3249, %v3478
  %v3480 = vpop.f32.mrb[0].mxu0
  %3481 = vmatprep.mubr.f32.mxu0 0.0
  %v3482 = vand.u32 %v2731, 4294901760
  %v3483 = vsub.f32 %v2731, %v3482
  %3484 = vmatmul.mubr.f32.gmra.mrb[0].mxu0 %v3483
  %v3485 = vpop.f32.mrb[0].mxu0
  %v3486 = vadd.f32 %v3255, %v3485
  %v3487 = vpop.f32.mrb[0].mxu0
  %3488 = vmatprep.mubr.f32.mxu0 0.0
  %v3489 = vand.u32 %v2732, 4294901760
  %v3490 = vsub.f32 %v2732, %v3489
  %3491 = vmatmul.mubr.f32.gmra.mrb[0].mxu0 %v3490
  %v3492 = vpop.f32.mrb[0].mxu0
  %v3493 = vadd.f32 %v3261, %v3492
  %v3494 = vpop.f32.mrb[0].mxu0
  %3495 = vmatprep.mubr.f32.mxu0 0.0
  %v3496 = vand.u32 %v2733, 4294901760
  %v3497 = vsub.f32 %v2733, %v3496
  %3498 = vmatmul.mubr.f32.gmra.mrb[0].mxu0 %v3497
  %v3499 = vpop.f32.mrb[0].mxu0
  %v3500 = vadd.f32 %v3267, %v3499
  %v3501 = vpop.f32.mrb[0].mxu0
  %3502 = vmatprep.mubr.f32.mxu0 0.0
  %v3503 = vand.u32 %v2734, 4294901760
  %v3504 = vsub.f32 %v2734, %v3503
  %3505 = vmatmul.mubr.f32.gmra.mrb[0].mxu0 %v3504
  %v3506 = vpop.f32.mrb[0].mxu0
  %v3507 = vadd.f32 %v3273, %v3506
  %v3508 = vpop.f32.mrb[0].mxu0
  %3509 = vmatprep.mubr.f32.mxu0 0.0
  %v3510 = vand.u32 %v2735, 4294901760
  %v3511 = vsub.f32 %v2735, %v3510
  %3512 = vmatmul.mubr.f32.gmra.mrb[0].mxu0 %v3511
  %v3513 = vpop.f32.mrb[0].mxu0
  %v3514 = vadd.f32 %v3279, %v3513
  %v3515 = vpop.f32.mrb[0].mxu0
  %3516 = vdwg.mxu0
  %3517 = vmatprep.subr.mxu0 0.0
  %3518 = vmatpush1.msra.mxu0 %v199
  %3519 = vmatprep.subr.mxu0 0.0
  %3520 = vmatpush1.msra.mxu0 %v200
  %3521 = vmatprep.subr.mxu0 0.0
  %3522 = vmatpush1.msra.mxu0 %v201
  %3523 = vmatprep.subr.mxu0 0.0
  %3524 = vmatpush1.msra.mxu0 %v202
  %3525 = vmatprep.subr.mxu0 0.0
  %3526 = vmatpush1.msra.mxu0 %v203
  %3527 = vmatprep.subr.mxu0 0.0
  %3528 = vmatpush1.msra.mxu0 %v204
  %3529 = vmatprep.subr.mxu0 0.0
  %3530 = vmatpush1.msra.mxu0 %v205
  %3531 = vmatprep.subr.mxu0 0.0
  %3532 = vmatpush1.msra.mxu0 %v206
  %3533 = vmatprep.subr.mxu0 0.0
  %3534 = vmatpush1.msra.mxu0 %v207
  %3535 = vmatprep.subr.mxu0 0.0
  %3536 = vmatpush1.msra.mxu0 %v208
  %3537 = vmatprep.subr.mxu0 0.0
  %3538 = vmatpush1.msra.mxu0 %v209
  %3539 = vmatprep.subr.mxu0 0.0
  %3540 = vmatpush1.msra.mxu0 %v210
  %3541 = vmatprep.subr.mxu0 0.0
  %3542 = vmatpush1.msra.mxu0 %v211
  %3543 = vmatprep.subr.mxu0 0.0
  %3544 = vmatpush1.msra.mxu0 %v212
  %3545 = vmatprep.subr.mxu0 0.0
  %3546 = vmatpush1.msra.mxu0 %v213
  %3547 = vmatprep.subr.mxu0 0.0
  %3548 = vmatpush1.msra.mxu0 %v214
  %3549 = vmatprep.subr.mxu0 0.0
  %3550 = vmatpush1.msra.mxu0 0.0
  %3551 = vmatprep.subr.mxu0 0.0
  %3552 = vmatpush1.msra.mxu0 0.0
  %3553 = vmatprep.subr.mxu0 0.0
  %3554 = vmatpush1.msra.mxu0 0.0
  %3555 = vmatprep.subr.mxu0 0.0
  %3556 = vmatpush1.msra.mxu0 0.0
  %3557 = vmatprep.subr.mxu0 0.0
  %3558 = vmatpush1.msra.mxu0 0.0
  %3559 = vmatprep.subr.mxu0 0.0
  %3560 = vmatpush1.msra.mxu0 0.0
  %3561 = vmatprep.subr.mxu0 0.0
  %3562 = vmatpush1.msra.mxu0 0.0
  %3563 = vmatprep.subr.mxu0 0.0
  %3564 = vmatpush1.msra.mxu0 0.0
  %3565 = vmatprep.subr.mxu0 0.0
  %3566 = vmatpush1.msra.mxu0 0.0
  %3567 = vmatprep.subr.mxu0 0.0
  %3568 = vmatpush1.msra.mxu0 0.0
  %3569 = vmatprep.subr.mxu0 0.0
  %3570 = vmatpush1.msra.mxu0 0.0
  %3571 = vmatprep.subr.mxu0 0.0
  %3572 = vmatpush1.msra.mxu0 0.0
  %3573 = vmatprep.subr.mxu0 0.0
  %3574 = vmatpush1.msra.mxu0 0.0
  %3575 = vmatprep.subr.mxu0 0.0
  %3576 = vmatpush1.msra.mxu0 0.0
  %3577 = vmatprep.subr.mxu0 0.0
  %3578 = vmatpush1.msra.mxu0 0.0
  %3579 = vmatprep.subr.mxu0 0.0
  %3580 = vmatpush1.msra.mxu0 0.0
  %3581 = vmatprep.mubr.f32.mxu0 0.0
  %v3582 = vand.u32 %v2680, 4294901760
  %v3583 = vsub.f32 %v2680, %v3582
  %v3584 = vand.u32 %v3583, 4294901760
  %3585 = vmatmul.mubr.f32.gmra.mrb[0].mxu0 %v3584
  %v3586 = vpop.f32.mrb[0].mxu0
  %v3587 = vadd.f32 %v3367, %v3586
  %v3588 = vpop.f32.mrb[0].mxu0
  %3589 = vmatprep.mubr.f32.mxu0 0.0
  %v3590 = vand.u32 %v2683, 4294901760
  %v3591 = vsub.f32 %v2683, %v3590
  %v3592 = vand.u32 %v3591, 4294901760
  %3593 = vmatmul.mubr.f32.gmra.mrb[0].mxu0 %v3592
  %v3594 = vpop.f32.mrb[0].mxu0
  %v3595 = vadd.f32 %v3374, %v3594
  %v3596 = vpop.f32.mrb[0].mxu0
  %3597 = vmatprep.mubr.f32.mxu0 0.0
  %v3598 = vand.u32 %v2688, 4294901760
  %v3599 = vsub.f32 %v2688, %v3598
  %v3600 = vand.u32 %v3599, 4294901760
  %3601 = vmatmul.mubr.f32.gmra.mrb[0].mxu0 %v3600
  %v3602 = vpop.f32.mrb[0].mxu0
  %v3603 = vadd.f32 %v3381, %v3602
  %v3604 = vpop.f32.mrb[0].mxu0
  %3605 = vmatprep.mubr.f32.mxu0 0.0
  %v3606 = vand.u32 %v2691, 4294901760
  %v3607 = vsub.f32 %v2691, %v3606
  %v3608 = vand.u32 %v3607, 4294901760
  %3609 = vmatmul.mubr.f32.gmra.mrb[0].mxu0 %v3608
  %v3610 = vpop.f32.mrb[0].mxu0
  %v3611 = vadd.f32 %v3388, %v3610
  %v3612 = vpop.f32.mrb[0].mxu0
  %3613 = vmatprep.mubr.f32.mxu0 0.0
  %v3614 = vand.u32 %v2696, 4294901760
  %v3615 = vsub.f32 %v2696, %v3614
  %v3616 = vand.u32 %v3615, 4294901760
  %3617 = vmatmul.mubr.f32.gmra.mrb[0].mxu0 %v3616
  %v3618 = vpop.f32.mrb[0].mxu0
  %v3619 = vadd.f32 %v3395, %v3618
  %v3620 = vpop.f32.mrb[0].mxu0
  %3621 = vmatprep.mubr.f32.mxu0 0.0
  %v3622 = vand.u32 %v2699, 4294901760
  %v3623 = vsub.f32 %v2699, %v3622
  %v3624 = vand.u32 %v3623, 4294901760
  %3625 = vmatmul.mubr.f32.gmra.mrb[0].mxu0 %v3624
  %v3626 = vpop.f32.mrb[0].mxu0
  %v3627 = vadd.f32 %v3402, %v3626
  %v3628 = vpop.f32.mrb[0].mxu0
  %3629 = vmatprep.mubr.f32.mxu0 0.0
  %v3630 = vand.u32 %v2704, 4294901760
  %v3631 = vsub.f32 %v2704, %v3630
  %v3632 = vand.u32 %v3631, 4294901760
  %3633 = vmatmul.mubr.f32.gmra.mrb[0].mxu0 %v3632
  %v3634 = vpop.f32.mrb[0].mxu0
  %v3635 = vadd.f32 %v3409, %v3634
  %v3636 = vpop.f32.mrb[0].mxu0
  %3637 = vmatprep.mubr.f32.mxu0 0.0
  %v3638 = vand.u32 %v2707, 4294901760
  %v3639 = vsub.f32 %v2707, %v3638
  %v3640 = vand.u32 %v3639, 4294901760
  %3641 = vmatmul.mubr.f32.gmra.mrb[0].mxu0 %v3640
  %v3642 = vpop.f32.mrb[0].mxu0
  %v3643 = vadd.f32 %v3416, %v3642
  %v3644 = vpop.f32.mrb[0].mxu0
  %3645 = vmatprep.mubr.f32.mxu0 0.0
  %v3646 = vand.u32 %v2712, 4294901760
  %v3647 = vsub.f32 %v2712, %v3646
  %v3648 = vand.u32 %v3647, 4294901760
  %3649 = vmatmul.mubr.f32.gmra.mrb[0].mxu0 %v3648
  %v3650 = vpop.f32.mrb[0].mxu0
  %v3651 = vadd.f32 %v3423, %v3650
  %v3652 = vpop.f32.mrb[0].mxu0
  %3653 = vmatprep.mubr.f32.mxu0 0.0
  %v3654 = vand.u32 %v2715, 4294901760
  %v3655 = vsub.f32 %v2715, %v3654
  %v3656 = vand.u32 %v3655, 4294901760
  %3657 = vmatmul.mubr.f32.gmra.mrb[0].mxu0 %v3656
  %v3658 = vpop.f32.mrb[0].mxu0
  %v3659 = vadd.f32 %v3430, %v3658
  %v3660 = vpop.f32.mrb[0].mxu0
  %3661 = vmatprep.mubr.f32.mxu0 0.0
  %v3662 = vand.u32 %v2720, 4294901760
  %v3663 = vsub.f32 %v2720, %v3662
  %v3664 = vand.u32 %v3663, 4294901760
  %3665 = vmatmul.mubr.f32.gmra.mrb[0].mxu0 %v3664
  %v3666 = vpop.f32.mrb[0].mxu0
  %v3667 = vadd.f32 %v3437, %v3666
  %v3668 = vpop.f32.mrb[0].mxu0
  %3669 = vmatprep.mubr.f32.mxu0 0.0
  %v3670 = vand.u32 %v2725, 4294901760
  %v3671 = vsub.f32 %v2725, %v3670
  %v3672 = vand.u32 %v3671, 4294901760
  %3673 = vmatmul.mubr.f32.gmra.mrb[0].mxu0 %v3672
  %v3674 = vpop.f32.mrb[0].mxu0
  %v3675 = vadd.f32 %v3444, %v3674
  %v3676 = vpop.f32.mrb[0].mxu0
  %3677 = vmatprep.mubr.f32.mxu0 0.0
  %v3678 = vand.u32 %v2726, 4294901760
  %v3679 = vsub.f32 %v2726, %v3678
  %v3680 = vand.u32 %v3679, 4294901760
  %3681 = vmatmul.mubr.f32.gmra.mrb[0].mxu0 %v3680
  %v3682 = vpop.f32.mrb[0].mxu0
  %v3683 = vadd.f32 %v3451, %v3682
  %v3684 = vpop.f32.mrb[0].mxu0
  %3685 = vmatprep.mubr.f32.mxu0 0.0
  %v3686 = vand.u32 %v2727, 4294901760
  %v3687 = vsub.f32 %v2727, %v3686
  %v3688 = vand.u32 %v3687, 4294901760
  %3689 = vmatmul.mubr.f32.gmra.mrb[0].mxu0 %v3688
  %v3690 = vpop.f32.mrb[0].mxu0
  %v3691 = vadd.f32 %v3458, %v3690
  %v3692 = vpop.f32.mrb[0].mxu0
  %3693 = vmatprep.mubr.f32.mxu0 0.0
  %v3694 = vand.u32 %v2728, 4294901760
  %v3695 = vsub.f32 %v2728, %v3694
  %v3696 = vand.u32 %v3695, 4294901760
  %3697 = vmatmul.mubr.f32.gmra.mrb[0].mxu0 %v3696
  %v3698 = vpop.f32.mrb[0].mxu0
  %v3699 = vadd.f32 %v3465, %v3698
  %v3700 = vpop.f32.mrb[0].mxu0
  %3701 = vmatprep.mubr.f32.mxu0 0.0
  %v3702 = vand.u32 %v2729, 4294901760
  %v3703 = vsub.f32 %v2729, %v3702
  %v3704 = vand.u32 %v3703, 4294901760
  %3705 = vmatmul.mubr.f32.gmra.mrb[0].mxu0 %v3704
  %v3706 = vpop.f32.mrb[0].mxu0
  %v3707 = vadd.f32 %v3472, %v3706
  %v3708 = vpop.f32.mrb[0].mxu0
  %3709 = vmatprep.mubr.f32.mxu0 0.0
  %v3710 = vand.u32 %v2730, 4294901760
  %v3711 = vsub.f32 %v2730, %v3710
  %v3712 = vand.u32 %v3711, 4294901760
  %3713 = vmatmul.mubr.f32.gmra.mrb[0].mxu0 %v3712
  %v3714 = vpop.f32.mrb[0].mxu0
  %v3715 = vadd.f32 %v3479, %v3714
  %v3716 = vpop.f32.mrb[0].mxu0
  %3717 = vmatprep.mubr.f32.mxu0 0.0
  %v3718 = vand.u32 %v2731, 4294901760
  %v3719 = vsub.f32 %v2731, %v3718
  %v3720 = vand.u32 %v3719, 4294901760
  %3721 = vmatmul.mubr.f32.gmra.mrb[0].mxu0 %v3720
  %v3722 = vpop.f32.mrb[0].mxu0
  %v3723 = vadd.f32 %v3486, %v3722
  %v3724 = vpop.f32.mrb[0].mxu0
  %3725 = vmatprep.mubr.f32.mxu0 0.0
  %v3726 = vand.u32 %v2732, 4294901760
  %v3727 = vsub.f32 %v2732, %v3726
  %v3728 = vand.u32 %v3727, 4294901760
  %3729 = vmatmul.mubr.f32.gmra.mrb[0].mxu0 %v3728
  %v3730 = vpop.f32.mrb[0].mxu0
  %v3731 = vadd.f32 %v3493, %v3730
  %v3732 = vpop.f32.mrb[0].mxu0
  %3733 = vmatprep.mubr.f32.mxu0 0.0
  %v3734 = vand.u32 %v2733, 4294901760
  %v3735 = vsub.f32 %v2733, %v3734
  %v3736 = vand.u32 %v3735, 4294901760
  %3737 = vmatmul.mubr.f32.gmra.mrb[0].mxu0 %v3736
  %v3738 = vpop.f32.mrb[0].mxu0
  %v3739 = vadd.f32 %v3500, %v3738
  %v3740 = vpop.f32.mrb[0].mxu0
  %3741 = vmatprep.mubr.f32.mxu0 0.0
  %v3742 = vand.u32 %v2734, 4294901760
  %v3743 = vsub.f32 %v2734, %v3742
  %v3744 = vand.u32 %v3743, 4294901760
  %3745 = vmatmul.mubr.f32.gmra.mrb[0].mxu0 %v3744
  %v3746 = vpop.f32.mrb[0].mxu0
  %v3747 = vadd.f32 %v3507, %v3746
  %v3748 = vpop.f32.mrb[0].mxu0
  %3749 = vmatprep.mubr.f32.mxu0 0.0
  %v3750 = vand.u32 %v2735, 4294901760
  %v3751 = vsub.f32 %v2735, %v3750
  %v3752 = vand.u32 %v3751, 4294901760
  %3753 = vmatmul.mubr.f32.gmra.mrb[0].mxu0 %v3752
  %v3754 = vpop.f32.mrb[0].mxu0
  %v3755 = vadd.f32 %v3514, %v3754
  %v3756 = vpop.f32.mrb[0].mxu0
  %3757 = vdwg.mxu0
  %3758 = vmatprep.subr.mxu0 0.0
  %v3759 = vsub.f32 %v199, %v199
  %v3760 = vand.u32 %v3759, 4294901760
  %3761 = vmatpush1.msra.mxu0 %v3760
  %3762 = vmatprep.subr.mxu0 0.0
  %v3763 = vsub.f32 %v200, %v200
  %v3764 = vand.u32 %v3763, 4294901760
  %3765 = vmatpush1.msra.mxu0 %v3764
  %3766 = vmatprep.subr.mxu0 0.0
  %v3767 = vsub.f32 %v201, %v201
  %v3768 = vand.u32 %v3767, 4294901760
  %3769 = vmatpush1.msra.mxu0 %v3768
  %3770 = vmatprep.subr.mxu0 0.0
  %v3771 = vsub.f32 %v202, %v202
  %v3772 = vand.u32 %v3771, 4294901760
  %3773 = vmatpush1.msra.mxu0 %v3772
  %3774 = vmatprep.subr.mxu0 0.0
  %v3775 = vsub.f32 %v203, %v203
  %v3776 = vand.u32 %v3775, 4294901760
  %3777 = vmatpush1.msra.mxu0 %v3776
  %3778 = vmatprep.subr.mxu0 0.0
  %v3779 = vsub.f32 %v204, %v204
  %v3780 = vand.u32 %v3779, 4294901760
  %3781 = vmatpush1.msra.mxu0 %v3780
  %3782 = vmatprep.subr.mxu0 0.0
  %v3783 = vsub.f32 %v205, %v205
  %v3784 = vand.u32 %v3783, 4294901760
  %3785 = vmatpush1.msra.mxu0 %v3784
  %3786 = vmatprep.subr.mxu0 0.0
  %v3787 = vsub.f32 %v206, %v206
  %v3788 = vand.u32 %v3787, 4294901760
  %3789 = vmatpush1.msra.mxu0 %v3788
  %3790 = vmatprep.subr.mxu0 0.0
  %v3791 = vsub.f32 %v207, %v207
  %v3792 = vand.u32 %v3791, 4294901760
  %3793 = vmatpush1.msra.mxu0 %v3792
  %3794 = vmatprep.subr.mxu0 0.0
  %v3795 = vsub.f32 %v208, %v208
  %v3796 = vand.u32 %v3795, 4294901760
  %3797 = vmatpush1.msra.mxu0 %v3796
  %3798 = vmatprep.subr.mxu0 0.0
  %v3799 = vsub.f32 %v209, %v209
  %v3800 = vand.u32 %v3799, 4294901760
  %3801 = vmatpush1.msra.mxu0 %v3800
  %3802 = vmatprep.subr.mxu0 0.0
  %v3803 = vsub.f32 %v210, %v210
  %v3804 = vand.u32 %v3803, 4294901760
  %3805 = vmatpush1.msra.mxu0 %v3804
  %3806 = vmatprep.subr.mxu0 0.0
  %v3807 = vsub.f32 %v211, %v211
  %v3808 = vand.u32 %v3807, 4294901760
  %3809 = vmatpush1.msra.mxu0 %v3808
  %3810 = vmatprep.subr.mxu0 0.0
  %v3811 = vsub.f32 %v212, %v212
  %v3812 = vand.u32 %v3811, 4294901760
  %3813 = vmatpush1.msra.mxu0 %v3812
  %3814 = vmatprep.subr.mxu0 0.0
  %v3815 = vsub.f32 %v213, %v213
  %v3816 = vand.u32 %v3815, 4294901760
  %3817 = vmatpush1.msra.mxu0 %v3816
  %3818 = vmatprep.subr.mxu0 0.0
  %v3819 = vsub.f32 %v214, %v214
  %v3820 = vand.u32 %v3819, 4294901760
  %3821 = vmatpush1.msra.mxu0 %v3820
  %3822 = vmatprep.subr.mxu0 0.0
  %3823 = vmatpush1.msra.mxu0 0.0
  %3824 = vmatprep.subr.mxu0 0.0
  %3825 = vmatpush1.msra.mxu0 0.0
  %3826 = vmatprep.subr.mxu0 0.0
  %3827 = vmatpush1.msra.mxu0 0.0
  %3828 = vmatprep.subr.mxu0 0.0
  %3829 = vmatpush1.msra.mxu0 0.0
  %3830 = vmatprep.subr.mxu0 0.0
  %3831 = vmatpush1.msra.mxu0 0.0
  %3832 = vmatprep.subr.mxu0 0.0
  %3833 = vmatpush1.msra.mxu0 0.0
  %3834 = vmatprep.subr.mxu0 0.0
  %3835 = vmatpush1.msra.mxu0 0.0
  %3836 = vmatprep.subr.mxu0 0.0
  %3837 = vmatpush1.msra.mxu0 0.0
  %3838 = vmatprep.subr.mxu0 0.0
  %3839 = vmatpush1.msra.mxu0 0.0
  %3840 = vmatprep.subr.mxu0 0.0
  %3841 = vmatpush1.msra.mxu0 0.0
  %3842 = vmatprep.subr.mxu0 0.0
  %3843 = vmatpush1.msra.mxu0 0.0
  %3844 = vmatprep.subr.mxu0 0.0
  %3845 = vmatpush1.msra.mxu0 0.0
  %3846 = vmatprep.subr.mxu0 0.0
  %3847 = vmatpush1.msra.mxu0 0.0
  %3848 = vmatprep.subr.mxu0 0.0
  %3849 = vmatpush1.msra.mxu0 0.0
  %3850 = vmatprep.subr.mxu0 0.0
  %3851 = vmatpush1.msra.mxu0 0.0
  %3852 = vmatprep.subr.mxu0 0.0
  %3853 = vmatpush1.msra.mxu0 0.0
  %3854 = vmatprep.mubr.f32.mxu0 0.0
  %v3855 = vand.u32 %v2680, 4294901760
  %3856 = vmatmul.mubr.f32.gmra.mrb[0].mxu0 %v3855
  %v3857 = vpop.f32.mrb[0].mxu0
  %v3858 = vadd.f32 %v3587, %v3857
  %v3859 = vpop.f32.mrb[0].mxu0
  %3860 = vmatprep.mubr.f32.mxu0 0.0
  %v3861 = vand.u32 %v2683, 4294901760
  %3862 = vmatmul.mubr.f32.gmra.mrb[0].mxu0 %v3861
  %v3863 = vpop.f32.mrb[0].mxu0
  %v3864 = vadd.f32 %v3595, %v3863
  %v3865 = vpop.f32.mrb[0].mxu0
  %3866 = vmatprep.mubr.f32.mxu0 0.0
  %v3867 = vand.u32 %v2688, 4294901760
  %3868 = vmatmul.mubr.f32.gmra.mrb[0].mxu0 %v3867
  %v3869 = vpop.f32.mrb[0].mxu0
  %v3870 = vadd.f32 %v3603, %v3869
  %v3871 = vpop.f32.mrb[0].mxu0
  %3872 = vmatprep.mubr.f32.mxu0 0.0
  %v3873 = vand.u32 %v2691, 4294901760
  %3874 = vmatmul.mubr.f32.gmra.mrb[0].mxu0 %v3873
  %v3875 = vpop.f32.mrb[0].mxu0
  %v3876 = vadd.f32 %v3611, %v3875
  %v3877 = vpop.f32.mrb[0].mxu0
  %3878 = vmatprep.mubr.f32.mxu0 0.0
  %v3879 = vand.u32 %v2696, 4294901760
  %3880 = vmatmul.mubr.f32.gmra.mrb[0].mxu0 %v3879
  %v3881 = vpop.f32.mrb[0].mxu0
  %v3882 = vadd.f32 %v3619, %v3881
  %v3883 = vpop.f32.mrb[0].mxu0
  %3884 = vmatprep.mubr.f32.mxu0 0.0
  %v3885 = vand.u32 %v2699, 4294901760
  %3886 = vmatmul.mubr.f32.gmra.mrb[0].mxu0 %v3885
  %v3887 = vpop.f32.mrb[0].mxu0
  %v3888 = vadd.f32 %v3627, %v3887
  %v3889 = vpop.f32.mrb[0].mxu0
  %3890 = vmatprep.mubr.f32.mxu0 0.0
  %v3891 = vand.u32 %v2704, 4294901760
  %3892 = vmatmul.mubr.f32.gmra.mrb[0].mxu0 %v3891
  %v3893 = vpop.f32.mrb[0].mxu0
  %v3894 = vadd.f32 %v3635, %v3893
  %v3895 = vpop.f32.mrb[0].mxu0
  %3896 = vmatprep.mubr.f32.mxu0 0.0
  %v3897 = vand.u32 %v2707, 4294901760
  %3898 = vmatmul.mubr.f32.gmra.mrb[0].mxu0 %v3897
  %v3899 = vpop.f32.mrb[0].mxu0
  %v3900 = vadd.f32 %v3643, %v3899
  %v3901 = vpop.f32.mrb[0].mxu0
  %3902 = vmatprep.mubr.f32.mxu0 0.0
  %v3903 = vand.u32 %v2712, 4294901760
  %3904 = vmatmul.mubr.f32.gmra.mrb[0].mxu0 %v3903
  %v3905 = vpop.f32.mrb[0].mxu0
  %v3906 = vadd.f32 %v3651, %v3905
  %v3907 = vpop.f32.mrb[0].mxu0
  %3908 = vmatprep.mubr.f32.mxu0 0.0
  %v3909 = vand.u32 %v2715, 4294901760
  %3910 = vmatmul.mubr.f32.gmra.mrb[0].mxu0 %v3909
  %v3911 = vpop.f32.mrb[0].mxu0
  %v3912 = vadd.f32 %v3659, %v3911
  %v3913 = vpop.f32.mrb[0].mxu0
  %3914 = vmatprep.mubr.f32.mxu0 0.0
  %v3915 = vand.u32 %v2720, 4294901760
  %3916 = vmatmul.mubr.f32.gmra.mrb[0].mxu0 %v3915
  %v3917 = vpop.f32.mrb[0].mxu0
  %v3918 = vadd.f32 %v3667, %v3917
  %v3919 = vpop.f32.mrb[0].mxu0
  %3920 = vmatprep.mubr.f32.mxu0 0.0
  %v3921 = vand.u32 %v2725, 4294901760
  %3922 = vmatmul.mubr.f32.gmra.mrb[0].mxu0 %v3921
  %v3923 = vpop.f32.mrb[0].mxu0
  %v3924 = vadd.f32 %v3675, %v3923
  %v3925 = vpop.f32.mrb[0].mxu0
  %3926 = vmatprep.mubr.f32.mxu0 0.0
  %v3927 = vand.u32 %v2726, 4294901760
  %3928 = vmatmul.mubr.f32.gmra.mrb[0].mxu0 %v3927
  %v3929 = vpop.f32.mrb[0].mxu0
  %v3930 = vadd.f32 %v3683, %v3929
  %v3931 = vpop.f32.mrb[0].mxu0
  %3932 = vmatprep.mubr.f32.mxu0 0.0
  %v3933 = vand.u32 %v2727, 4294901760
  %3934 = vmatmul.mubr.f32.gmra.mrb[0].mxu0 %v3933
  %v3935 = vpop.f32.mrb[0].mxu0
  %v3936 = vadd.f32 %v3691, %v3935
  %v3937 = vpop.f32.mrb[0].mxu0
  %3938 = vmatprep.mubr.f32.mxu0 0.0
  %v3939 = vand.u32 %v2728, 4294901760
  %3940 = vmatmul.mubr.f32.gmra.mrb[0].mxu0 %v3939
  %v3941 = vpop.f32.mrb[0].mxu0
  %v3942 = vadd.f32 %v3699, %v3941
  %v3943 = vpop.f32.mrb[0].mxu0
  %3944 = vmatprep.mubr.f32.mxu0 0.0
  %v3945 = vand.u32 %v2729, 4294901760
  %3946 = vmatmul.mubr.f32.gmra.mrb[0].mxu0 %v3945
  %v3947 = vpop.f32.mrb[0].mxu0
  %v3948 = vadd.f32 %v3707, %v3947
  %v3949 = vpop.f32.mrb[0].mxu0
  %3950 = vmatprep.mubr.f32.mxu0 0.0
  %v3951 = vand.u32 %v2730, 4294901760
  %3952 = vmatmul.mubr.f32.gmra.mrb[0].mxu0 %v3951
  %v3953 = vpop.f32.mrb[0].mxu0
  %v3954 = vadd.f32 %v3715, %v3953
  %v3955 = vpop.f32.mrb[0].mxu0
  %3956 = vmatprep.mubr.f32.mxu0 0.0
  %v3957 = vand.u32 %v2731, 4294901760
  %3958 = vmatmul.mubr.f32.gmra.mrb[0].mxu0 %v3957
  %v3959 = vpop.f32.mrb[0].mxu0
  %v3960 = vadd.f32 %v3723, %v3959
  %v3961 = vpop.f32.mrb[0].mxu0
  %3962 = vmatprep.mubr.f32.mxu0 0.0
  %v3963 = vand.u32 %v2732, 4294901760
  %3964 = vmatmul.mubr.f32.gmra.mrb[0].mxu0 %v3963
  %v3965 = vpop.f32.mrb[0].mxu0
  %v3966 = vadd.f32 %v3731, %v3965
  %v3967 = vpop.f32.mrb[0].mxu0
  %3968 = vmatprep.mubr.f32.mxu0 0.0
  %v3969 = vand.u32 %v2733, 4294901760
  %3970 = vmatmul.mubr.f32.gmra.mrb[0].mxu0 %v3969
  %v3971 = vpop.f32.mrb[0].mxu0
  %v3972 = vadd.f32 %v3739, %v3971
  %v3973 = vpop.f32.mrb[0].mxu0
  %3974 = vmatprep.mubr.f32.mxu0 0.0
  %v3975 = vand.u32 %v2734, 4294901760
  %3976 = vmatmul.mubr.f32.gmra.mrb[0].mxu0 %v3975
  %v3977 = vpop.f32.mrb[0].mxu0
  %v3978 = vadd.f32 %v3747, %v3977
  %v3979 = vpop.f32.mrb[0].mxu0
  %3980 = vmatprep.mubr.f32.mxu0 0.0
  %v3981 = vand.u32 %v2735, 4294901760
  %3982 = vmatmul.mubr.f32.gmra.mrb[0].mxu0 %v3981
  %v3983 = vpop.f32.mrb[0].mxu0
  %v3984 = vadd.f32 %v3755, %v3983
  %v3985 = vpop.f32.mrb[0].mxu0
  %3986 = vdwg.mxu0
  %3987 = vmatprep.subr.mxu0 0.0
  %3988 = vmatpush1.msra.mxu0 %v199
  %3989 = vmatprep.subr.mxu0 0.0
  %3990 = vmatpush1.msra.mxu0 %v200
  %3991 = vmatprep.subr.mxu0 0.0
  %3992 = vmatpush1.msra.mxu0 %v201
  %3993 = vmatprep.subr.mxu0 0.0
  %3994 = vmatpush1.msra.mxu0 %v202
  %3995 = vmatprep.subr.mxu0 0.0
  %3996 = vmatpush1.msra.mxu0 %v203
  %3997 = vmatprep.subr.mxu0 0.0
  %3998 = vmatpush1.msra.mxu0 %v204
  %3999 = vmatprep.subr.mxu0 0.0
  %4000 = vmatpush1.msra.mxu0 %v205
  %4001 = vmatprep.subr.mxu0 0.0
  %4002 = vmatpush1.msra.mxu0 %v206
  %4003 = vmatprep.subr.mxu0 0.0
  %4004 = vmatpush1.msra.mxu0 %v207
  %4005 = vmatprep.subr.mxu0 0.0
  %4006 = vmatpush1.msra.mxu0 %v208
  %4007 = vmatprep.subr.mxu0 0.0
  %4008 = vmatpush1.msra.mxu0 %v209
  %4009 = vmatprep.subr.mxu0 0.0
  %4010 = vmatpush1.msra.mxu0 %v210
  %4011 = vmatprep.subr.mxu0 0.0
  %4012 = vmatpush1.msra.mxu0 %v211
  %4013 = vmatprep.subr.mxu0 0.0
  %4014 = vmatpush1.msra.mxu0 %v212
  %4015 = vmatprep.subr.mxu0 0.0
  %4016 = vmatpush1.msra.mxu0 %v213
  %4017 = vmatprep.subr.mxu0 0.0
  %4018 = vmatpush1.msra.mxu0 %v214
  %4019 = vmatprep.subr.mxu0 0.0
  %4020 = vmatpush1.msra.mxu0 0.0
  %4021 = vmatprep.subr.mxu0 0.0
  %4022 = vmatpush1.msra.mxu0 0.0
  %4023 = vmatprep.subr.mxu0 0.0
  %4024 = vmatpush1.msra.mxu0 0.0
  %4025 = vmatprep.subr.mxu0 0.0
  %4026 = vmatpush1.msra.mxu0 0.0
  %4027 = vmatprep.subr.mxu0 0.0
  %4028 = vmatpush1.msra.mxu0 0.0
  %4029 = vmatprep.subr.mxu0 0.0
  %4030 = vmatpush1.msra.mxu0 0.0
  %4031 = vmatprep.subr.mxu0 0.0
  %4032 = vmatpush1.msra.mxu0 0.0
  %4033 = vmatprep.subr.mxu0 0.0
  %4034 = vmatpush1.msra.mxu0 0.0
  %4035 = vmatprep.subr.mxu0 0.0
  %4036 = vmatpush1.msra.mxu0 0.0
  %4037 = vmatprep.subr.mxu0 0.0
  %4038 = vmatpush1.msra.mxu0 0.0
  %4039 = vmatprep.subr.mxu0 0.0
  %4040 = vmatpush1.msra.mxu0 0.0
  %4041 = vmatprep.subr.mxu0 0.0
  %4042 = vmatpush1.msra.mxu0 0.0
  %4043 = vmatprep.subr.mxu0 0.0
  %4044 = vmatpush1.msra.mxu0 0.0
  %4045 = vmatprep.subr.mxu0 0.0
  %4046 = vmatpush1.msra.mxu0 0.0
  %4047 = vmatprep.subr.mxu0 0.0
  %4048 = vmatpush1.msra.mxu0 0.0
  %4049 = vmatprep.subr.mxu0 0.0
  %4050 = vmatpush1.msra.mxu0 0.0
  %4051 = vmatprep.mubr.f32.mxu0 0.0
  %v4052 = vand.u32 %v2680, 4294901760
  %4053 = vmatmul.mubr.f32.gmra.mrb[0].mxu0 %v4052
  %v4054 = vpop.f32.mrb[0].mxu0
  %v4055 = vadd.f32 %v3858, %v4054
  %v4056 = vpop.f32.mrb[0].mxu0
  %4057 = vmatprep.mubr.f32.mxu0 0.0
  %v4058 = vand.u32 %v2683, 4294901760
  %4059 = vmatmul.mubr.f32.gmra.mrb[0].mxu0 %v4058
  %v4060 = vpop.f32.mrb[0].mxu0
  %v4061 = vadd.f32 %v3864, %v4060
  %v4062 = vpop.f32.mrb[0].mxu0
  %4063 = vmatprep.mubr.f32.mxu0 0.0
  %v4064 = vand.u32 %v2688, 4294901760
  %4065 = vmatmul.mubr.f32.gmra.mrb[0].mxu0 %v4064
  %v4066 = vpop.f32.mrb[0].mxu0
  %v4067 = vadd.f32 %v3870, %v4066
  %v4068 = vpop.f32.mrb[0].mxu0
  %4069 = vmatprep.mubr.f32.mxu0 0.0
  %v4070 = vand.u32 %v2691, 4294901760
  %4071 = vmatmul.mubr.f32.gmra.mrb[0].mxu0 %v4070
  %v4072 = vpop.f32.mrb[0].mxu0
  %v4073 = vadd.f32 %v3876, %v4072
  %v4074 = vpop.f32.mrb[0].mxu0
  %4075 = vmatprep.mubr.f32.mxu0 0.0
  %v4076 = vand.u32 %v2696, 4294901760
  %4077 = vmatmul.mubr.f32.gmra.mrb[0].mxu0 %v4076
  %v4078 = vpop.f32.mrb[0].mxu0
  %v4079 = vadd.f32 %v3882, %v4078
  %v4080 = vpop.f32.mrb[0].mxu0
  %4081 = vmatprep.mubr.f32.mxu0 0.0
  %v4082 = vand.u32 %v2699, 4294901760
  %4083 = vmatmul.mubr.f32.gmra.mrb[0].mxu0 %v4082
  %v4084 = vpop.f32.mrb[0].mxu0
  %v4085 = vadd.f32 %v3888, %v4084
  %v4086 = vpop.f32.mrb[0].mxu0
  %4087 = vmatprep.mubr.f32.mxu0 0.0
  %v4088 = vand.u32 %v2704, 4294901760
  %4089 = vmatmul.mubr.f32.gmra.mrb[0].mxu0 %v4088
  %v4090 = vpop.f32.mrb[0].mxu0
  %v4091 = vadd.f32 %v3894, %v4090
  %v4092 = vpop.f32.mrb[0].mxu0
  %4093 = vmatprep.mubr.f32.mxu0 0.0
  %v4094 = vand.u32 %v2707, 4294901760
  %4095 = vmatmul.mubr.f32.gmra.mrb[0].mxu0 %v4094
  %v4096 = vpop.f32.mrb[0].mxu0
  %v4097 = vadd.f32 %v3900, %v4096
  %v4098 = vpop.f32.mrb[0].mxu0
  %4099 = vmatprep.mubr.f32.mxu0 0.0
  %v4100 = vand.u32 %v2712, 4294901760
  %4101 = vmatmul.mubr.f32.gmra.mrb[0].mxu0 %v4100
  %v4102 = vpop.f32.mrb[0].mxu0
  %v4103 = vadd.f32 %v3906, %v4102
  %v4104 = vpop.f32.mrb[0].mxu0
  %4105 = vmatprep.mubr.f32.mxu0 0.0
  %v4106 = vand.u32 %v2715, 4294901760
  %4107 = vmatmul.mubr.f32.gmra.mrb[0].mxu0 %v4106
  %v4108 = vpop.f32.mrb[0].mxu0
  %v4109 = vadd.f32 %v3912, %v4108
  %v4110 = vpop.f32.mrb[0].mxu0
  %4111 = vmatprep.mubr.f32.mxu0 0.0
  %v4112 = vand.u32 %v2720, 4294901760
  %4113 = vmatmul.mubr.f32.gmra.mrb[0].mxu0 %v4112
  %v4114 = vpop.f32.mrb[0].mxu0
  %v4115 = vadd.f32 %v3918, %v4114
  %v4116 = vpop.f32.mrb[0].mxu0
  %4117 = vmatprep.mubr.f32.mxu0 0.0
  %v4118 = vand.u32 %v2725, 4294901760
  %4119 = vmatmul.mubr.f32.gmra.mrb[0].mxu0 %v4118
  %v4120 = vpop.f32.mrb[0].mxu0
  %v4121 = vadd.f32 %v3924, %v4120
  %v4122 = vpop.f32.mrb[0].mxu0
  %4123 = vmatprep.mubr.f32.mxu0 0.0
  %v4124 = vand.u32 %v2726, 4294901760
  %4125 = vmatmul.mubr.f32.gmra.mrb[0].mxu0 %v4124
  %v4126 = vpop.f32.mrb[0].mxu0
  %v4127 = vadd.f32 %v3930, %v4126
  %v4128 = vpop.f32.mrb[0].mxu0
  %4129 = vmatprep.mubr.f32.mxu0 0.0
  %v4130 = vand.u32 %v2727, 4294901760
  %4131 = vmatmul.mubr.f32.gmra.mrb[0].mxu0 %v4130
  %v4132 = vpop.f32.mrb[0].mxu0
  %v4133 = vadd.f32 %v3936, %v4132
  %v4134 = vpop.f32.mrb[0].mxu0
  %4135 = vmatprep.mubr.f32.mxu0 0.0
  %v4136 = vand.u32 %v2728, 4294901760
  %4137 = vmatmul.mubr.f32.gmra.mrb[0].mxu0 %v4136
  %v4138 = vpop.f32.mrb[0].mxu0
  %v4139 = vadd.f32 %v3942, %v4138
  %v4140 = vpop.f32.mrb[0].mxu0
  %4141 = vmatprep.mubr.f32.mxu0 0.0
  %v4142 = vand.u32 %v2729, 4294901760
  %4143 = vmatmul.mubr.f32.gmra.mrb[0].mxu0 %v4142
  %v4144 = vpop.f32.mrb[0].mxu0
  %v4145 = vadd.f32 %v3948, %v4144
  %v4146 = vpop.f32.mrb[0].mxu0
  %4147 = vmatprep.mubr.f32.mxu0 0.0
  %v4148 = vand.u32 %v2730, 4294901760
  %4149 = vmatmul.mubr.f32.gmra.mrb[0].mxu0 %v4148
  %v4150 = vpop.f32.mrb[0].mxu0
  %v4151 = vadd.f32 %v3954, %v4150
  %v4152 = vpop.f32.mrb[0].mxu0
  %4153 = vmatprep.mubr.f32.mxu0 0.0
  %v4154 = vand.u32 %v2731, 4294901760
  %4155 = vmatmul.mubr.f32.gmra.mrb[0].mxu0 %v4154
  %v4156 = vpop.f32.mrb[0].mxu0
  %v4157 = vadd.f32 %v3960, %v4156
  %v4158 = vpop.f32.mrb[0].mxu0
  %4159 = vmatprep.mubr.f32.mxu0 0.0
  %v4160 = vand.u32 %v2732, 4294901760
  %4161 = vmatmul.mubr.f32.gmra.mrb[0].mxu0 %v4160
  %v4162 = vpop.f32.mrb[0].mxu0
  %v4163 = vadd.f32 %v3966, %v4162
  %v4164 = vpop.f32.mrb[0].mxu0
  %4165 = vmatprep.mubr.f32.mxu0 0.0
  %v4166 = vand.u32 %v2733, 4294901760
  %4167 = vmatmul.mubr.f32.gmra.mrb[0].mxu0 %v4166
  %v4168 = vpop.f32.mrb[0].mxu0
  %v4169 = vadd.f32 %v3972, %v4168
  %v4170 = vpop.f32.mrb[0].mxu0
  %4171 = vmatprep.mubr.f32.mxu0 0.0
  %v4172 = vand.u32 %v2734, 4294901760
  %4173 = vmatmul.mubr.f32.gmra.mrb[0].mxu0 %v4172
  %v4174 = vpop.f32.mrb[0].mxu0
  %v4175 = vadd.f32 %v3978, %v4174
  %v4176 = vpop.f32.mrb[0].mxu0
  %4177 = vmatprep.mubr.f32.mxu0 0.0
  %v4178 = vand.u32 %v2735, 4294901760
  %4179 = vmatmul.mubr.f32.gmra.mrb[0].mxu0 %v4178
  %v4180 = vpop.f32.mrb[0].mxu0
  %v4181 = vadd.f32 %v3984, %v4180
  %v4182 = vpop.f32.mrb[0].mxu0
  %4183 = vdwg.mxu0
  %v4184 = vmul.f32 %v4055, 0.25
  %v4185 = vmul.f32 %v4061, 0.25
  %v4186 = vmul.f32 %v4067, 0.25
  %v4187 = vmul.f32 %v4073, 0.25
  %v4188 = vmul.f32 %v4079, 0.25
  %v4189 = vmul.f32 %v4085, 0.25
  %v4190 = vmul.f32 %v4091, 0.25
  %v4191 = vmul.f32 %v4097, 0.25
  %v4192 = vmul.f32 %v4103, 0.25
  %v4193 = vmul.f32 %v4109, 0.25
  %v4194 = vmul.f32 %v4115, 0.25
  %v4195 = vmul.f32 %v4121, 0.25
  %v4196 = vmul.f32 %v4127, 0.25
  %v4197 = vmul.f32 %v4133, 0.25
  %v4198 = vmul.f32 %v4139, 0.25
  %v4199 = vmul.f32 %v4145, 0.25
  %v4200 = vmul.f32 %v4151, 0.25
  %v4201 = vmul.f32 %v4157, 0.25
  %v4202 = vmul.f32 %v4163, 0.25
  %v4203 = vmul.f32 %v4169, 0.25
  %v4204 = vmul.f32 %v4175, 0.25
  %v4205 = vmul.f32 %v4181, 0.25
  %v4206 = vmul.f32 %v4184, %v4184
  %v4207 = vmul.f32 %v4185, %v4185
  %v4208 = vmul.f32 %v4186, %v4186
  %v4209 = vmul.f32 %v4187, %v4187
  %v4210 = vmul.f32 %v4188, %v4188
  %v4211 = vmul.f32 %v4189, %v4189
  %v4212 = vmul.f32 %v4190, %v4190
  %v4213 = vmul.f32 %v4191, %v4191
  %v4214 = vmul.f32 %v4192, %v4192
  %v4215 = vmul.f32 %v4193, %v4193
  %v4216 = vmul.f32 %v4194, %v4194
  %v4217 = vsub.f32 %v4195, %v4206
  %v4218 = vsub.f32 %v4196, %v4207
  %v4219 = vsub.f32 %v4197, %v4208
  %v4220 = vsub.f32 %v4198, %v4209
  %v4221 = vsub.f32 %v4199, %v4210
  %v4222 = vsub.f32 %v4200, %v4211
  %v4223 = vsub.f32 %v4201, %v4212
  %v4224 = vsub.f32 %v4202, %v4213
  %v4225 = vsub.f32 %v4203, %v4214
  %v4226 = vsub.f32 %v4204, %v4215
  %v4227 = vsub.f32 %v4205, %v4216
  %v4228 = vmax.f32 %v4217, 0.0
  %v4229 = vmax.f32 %v4218, 0.0
  %v4230 = vmax.f32 %v4219, 0.0
  %v4231 = vmax.f32 %v4220, 0.0
  %v4232 = vmax.f32 %v4221, 0.0
  %v4233 = vmax.f32 %v4222, 0.0
  %v4234 = vmax.f32 %v4223, 0.0
  %v4235 = vmax.f32 %v4224, 0.0
  %v4236 = vmax.f32 %v4225, 0.0
  %v4237 = vmax.f32 %v4226, 0.0
  %v4238 = vmax.f32 %v4227, 0.0
  %v4239 = vld [vmem:[%s7] sm:$0xff]
  %v4240 = vld [vmem:[%s7 + $0x8] sm:$0xff]
  %v4241 = vld [vmem:[%s7 + $0x10] sm:$0xff]
  %v4242 = vld [vmem:[%s7 + $0x18] sm:$0xff]
  %v4243 = vld [vmem:[%s7 + $0x20] sm:$0xff]
  %v4244 = vld [vmem:[%s7 + $0x28] sm:$0xff]
  %v4245 = vld [vmem:[%s7 + $0x30] sm:$0xff]
  %v4246 = vld [vmem:[%s7 + $0x38] sm:$0xff]
  %v4247 = vld [vmem:[%s7 + $0x40] sm:$0xff]
  %v4248 = vld [vmem:[%s7 + $0x48] sm:$0xff]
  %v4249 = vld [vmem:[%s7 + $0x50] sm:$0xff]
  %v4250 = vadd.f32 %v4228, 1e-05
  %v4251 = vadd.f32 %v4229, 1e-05
  %v4252 = vadd.f32 %v4230, 1e-05
  %v4253 = vadd.f32 %v4231, 1e-05
  %v4254 = vadd.f32 %v4232, 1e-05
  %v4255 = vadd.f32 %v4233, 1e-05
  %v4256 = vadd.f32 %v4234, 1e-05
  %v4257 = vadd.f32 %v4235, 1e-05
  %v4258 = vadd.f32 %v4236, 1e-05
  %v4259 = vadd.f32 %v4237, 1e-05
  %v4260 = vadd.f32 %v4238, 1e-05
  %v4261 = vrsqrt.pop %v4250
  %v4262 = vrsqrt.pop %v4251
  %v4263 = vrsqrt.pop %v4252
  %v4264 = vrsqrt.pop %v4253
  %v4265 = vrsqrt.pop %v4254
  %v4266 = vrsqrt.pop %v4255
  %v4267 = vrsqrt.pop %v4256
  %v4268 = vrsqrt.pop %v4257
  %v4269 = vrsqrt.pop %v4258
  %v4270 = vrsqrt.pop %v4259
  %v4271 = vrsqrt.pop %v4260
  %v4272 = vmul.f32 %v4239, %v4261
  %v4273 = vmul.f32 %v4240, %v4262
  %v4274 = vmul.f32 %v4241, %v4263
  %v4275 = vmul.f32 %v4242, %v4264
  %v4276 = vmul.f32 %v4243, %v4265
  %v4277 = vmul.f32 %v4244, %v4266
  %v4278 = vmul.f32 %v4245, %v4267
  %v4279 = vmul.f32 %v4246, %v4268
  %v4280 = vmul.f32 %v4247, %v4269
  %v4281 = vmul.f32 %v4248, %v4270
  %v4282 = vmul.f32 %v4249, %v4271
  %v4283 = vld [vmem:[%s8] sm:$0xff]
  %v4284 = vld [vmem:[%s8 + $0x8] sm:$0xff]
  %v4285 = vld [vmem:[%s8 + $0x10] sm:$0xff]
  %v4286 = vld [vmem:[%s8 + $0x18] sm:$0xff]
  %v4287 = vld [vmem:[%s8 + $0x20] sm:$0xff]
  %v4288 = vld [vmem:[%s8 + $0x28] sm:$0xff]
  %v4289 = vld [vmem:[%s8 + $0x30] sm:$0xff]
  %v4290 = vld [vmem:[%s8 + $0x38] sm:$0xff]
  %v4291 = vld [vmem:[%s8 + $0x40] sm:$0xff]
  %v4292 = vld [vmem:[%s8 + $0x48] sm:$0xff]
  %v4293 = vld [vmem:[%s8 + $0x50] sm:$0xff]
  %v4294 = vmul.f32 %v4184, %v4272
  %v4295 = vmul.f32 %v4185, %v4273
  %v4296 = vmul.f32 %v4186, %v4274
  %v4297 = vmul.f32 %v4187, %v4275
  %v4298 = vmul.f32 %v4188, %v4276
  %v4299 = vmul.f32 %v4189, %v4277
  %v4300 = vmul.f32 %v4190, %v4278
  %v4301 = vmul.f32 %v4191, %v4279
  %v4302 = vmul.f32 %v4192, %v4280
  %v4303 = vmul.f32 %v4193, %v4281
  %v4304 = vmul.f32 %v4194, %v4282
  %v4305 = vsub.f32 %v4283, %v4294
  %v4306 = vsub.f32 %v4284, %v4295
  %v4307 = vsub.f32 %v4285, %v4296
  %v4308 = vsub.f32 %v4286, %v4297
  %v4309 = vsub.f32 %v4287, %v4298
  %v4310 = vsub.f32 %v4288, %v4299
  %v4311 = vsub.f32 %v4289, %v4300
  %v4312 = vsub.f32 %v4290, %v4301
  %v4313 = vsub.f32 %v4291, %v4302
  %v4314 = vsub.f32 %v4292, %v4303
  %v4315 = vsub.f32 %v4293, %v4304
  %v4317 = vsel %vm2151, %v4272, 0
  %v4320 = vsel %vm2151, %v4273, 0
  %v4323 = vsel %vm2151, %v4274, 0
  %v4326 = vsel %vm2151, %v4275, 0
  %v4329 = vsel %vm2151, %v4276, 0
  %v4332 = vsel %vm2151, %v4277, 0
  %v4335 = vsel %vm2151, %v4278, 0
  %v4338 = vsel %vm2151, %v4279, 0
  %v4341 = vsel %vm2151, %v4280, 0
  %v4344 = vsel %vm2151, %v4281, 0
  %v4347 = vsel %vm2151, %v4282, 0
  %v4350 = vsel %vm2151, %v4305, 0
  %v4353 = vsel %vm2151, %v4306, 0
  %v4356 = vsel %vm2151, %v4307, 0
  %v4359 = vsel %vm2151, %v4308, 0
  %v4362 = vsel %vm2151, %v4309, 0
  %v4365 = vsel %vm2151, %v4310, 0
  %v4368 = vsel %vm2151, %v4311, 0
  %v4371 = vsel %vm2151, %v4312, 0
  %v4374 = vsel %vm2151, %v4313, 0
  %v4377 = vsel %vm2151, %v4314, 0
  %v4380 = vsel %vm2151, %v4315, 0
  %4382 = vmatprep.subr.mxu0 0.0
  %4383 = vmatpush1.msra.mxu0 %v248
  %4384 = vmatprep.subr.mxu0 0.0
  %4385 = vmatpush1.msra.mxu0 %v249
  %4386 = vmatprep.subr.mxu0 0.0
  %4387 = vmatpush1.msra.mxu0 %v2219
  %4388 = vmatprep.subr.mxu0 0.0
  %4389 = vmatpush1.msra.mxu0 0.0
  %4390 = vmatprep.subr.mxu0 0.0
  %4391 = vmatpush1.msra.mxu0 0.0
  %4392 = vmatprep.subr.mxu0 0.0
  %4393 = vmatpush1.msra.mxu0 0.0
  %4394 = vmatprep.subr.mxu0 0.0
  %4395 = vmatpush1.msra.mxu0 0.0
  %4396 = vmatprep.subr.mxu0 0.0
  %4397 = vmatpush1.msra.mxu0 0.0
  %4398 = vmatprep.subr.mxu0 0.0
  %4399 = vmatpush1.msra.mxu0 0.0
  %4400 = vmatprep.subr.mxu0 0.0
  %4401 = vmatpush1.msra.mxu0 0.0
  %4402 = vmatprep.subr.mxu0 0.0
  %4403 = vmatpush1.msra.mxu0 0.0
  %4404 = vmatprep.subr.mxu0 0.0
  %4405 = vmatpush1.msra.mxu0 0.0
  %4406 = vmatprep.subr.mxu0 0.0
  %4407 = vmatpush1.msra.mxu0 0.0
  %4408 = vmatprep.subr.mxu0 0.0
  %4409 = vmatpush1.msra.mxu0 0.0
  %4410 = vmatprep.subr.mxu0 0.0
  %4411 = vmatpush1.msra.mxu0 0.0
  %4412 = vmatprep.subr.mxu0 0.0
  %4413 = vmatpush1.msra.mxu0 0.0
  %4414 = vmatprep.subr.mxu0 0.0
  %4415 = vmatpush1.msra.mxu0 0.0
  %4416 = vmatprep.subr.mxu0 0.0
  %4417 = vmatpush1.msra.mxu0 0.0
  %4418 = vmatprep.subr.mxu0 0.0
  %4419 = vmatpush1.msra.mxu0 0.0
  %4420 = vmatprep.subr.mxu0 0.0
  %4421 = vmatpush1.msra.mxu0 0.0
  %4422 = vmatprep.subr.mxu0 0.0
  %4423 = vmatpush1.msra.mxu0 0.0
  %4424 = vmatprep.subr.mxu0 0.0
  %4425 = vmatpush1.msra.mxu0 0.0
  %4426 = vmatprep.subr.mxu0 0.0
  %4427 = vmatpush1.msra.mxu0 0.0
  %4428 = vmatprep.subr.mxu0 0.0
  %4429 = vmatpush1.msra.mxu0 0.0
  %4430 = vmatprep.subr.mxu0 0.0
  %4431 = vmatpush1.msra.mxu0 0.0
  %4432 = vmatprep.subr.mxu0 0.0
  %4433 = vmatpush1.msra.mxu0 0.0
  %4434 = vmatprep.subr.mxu0 0.0
  %4435 = vmatpush1.msra.mxu0 0.0
  %4436 = vmatprep.subr.mxu0 0.0
  %4437 = vmatpush1.msra.mxu0 0.0
  %4438 = vmatprep.subr.mxu0 0.0
  %4439 = vmatpush1.msra.mxu0 0.0
  %4440 = vmatprep.subr.mxu0 0.0
  %4441 = vmatpush1.msra.mxu0 0.0
  %4442 = vmatprep.subr.mxu0 0.0
  %4443 = vmatpush1.msra.mxu0 0.0
  %4444 = vmatprep.subr.mxu0 0.0
  %4445 = vmatpush1.msra.mxu0 0.0
  %4446 = vmatprep.mubr.f32.mxu0 0.0
  %4447 = vmatmul.mubr.f32.gmra.mrb[0].mxu0 %v4317
  %v4448 = vpop.f32.mrb[0].mxu0
  %v4449 = vadd.f32 0.0, %v4448
  %v4450 = vpop.f32.mrb[0].mxu0
  %4451 = vmatprep.mubr.f32.mxu0 0.0
  %4452 = vmatmul.mubr.f32.gmra.mrb[0].mxu0 %v4320
  %v4453 = vpop.f32.mrb[0].mxu0
  %v4454 = vadd.f32 0.0, %v4453
  %v4455 = vpop.f32.mrb[0].mxu0
  %4456 = vmatprep.mubr.f32.mxu0 0.0
  %4457 = vmatmul.mubr.f32.gmra.mrb[0].mxu0 %v4323
  %v4458 = vpop.f32.mrb[0].mxu0
  %v4459 = vadd.f32 0.0, %v4458
  %v4460 = vpop.f32.mrb[0].mxu0
  %4461 = vmatprep.mubr.f32.mxu0 0.0
  %4462 = vmatmul.mubr.f32.gmra.mrb[0].mxu0 %v4326
  %v4463 = vpop.f32.mrb[0].mxu0
  %v4464 = vadd.f32 0.0, %v4463
  %v4465 = vpop.f32.mrb[0].mxu0
  %4466 = vmatprep.mubr.f32.mxu0 0.0
  %4467 = vmatmul.mubr.f32.gmra.mrb[0].mxu0 %v4329
  %v4468 = vpop.f32.mrb[0].mxu0
  %v4469 = vadd.f32 0.0, %v4468
  %v4470 = vpop.f32.mrb[0].mxu0
  %4471 = vmatprep.mubr.f32.mxu0 0.0
  %4472 = vmatmul.mubr.f32.gmra.mrb[0].mxu0 %v4332
  %v4473 = vpop.f32.mrb[0].mxu0
  %v4474 = vadd.f32 0.0, %v4473
  %v4475 = vpop.f32.mrb[0].mxu0
  %4476 = vmatprep.mubr.f32.mxu0 0.0
  %4477 = vmatmul.mubr.f32.gmra.mrb[0].mxu0 %v4335
  %v4478 = vpop.f32.mrb[0].mxu0
  %v4479 = vadd.f32 0.0, %v4478
  %v4480 = vpop.f32.mrb[0].mxu0
  %4481 = vmatprep.mubr.f32.mxu0 0.0
  %4482 = vmatmul.mubr.f32.gmra.mrb[0].mxu0 %v4338
  %v4483 = vpop.f32.mrb[0].mxu0
  %v4484 = vadd.f32 0.0, %v4483
  %v4485 = vpop.f32.mrb[0].mxu0
  %4486 = vmatprep.mubr.f32.mxu0 0.0
  %4487 = vmatmul.mubr.f32.gmra.mrb[0].mxu0 %v4341
  %v4488 = vpop.f32.mrb[0].mxu0
  %v4489 = vadd.f32 0.0, %v4488
  %v4490 = vpop.f32.mrb[0].mxu0
  %4491 = vmatprep.mubr.f32.mxu0 0.0
  %4492 = vmatmul.mubr.f32.gmra.mrb[0].mxu0 %v4344
  %v4493 = vpop.f32.mrb[0].mxu0
  %v4494 = vadd.f32 0.0, %v4493
  %v4495 = vpop.f32.mrb[0].mxu0
  %4496 = vmatprep.mubr.f32.mxu0 0.0
  %4497 = vmatmul.mubr.f32.gmra.mrb[0].mxu0 %v4347
  %v4498 = vpop.f32.mrb[0].mxu0
  %v4499 = vadd.f32 0.0, %v4498
  %v4500 = vpop.f32.mrb[0].mxu0
  %4501 = vmatprep.mubr.f32.mxu0 0.0
  %4502 = vmatmul.mubr.f32.gmra.mrb[0].mxu0 %v4350
  %v4503 = vpop.f32.mrb[0].mxu0
  %v4504 = vadd.f32 0.0, %v4503
  %v4505 = vpop.f32.mrb[0].mxu0
  %4506 = vmatprep.mubr.f32.mxu0 0.0
  %4507 = vmatmul.mubr.f32.gmra.mrb[0].mxu0 %v4353
  %v4508 = vpop.f32.mrb[0].mxu0
  %v4509 = vadd.f32 0.0, %v4508
  %v4510 = vpop.f32.mrb[0].mxu0
  %4511 = vmatprep.mubr.f32.mxu0 0.0
  %4512 = vmatmul.mubr.f32.gmra.mrb[0].mxu0 %v4356
  %v4513 = vpop.f32.mrb[0].mxu0
  %v4514 = vadd.f32 0.0, %v4513
  %v4515 = vpop.f32.mrb[0].mxu0
  %4516 = vmatprep.mubr.f32.mxu0 0.0
  %4517 = vmatmul.mubr.f32.gmra.mrb[0].mxu0 %v4359
  %v4518 = vpop.f32.mrb[0].mxu0
  %v4519 = vadd.f32 0.0, %v4518
  %v4520 = vpop.f32.mrb[0].mxu0
  %4521 = vmatprep.mubr.f32.mxu0 0.0
  %4522 = vmatmul.mubr.f32.gmra.mrb[0].mxu0 %v4362
  %v4523 = vpop.f32.mrb[0].mxu0
  %v4524 = vadd.f32 0.0, %v4523
  %v4525 = vpop.f32.mrb[0].mxu0
  %4526 = vmatprep.mubr.f32.mxu0 0.0
  %4527 = vmatmul.mubr.f32.gmra.mrb[0].mxu0 %v4365
  %v4528 = vpop.f32.mrb[0].mxu0
  %v4529 = vadd.f32 0.0, %v4528
  %v4530 = vpop.f32.mrb[0].mxu0
  %4531 = vmatprep.mubr.f32.mxu0 0.0
  %4532 = vmatmul.mubr.f32.gmra.mrb[0].mxu0 %v4368
  %v4533 = vpop.f32.mrb[0].mxu0
  %v4534 = vadd.f32 0.0, %v4533
  %v4535 = vpop.f32.mrb[0].mxu0
  %4536 = vmatprep.mubr.f32.mxu0 0.0
  %4537 = vmatmul.mubr.f32.gmra.mrb[0].mxu0 %v4371
  %v4538 = vpop.f32.mrb[0].mxu0
  %v4539 = vadd.f32 0.0, %v4538
  %v4540 = vpop.f32.mrb[0].mxu0
  %4541 = vmatprep.mubr.f32.mxu0 0.0
  %4542 = vmatmul.mubr.f32.gmra.mrb[0].mxu0 %v4374
  %v4543 = vpop.f32.mrb[0].mxu0
  %v4544 = vadd.f32 0.0, %v4543
  %v4545 = vpop.f32.mrb[0].mxu0
  %4546 = vmatprep.mubr.f32.mxu0 0.0
  %4547 = vmatmul.mubr.f32.gmra.mrb[0].mxu0 %v4377
  %v4548 = vpop.f32.mrb[0].mxu0
  %v4549 = vadd.f32 0.0, %v4548
  %v4550 = vpop.f32.mrb[0].mxu0
  %4551 = vmatprep.mubr.f32.mxu0 0.0
  %4552 = vmatmul.mubr.f32.gmra.mrb[0].mxu0 %v4380
  %v4553 = vpop.f32.mrb[0].mxu0
  %v4554 = vadd.f32 0.0, %v4553
  %v4555 = vpop.f32.mrb[0].mxu0
  %4556 = vdwg.mxu0
  %v4557 = vmul.f32 %v2680, %v4449
  %v4558 = vmul.f32 %v2683, %v4454
  %v4559 = vmul.f32 %v2688, %v4459
  %v4560 = vmul.f32 %v2691, %v4464
  %v4561 = vmul.f32 %v2696, %v4469
  %v4562 = vmul.f32 %v2699, %v4474
  %v4563 = vmul.f32 %v2704, %v4479
  %v4564 = vmul.f32 %v2707, %v4484
  %v4565 = vmul.f32 %v2712, %v4489
  %v4566 = vmul.f32 %v2715, %v4494
  %v4567 = vmul.f32 %v2720, %v4499
  %v4568 = vadd.f32 %v4557, %v4504
  %v4569 = vadd.f32 %v4558, %v4509
  %v4570 = vadd.f32 %v4559, %v4514
  %v4571 = vadd.f32 %v4560, %v4519
  %v4572 = vadd.f32 %v4561, %v4524
  %v4573 = vadd.f32 %v4562, %v4529
  %v4574 = vadd.f32 %v4563, %v4534
  %v4575 = vadd.f32 %v4564, %v4539
  %v4576 = vadd.f32 %v4565, %v4544
  %v4577 = vadd.f32 %v4566, %v4549
  %v4578 = vadd.f32 %v4567, %v4554
  %v4579 = vtanh.pop %v4568
  %v4580 = vtanh.pop %v4569
  %v4581 = vtanh.pop %v4570
  %v4582 = vtanh.pop %v4571
  %v4583 = vtanh.pop %v4572
  %v4584 = vtanh.pop %v4573
  %v4585 = vtanh.pop %v4574
  %v4586 = vtanh.pop %v4575
  %v4587 = vtanh.pop %v4576
  %v4588 = vtanh.pop %v4577
  %v4589 = vtanh.pop %v4578
  %v4590 = vadd.f32 %v4579, %v251
  %v4591 = vadd.f32 %v4580, %v252
  %v4592 = vadd.f32 %v4581, %v253
  %v4593 = vadd.f32 %v4582, %v254
  %v4594 = vadd.f32 %v4583, %v255
  %v4595 = vadd.f32 %v4584, %v256
  %v4596 = vadd.f32 %v4585, %v257
  %v4597 = vadd.f32 %v4586, %v258
  %v4598 = vadd.f32 %v4587, %v259
  %v4599 = vadd.f32 %v4588, %v260
  %v4600 = vadd.f32 %v4589, %v261
  %4601 = vst [vmem:[%s9] sm:$0xff] %v4590
  %4602 = vst [vmem:[%s9 + $0x8] sm:$0xff] %v4591
  %4603 = vst [vmem:[%s9 + $0x10] sm:$0xff] %v4592
  %4604 = vst [vmem:[%s9 + $0x18] sm:$0xff] %v4593
  %4605 = vst [vmem:[%s9 + $0x20] sm:$0xff] %v4594
  %4606 = vst [vmem:[%s9 + $0x28] sm:$0xff] %v4595
  %4607 = vst [vmem:[%s9 + $0x30] sm:$0xff] %v4596
  %4608 = vst [vmem:[%s9 + $0x38] sm:$0xff] %v4597
  %4609 = vst [vmem:[%s9 + $0x40] sm:$0xff] %v4598
  %4610 = vst [vmem:[%s9 + $0x48] sm:$0xff] %v4599
  %4611 = vst [vmem:[%s9 + $0x50] sm:$0xff] %v4600
  // Predicated region
  $region38: #{gc_block_forward.1} parent=0 // pred_check
    _
  $region39: #{gc_block_forward.1} parent=0 // pred_check_branch
    %4613 = sbr.rel (0) target = $region41
  $region40: #{gc_block_forward.1} parent=0 // pred_region
    _
  $region41: #{gc_block_forward.1} parent=0 // pred_fallthru
    _
  // Predicated region
  $region42: #{gc_block_forward.1} parent=0 // pred_check
    _
  $region43: #{gc_block_forward.1} parent=0 // pred_check_branch
    %4615 = sbr.rel (0) target = $region45
  $region44: #{gc_block_forward.1} parent=0 // pred_region
    _
  $region45: #{gc_block_forward.1} parent=0 // pred_fallthru
    _

</llo_original>
